<compile_context>
chip_gen: v7x
topology: tpu7x:2x2x1
jax: 0.10.0
libtpu: 0.0.40
codegen_flags: <defaults>
</compile_context>

<pallas_src>
import jax
import jax.numpy as jnp
from jax.experimental import pallas as pl
from jax.experimental.pallas import tpu as pltpu


def rnn5day_kernel(src_ref, w_ih0_ref, b0_ref, w_hh0_ref,
                   w_ih_ref, w_hh_ref, b_ref, fc_w_ref, fc_b_ref, out_ref):
    # src_ref: (T, Bt, I) time-major, one 8-row sublane tile of the (padded) batch.
    T, B, I = src_ref.shape
    H = w_hh0_ref.shape[-1]
    L = w_hh_ref.shape[0] + 1            # total RNN layers

    def dotf(a, w):                      # bf16 operands, f32 accumulation on the MXU
        return jnp.dot(a.astype(w.dtype), w, preferred_element_type=jnp.float32)

    # ---- Hoisted layer-0 input projection (both layer-0 biases folded in) ----
    # Done once for all T steps, entirely off the recurrent dependency chain.
    src2 = src_ref[...].reshape(T * B, I)
    if I == 1:
        # degenerate K=1 matmul -> broadcast multiply on the VPU
        x_proj = src2 * w_ih0_ref[...] + b0_ref[...]                      # (T*B, H)
    else:
        x_proj = jnp.dot(src2, w_ih0_ref[...],
                         preferred_element_type=jnp.float32) + b0_ref[...]

    # ---- Wavefront recurrence (fully unrolled; T and L are small & static) ----
    # h[l] holds h_l at its most recently computed timestep.  Within a wave every layer
    # update reads only pre-wave state, so the up-to-L dots+tanhs per wave are independent.
    h = [jnp.zeros((B, H), jnp.float32) for _ in range(L)]
    for s in range(T + L - 1):
        new = {}
        for l in range(L):
            t = s - l
            if t < 0 or t >= T:
                continue
            if l == 0:
                pre = x_proj[t * B:(t + 1) * B] + dotf(h[0], w_hh0_ref[...])
            else:
                pre = (dotf(h[l - 1], w_ih_ref[l - 1])
                       + dotf(h[l], w_hh_ref[l - 1])
                       + b_ref[l - 1])
            new[l] = jnp.tanh(pre)
        for l, v in new.items():         # commit after the wave: no intra-wave deps
            h[l] = v

    # ---- fc on the last time step of the top layer (lane-padded output) ----
    out_ref[...] = (dotf(h[L - 1], fc_w_ref[...]) + fc_b_ref[...]).astype(out_ref.dtype)


def rnn5day_forward(src, params):
    """src: (B, T, I) batch_first, float32. Returns (B, horizon, 1)."""
    B, T, I = src.shape
    L, _, H = params["w_hh"].shape
    horizon = params["fc_w"].shape[-1]
    Lm1 = L - 1

    BT = 8                                           # batch sublane tile
    B_pad = ((B + BT - 1) // BT) * BT
    n_btiles = B_pad // BT
    OUT_PAD = ((horizon + 127) // 128) * 128

    src_tm = jnp.transpose(src, (1, 0, 2))           # (T, B, I) time-major
    if B_pad != B:
        src_tm = jnp.pad(src_tm, ((0, 0), (0, B_pad - B), (0, 0)))

    # Layer 0: fold both biases into the hoisted input projection (tiny -> keep f32).
    w_ih0 = params["w_ih0"]                                          # (I, H)
    b0 = params["b_ih0"] + params["b_hh"][0]                         # (1, H)

    # Recurrent + fc weights in bf16 (f32 accumulation in the kernel); biases f32.
    w_hh0 = params["w_hh"][0].astype(jnp.bfloat16)                   # (H, H)
    w_ih = params["w_ih"].astype(jnp.bfloat16)                       # (L-1, H, H)
    w_hh = params["w_hh"][1:].astype(jnp.bfloat16)                   # (L-1, H, H)
    b_fused = params["b_ih"] + params["b_hh"][1:]                    # (L-1, 1, H)

    fc_w = jnp.pad(params["fc_w"],
                   ((0, 0), (0, OUT_PAD - horizon))).astype(jnp.bfloat16)  # (H, OUT_PAD)
    fc_b = jnp.pad(params["fc_b"], ((0, 0), (0, OUT_PAD - horizon)))       # (1, OUT_PAD)

    def full(shape):                                 # whole-array block, same every step
        return pl.BlockSpec(shape, lambda b, _n=len(shape): (0,) * _n)

    in_specs = [
        pl.BlockSpec((T, BT, I), lambda b: (0, b, 0)),   # src: tile over batch
        full((I, H)),            # w_ih0
        full((1, H)),            # b0
        full((H, H)),            # w_hh0
        full((Lm1, H, H)),       # w_ih
        full((Lm1, H, H)),       # w_hh (layers 1..L-1)
        full((Lm1, 1, H)),       # fused biases
        full((H, OUT_PAD)),      # fc_w
        full((1, OUT_PAD)),      # fc_b
    ]
    out_spec = pl.BlockSpec((BT, OUT_PAD), lambda b: (b, 0))

    out = pl.pallas_call(
        rnn5day_kernel,
        grid=(n_btiles,),
        out_shape=jax.ShapeDtypeStruct((B_pad, OUT_PAD), jnp.float32),
        in_specs=in_specs,
        out_specs=out_spec,
        compiler_params=pltpu.CompilerParams(dimension_semantics=("parallel",)),
    )(src_tm, w_ih0, b0, w_hh0, w_ih, w_hh, b_fused, fc_w, fc_b)

    return out[:B, :horizon].reshape(B, horizon, 1)


def init_params(key, input_size=1, hidden_size=128, horizon=5, num_layers=4):
    """Deterministic init mimicking PyTorch's U(-1/sqrt(H), 1/sqrt(H))."""
    H, I, L = hidden_size, input_size, num_layers
    stdv = 1.0 / jnp.sqrt(jnp.float32(H))
    keys = jax.random.split(key, 9)
    u = lambda k, shape: jax.random.uniform(k, shape, jnp.float32, -stdv, stdv)
    return {
        "w_ih0": u(keys[0], (I, H)),
        "b_ih0": u(keys[1], (1, H)),
        "w_ih":  u(keys[2], (L - 1, H, H)),
        "b_ih":  u(keys[3], (L - 1, 1, H)),
        "w_hh":  u(keys[4], (L, H, H)),
        "b_hh":  u(keys[5], (L, 1, H)),
        "fc_w":  u(keys[6], (H, horizon)),
        "fc_b":  u(keys[7], (1, horizon)),
    }


def rnn5day_reference(src, params):
    """Pure-JAX f32 reference of the same forward (for correctness checking)."""
    B, T, I = src.shape
    L, _, H = params["w_hh"].shape
    hs = [jnp.zeros((B, H), jnp.float32) for _ in range(L)]
    for t in range(T):
        inp = src[:, t, :]
        for l in range(L):
            if l == 0:
                pre = inp @ params["w_ih0"] + params["b_ih0"]
            else:
                pre = inp @ params["w_ih"][l - 1] + params["b_ih"][l - 1]
            pre = pre + hs[l] @ params["w_hh"][l] + params["b_hh"][l]
            hs[l] = jnp.tanh(pre)
            inp = hs[l]
    out = hs[-1] @ params["fc_w"] + params["fc_b"]
    return out.reshape(B, -1, 1)


if __name__ == "__main__":
    key = jax.random.PRNGKey(0)
    k_param, k_src = jax.random.split(key)

    B, T, I = 4, 8, 1          # batch, sequence length, input_size
    H, L, HOR = 128, 4, 5      # hidden_size, num_layers, horizon

    params = init_params(k_param, input_size=I, hidden_size=H,
                         horizon=HOR, num_layers=L)
    src = jax.random.normal(k_src, (B, T, I), jnp.float32)

    out = jax.block_until_ready(rnn5day_forward(src, params))
    ref = jax.block_until_ready(rnn5day_reference(src, params))

    assert out.shape == (B, HOR, 1), out.shape
    # bf16 weight storage / bf16 MXU passes vs the full-f32 reference: allow small drift
    # (structural bugs would be O(0.1+), well above this tolerance).
    err = float(jnp.max(jnp.abs(out - ref)))
    assert err < 2e-2, err

    print("KERNEL_OK")
</pallas_src>

<mosaic_0001>
module attributes {stable_mosaic.version = 11 : i64} {
  func.func @rnn5day_kernel(%arg0: i32, %arg1: memref<8x8x1xf32, #tpu.memory_space<vmem>>, %arg2: memref<1x128xf32, #tpu.memory_space<vmem>>, %arg3: memref<1x128xf32, #tpu.memory_space<vmem>>, %arg4: memref<128x128xbf16, #tpu.memory_space<vmem>>, %arg5: memref<3x128x128xbf16, #tpu.memory_space<vmem>>, %arg6: memref<3x128x128xbf16, #tpu.memory_space<vmem>>, %arg7: memref<3x1x128xf32, #tpu.memory_space<vmem>>, %arg8: memref<128x128xbf16, #tpu.memory_space<vmem>>, %arg9: memref<1x128xf32, #tpu.memory_space<vmem>>, %arg10: memref<8x128xf32, #tpu.memory_space<vmem>>) attributes {dimension_semantics = [#tpu.dimension_semantics<parallel>], iteration_bounds = array<i64: 1>, scalar_prefetch = 0 : i64, scratch_operands = 0 : i64, tpu.core_type = #tpu.core_type<tc>, window_params = [{transform_indices = @transform_0, window_bounds = array<i64: 8, 8, 1>}, {pipeline_mode = #tpu.pipeline_mode<synchronous>, transform_indices = @transform_1, window_bounds = array<i64: 1, 128>}, {pipeline_mode = #tpu.pipeline_mode<synchronous>, transform_indices = @transform_2, window_bounds = array<i64: 1, 128>}, {pipeline_mode = #tpu.pipeline_mode<synchronous>, transform_indices = @transform_3, window_bounds = array<i64: 128, 128>}, {pipeline_mode = #tpu.pipeline_mode<synchronous>, transform_indices = @transform_4, window_bounds = array<i64: 3, 128, 128>}, {pipeline_mode = #tpu.pipeline_mode<synchronous>, transform_indices = @transform_5, window_bounds = array<i64: 3, 128, 128>}, {pipeline_mode = #tpu.pipeline_mode<synchronous>, transform_indices = @transform_6, window_bounds = array<i64: 3, 1, 128>}, {pipeline_mode = #tpu.pipeline_mode<synchronous>, transform_indices = @transform_7, window_bounds = array<i64: 128, 128>}, {pipeline_mode = #tpu.pipeline_mode<synchronous>, transform_indices = @transform_8, window_bounds = array<i64: 1, 128>}, {transform_indices = @transform_9, window_bounds = array<i64: 8, 128>}]} {
    %c0 = arith.constant 0 : index
    %c0_0 = arith.constant 0 : index
    %c0_1 = arith.constant 0 : index
    %0 = vector.load %arg1[%c0, %c0_0, %c0_1] : memref<8x8x1xf32, #tpu.memory_space<vmem>>, vector<8x8x1xf32>
    %1 = vector.shape_cast %0 : vector<8x8x1xf32> to vector<64x1xf32>
    %c0_2 = arith.constant 0 : index
    %c0_3 = arith.constant 0 : index
    %2 = vector.load %arg2[%c0_2, %c0_3] : memref<1x128xf32, #tpu.memory_space<vmem>>, vector<1x128xf32>
    %3 = vector.broadcast %1 : vector<64x1xf32> to vector<64x128xf32>
    %4 = vector.broadcast %2 : vector<1x128xf32> to vector<64x128xf32>
    %5 = arith.mulf %3, %4 : vector<64x128xf32>
    %c0_4 = arith.constant 0 : index
    %c0_5 = arith.constant 0 : index
    %6 = vector.load %arg3[%c0_4, %c0_5] : memref<1x128xf32, #tpu.memory_space<vmem>>, vector<1x128xf32>
    %7 = vector.broadcast %6 : vector<1x128xf32> to vector<64x128xf32>
    %8 = arith.addf %5, %7 : vector<64x128xf32>
    %cst = arith.constant 0.000000e+00 : f32
    %9 = vector.broadcast %cst : f32 to vector<8x128xf32>
    %cst_6 = arith.constant 0.000000e+00 : f32
    %10 = vector.broadcast %cst_6 : f32 to vector<8x128xf32>
    %cst_7 = arith.constant 0.000000e+00 : f32
    %11 = vector.broadcast %cst_7 : f32 to vector<8x128xf32>
    %cst_8 = arith.constant 0.000000e+00 : f32
    %12 = vector.broadcast %cst_8 : f32 to vector<8x128xf32>
    %13 = vector.extract_strided_slice %8 {offsets = [0, 0], sizes = [8, 128], strides = [1, 1]} : vector<64x128xf32> to vector<8x128xf32>
    %c0_9 = arith.constant 0 : index
    %c0_10 = arith.constant 0 : index
    %14 = vector.load %arg4[%c0_9, %c0_10] : memref<128x128xbf16, #tpu.memory_space<vmem>>, vector<128x128xbf16>
    %15 = arith.truncf %9 : vector<8x128xf32> to vector<8x128xbf16>
    %cst_11 = arith.constant dense<0.000000e+00> : vector<8x128xf32>
    %16 = tpu.matmul %15, %14, %cst_11 {dimension_numbers = #tpu.dot_dimension_numbers<[1], [0], [0], [1], [0, 0, 1, 1], [], []>} : vector<8x128xbf16>, vector<128x128xbf16>, vector<8x128xf32> -> vector<8x128xf32>
    %17 = arith.addf %13, %16 : vector<8x128xf32>
    %18 = math.tanh %17 : vector<8x128xf32>
    %19 = vector.extract_strided_slice %8 {offsets = [8, 0], sizes = [8, 128], strides = [1, 1]} : vector<64x128xf32> to vector<8x128xf32>
    %c0_12 = arith.constant 0 : index
    %c0_13 = arith.constant 0 : index
    %20 = vector.load %arg4[%c0_12, %c0_13] : memref<128x128xbf16, #tpu.memory_space<vmem>>, vector<128x128xbf16>
    %21 = arith.truncf %18 : vector<8x128xf32> to vector<8x128xbf16>
    %cst_14 = arith.constant dense<0.000000e+00> : vector<8x128xf32>
    %22 = tpu.matmul %21, %20, %cst_14 {dimension_numbers = #tpu.dot_dimension_numbers<[1], [0], [0], [1], [0, 0, 1, 1], [], []>} : vector<8x128xbf16>, vector<128x128xbf16>, vector<8x128xf32> -> vector<8x128xf32>
    %23 = arith.addf %19, %22 : vector<8x128xf32>
    %24 = math.tanh %23 : vector<8x128xf32>
    %c0_15 = arith.constant 0 : index
    %c0_16 = arith.constant 0 : index
    %c0_17 = arith.constant 0 : index
    %25 = vector.load %arg5[%c0_15, %c0_16, %c0_17] : memref<3x128x128xbf16, #tpu.memory_space<vmem>>, vector<1x128x128xbf16>
    %26 = vector.shape_cast %25 : vector<1x128x128xbf16> to vector<128x128xbf16>
    %27 = arith.truncf %18 : vector<8x128xf32> to vector<8x128xbf16>
    %cst_18 = arith.constant dense<0.000000e+00> : vector<8x128xf32>
    %28 = tpu.matmul %27, %26, %cst_18 {dimension_numbers = #tpu.dot_dimension_numbers<[1], [0], [0], [1], [0, 0, 1, 1], [], []>} : vector<8x128xbf16>, vector<128x128xbf16>, vector<8x128xf32> -> vector<8x128xf32>
    %c0_19 = arith.constant 0 : index
    %c0_20 = arith.constant 0 : index
    %c0_21 = arith.constant 0 : index
    %29 = vector.load %arg6[%c0_19, %c0_20, %c0_21] : memref<3x128x128xbf16, #tpu.memory_space<vmem>>, vector<1x128x128xbf16>
    %30 = vector.shape_cast %29 : vector<1x128x128xbf16> to vector<128x128xbf16>
    %31 = arith.truncf %10 : vector<8x128xf32> to vector<8x128xbf16>
    %cst_22 = arith.constant dense<0.000000e+00> : vector<8x128xf32>
    %32 = tpu.matmul %31, %30, %cst_22 {dimension_numbers = #tpu.dot_dimension_numbers<[1], [0], [0], [1], [0, 0, 1, 1], [], []>} : vector<8x128xbf16>, vector<128x128xbf16>, vector<8x128xf32> -> vector<8x128xf32>
    %33 = arith.addf %28, %32 : vector<8x128xf32>
    %c0_23 = arith.constant 0 : index
    %c0_24 = arith.constant 0 : index
    %c0_25 = arith.constant 0 : index
    %34 = vector.load %arg7[%c0_23, %c0_24, %c0_25] : memref<3x1x128xf32, #tpu.memory_space<vmem>>, vector<1x1x128xf32>
    %35 = vector.shape_cast %34 : vector<1x1x128xf32> to vector<1x128xf32>
    %36 = vector.broadcast %35 : vector<1x128xf32> to vector<8x128xf32>
    %37 = arith.addf %33, %36 : vector<8x128xf32>
    %38 = math.tanh %37 : vector<8x128xf32>
    %39 = vector.extract_strided_slice %8 {offsets = [16, 0], sizes = [8, 128], strides = [1, 1]} : vector<64x128xf32> to vector<8x128xf32>
    %c0_26 = arith.constant 0 : index
    %c0_27 = arith.constant 0 : index
    %40 = vector.load %arg4[%c0_26, %c0_27] : memref<128x128xbf16, #tpu.memory_space<vmem>>, vector<128x128xbf16>
    %41 = arith.truncf %24 : vector<8x128xf32> to vector<8x128xbf16>
    %cst_28 = arith.constant dense<0.000000e+00> : vector<8x128xf32>
    %42 = tpu.matmul %41, %40, %cst_28 {dimension_numbers = #tpu.dot_dimension_numbers<[1], [0], [0], [1], [0, 0, 1, 1], [], []>} : vector<8x128xbf16>, vector<128x128xbf16>, vector<8x128xf32> -> vector<8x128xf32>
    %43 = arith.addf %39, %42 : vector<8x128xf32>
    %44 = math.tanh %43 : vector<8x128xf32>
    %c0_29 = arith.constant 0 : index
    %c0_30 = arith.constant 0 : index
    %c0_31 = arith.constant 0 : index
    %45 = vector.load %arg5[%c0_29, %c0_30, %c0_31] : memref<3x128x128xbf16, #tpu.memory_space<vmem>>, vector<1x128x128xbf16>
    %46 = vector.shape_cast %45 : vector<1x128x128xbf16> to vector<128x128xbf16>
    %47 = arith.truncf %24 : vector<8x128xf32> to vector<8x128xbf16>
    %cst_32 = arith.constant dense<0.000000e+00> : vector<8x128xf32>
    %48 = tpu.matmul %47, %46, %cst_32 {dimension_numbers = #tpu.dot_dimension_numbers<[1], [0], [0], [1], [0, 0, 1, 1], [], []>} : vector<8x128xbf16>, vector<128x128xbf16>, vector<8x128xf32> -> vector<8x128xf32>
    %c0_33 = arith.constant 0 : index
    %c0_34 = arith.constant 0 : index
    %c0_35 = arith.constant 0 : index
    %49 = vector.load %arg6[%c0_33, %c0_34, %c0_35] : memref<3x128x128xbf16, #tpu.memory_space<vmem>>, vector<1x128x128xbf16>
    %50 = vector.shape_cast %49 : vector<1x128x128xbf16> to vector<128x128xbf16>
    %51 = arith.truncf %38 : vector<8x128xf32> to vector<8x128xbf16>
    %cst_36 = arith.constant dense<0.000000e+00> : vector<8x128xf32>
    %52 = tpu.matmul %51, %50, %cst_36 {dimension_numbers = #tpu.dot_dimension_numbers<[1], [0], [0], [1], [0, 0, 1, 1], [], []>} : vector<8x128xbf16>, vector<128x128xbf16>, vector<8x128xf32> -> vector<8x128xf32>
    %53 = arith.addf %48, %52 : vector<8x128xf32>
    %c0_37 = arith.constant 0 : index
    %c0_38 = arith.constant 0 : index
    %c0_39 = arith.constant 0 : index
    %54 = vector.load %arg7[%c0_37, %c0_38, %c0_39] : memref<3x1x128xf32, #tpu.memory_space<vmem>>, vector<1x1x128xf32>
    %55 = vector.shape_cast %54 : vector<1x1x128xf32> to vector<1x128xf32>
    %56 = vector.broadcast %55 : vector<1x128xf32> to vector<8x128xf32>
    %57 = arith.addf %53, %56 : vector<8x128xf32>
    %58 = math.tanh %57 : vector<8x128xf32>
    %c1 = arith.constant 1 : index
    %c0_40 = arith.constant 0 : index
    %c0_41 = arith.constant 0 : index
    %59 = vector.load %arg5[%c1, %c0_40, %c0_41] : memref<3x128x128xbf16, #tpu.memory_space<vmem>>, vector<1x128x128xbf16>
    %60 = vector.shape_cast %59 : vector<1x128x128xbf16> to vector<128x128xbf16>
    %61 = arith.truncf %38 : vector<8x128xf32> to vector<8x128xbf16>
    %cst_42 = arith.constant dense<0.000000e+00> : vector<8x128xf32>
    %62 = tpu.matmul %61, %60, %cst_42 {dimension_numbers = #tpu.dot_dimension_numbers<[1], [0], [0], [1], [0, 0, 1, 1], [], []>} : vector<8x128xbf16>, vector<128x128xbf16>, vector<8x128xf32> -> vector<8x128xf32>
    %c1_43 = arith.constant 1 : index
    %c0_44 = arith.constant 0 : index
    %c0_45 = arith.constant 0 : index
    %63 = vector.load %arg6[%c1_43, %c0_44, %c0_45] : memref<3x128x128xbf16, #tpu.memory_space<vmem>>, vector<1x128x128xbf16>
    %64 = vector.shape_cast %63 : vector<1x128x128xbf16> to vector<128x128xbf16>
    %65 = arith.truncf %11 : vector<8x128xf32> to vector<8x128xbf16>
    %cst_46 = arith.constant dense<0.000000e+00> : vector<8x128xf32>
    %66 = tpu.matmul %65, %64, %cst_46 {dimension_numbers = #tpu.dot_dimension_numbers<[1], [0], [0], [1], [0, 0, 1, 1], [], []>} : vector<8x128xbf16>, vector<128x128xbf16>, vector<8x128xf32> -> vector<8x128xf32>
    %67 = arith.addf %62, %66 : vector<8x128xf32>
    %c1_47 = arith.constant 1 : index
    %c0_48 = arith.constant 0 : index
    %c0_49 = arith.constant 0 : index
    %68 = vector.load %arg7[%c1_47, %c0_48, %c0_49] : memref<3x1x128xf32, #tpu.memory_space<vmem>>, vector<1x1x128xf32>
    %69 = vector.shape_cast %68 : vector<1x1x128xf32> to vector<1x128xf32>
    %70 = vector.broadcast %69 : vector<1x128xf32> to vector<8x128xf32>
    %71 = arith.addf %67, %70 : vector<8x128xf32>
    %72 = math.tanh %71 : vector<8x128xf32>
    %73 = vector.extract_strided_slice %8 {offsets = [24, 0], sizes = [8, 128], strides = [1, 1]} : vector<64x128xf32> to vector<8x128xf32>
    %c0_50 = arith.constant 0 : index
    %c0_51 = arith.constant 0 : index
    %74 = vector.load %arg4[%c0_50, %c0_51] : memref<128x128xbf16, #tpu.memory_space<vmem>>, vector<128x128xbf16>
    %75 = arith.truncf %44 : vector<8x128xf32> to vector<8x128xbf16>
    %cst_52 = arith.constant dense<0.000000e+00> : vector<8x128xf32>
    %76 = tpu.matmul %75, %74, %cst_52 {dimension_numbers = #tpu.dot_dimension_numbers<[1], [0], [0], [1], [0, 0, 1, 1], [], []>} : vector<8x128xbf16>, vector<128x128xbf16>, vector<8x128xf32> -> vector<8x128xf32>
    %77 = arith.addf %73, %76 : vector<8x128xf32>
    %78 = math.tanh %77 : vector<8x128xf32>
    %c0_53 = arith.constant 0 : index
    %c0_54 = arith.constant 0 : index
    %c0_55 = arith.constant 0 : index
    %79 = vector.load %arg5[%c0_53, %c0_54, %c0_55] : memref<3x128x128xbf16, #tpu.memory_space<vmem>>, vector<1x128x128xbf16>
    %80 = vector.shape_cast %79 : vector<1x128x128xbf16> to vector<128x128xbf16>
    %81 = arith.truncf %44 : vector<8x128xf32> to vector<8x128xbf16>
    %cst_56 = arith.constant dense<0.000000e+00> : vector<8x128xf32>
    %82 = tpu.matmul %81, %80, %cst_56 {dimension_numbers = #tpu.dot_dimension_numbers<[1], [0], [0], [1], [0, 0, 1, 1], [], []>} : vector<8x128xbf16>, vector<128x128xbf16>, vector<8x128xf32> -> vector<8x128xf32>
    %c0_57 = arith.constant 0 : index
    %c0_58 = arith.constant 0 : index
    %c0_59 = arith.constant 0 : index
    %83 = vector.load %arg6[%c0_57, %c0_58, %c0_59] : memref<3x128x128xbf16, #tpu.memory_space<vmem>>, vector<1x128x128xbf16>
    %84 = vector.shape_cast %83 : vector<1x128x128xbf16> to vector<128x128xbf16>
    %85 = arith.truncf %58 : vector<8x128xf32> to vector<8x128xbf16>
    %cst_60 = arith.constant dense<0.000000e+00> : vector<8x128xf32>
    %86 = tpu.matmul %85, %84, %cst_60 {dimension_numbers = #tpu.dot_dimension_numbers<[1], [0], [0], [1], [0, 0, 1, 1], [], []>} : vector<8x128xbf16>, vector<128x128xbf16>, vector<8x128xf32> -> vector<8x128xf32>
    %87 = arith.addf %82, %86 : vector<8x128xf32>
    %c0_61 = arith.constant 0 : index
    %c0_62 = arith.constant 0 : index
    %c0_63 = arith.constant 0 : index
    %88 = vector.load %arg7[%c0_61, %c0_62, %c0_63] : memref<3x1x128xf32, #tpu.memory_space<vmem>>, vector<1x1x128xf32>
    %89 = vector.shape_cast %88 : vector<1x1x128xf32> to vector<1x128xf32>
    %90 = vector.broadcast %89 : vector<1x128xf32> to vector<8x128xf32>
    %91 = arith.addf %87, %90 : vector<8x128xf32>
    %92 = math.tanh %91 : vector<8x128xf32>
    %c1_64 = arith.constant 1 : index
    %c0_65 = arith.constant 0 : index
    %c0_66 = arith.constant 0 : index
    %93 = vector.load %arg5[%c1_64, %c0_65, %c0_66] : memref<3x128x128xbf16, #tpu.memory_space<vmem>>, vector<1x128x128xbf16>
    %94 = vector.shape_cast %93 : vector<1x128x128xbf16> to vector<128x128xbf16>
    %95 = arith.truncf %58 : vector<8x128xf32> to vector<8x128xbf16>
    %cst_67 = arith.constant dense<0.000000e+00> : vector<8x128xf32>
    %96 = tpu.matmul %95, %94, %cst_67 {dimension_numbers = #tpu.dot_dimension_numbers<[1], [0], [0], [1], [0, 0, 1, 1], [], []>} : vector<8x128xbf16>, vector<128x128xbf16>, vector<8x128xf32> -> vector<8x128xf32>
    %c1_68 = arith.constant 1 : index
    %c0_69 = arith.constant 0 : index
    %c0_70 = arith.constant 0 : index
    %97 = vector.load %arg6[%c1_68, %c0_69, %c0_70] : memref<3x128x128xbf16, #tpu.memory_space<vmem>>, vector<1x128x128xbf16>
    %98 = vector.shape_cast %97 : vector<1x128x128xbf16> to vector<128x128xbf16>
    %99 = arith.truncf %72 : vector<8x128xf32> to vector<8x128xbf16>
    %cst_71 = arith.constant dense<0.000000e+00> : vector<8x128xf32>
    %100 = tpu.matmul %99, %98, %cst_71 {dimension_numbers = #tpu.dot_dimension_numbers<[1], [0], [0], [1], [0, 0, 1, 1], [], []>} : vector<8x128xbf16>, vector<128x128xbf16>, vector<8x128xf32> -> vector<8x128xf32>
    %101 = arith.addf %96, %100 : vector<8x128xf32>
    %c1_72 = arith.constant 1 : index
    %c0_73 = arith.constant 0 : index
    %c0_74 = arith.constant 0 : index
    %102 = vector.load %arg7[%c1_72, %c0_73, %c0_74] : memref<3x1x128xf32, #tpu.memory_space<vmem>>, vector<1x1x128xf32>
    %103 = vector.shape_cast %102 : vector<1x1x128xf32> to vector<1x128xf32>
    %104 = vector.broadcast %103 : vector<1x128xf32> to vector<8x128xf32>
    %105 = arith.addf %101, %104 : vector<8x128xf32>
    %106 = math.tanh %105 : vector<8x128xf32>
    %c2 = arith.constant 2 : index
    %c0_75 = arith.constant 0 : index
    %c0_76 = arith.constant 0 : index
    %107 = vector.load %arg5[%c2, %c0_75, %c0_76] : memref<3x128x128xbf16, #tpu.memory_space<vmem>>, vector<1x128x128xbf16>
    %108 = vector.shape_cast %107 : vector<1x128x128xbf16> to vector<128x128xbf16>
    %109 = arith.truncf %72 : vector<8x128xf32> to vector<8x128xbf16>
    %cst_77 = arith.constant dense<0.000000e+00> : vector<8x128xf32>
    %110 = tpu.matmul %109, %108, %cst_77 {dimension_numbers = #tpu.dot_dimension_numbers<[1], [0], [0], [1], [0, 0, 1, 1], [], []>} : vector<8x128xbf16>, vector<128x128xbf16>, vector<8x128xf32> -> vector<8x128xf32>
    %c2_78 = arith.constant 2 : index
    %c0_79 = arith.constant 0 : index
    %c0_80 = arith.constant 0 : index
    %111 = vector.load %arg6[%c2_78, %c0_79, %c0_80] : memref<3x128x128xbf16, #tpu.memory_space<vmem>>, vector<1x128x128xbf16>
    %112 = vector.shape_cast %111 : vector<1x128x128xbf16> to vector<128x128xbf16>
    %113 = arith.truncf %12 : vector<8x128xf32> to vector<8x128xbf16>
    %cst_81 = arith.constant dense<0.000000e+00> : vector<8x128xf32>
    %114 = tpu.matmul %113, %112, %cst_81 {dimension_numbers = #tpu.dot_dimension_numbers<[1], [0], [0], [1], [0, 0, 1, 1], [], []>} : vector<8x128xbf16>, vector<128x128xbf16>, vector<8x128xf32> -> vector<8x128xf32>
    %115 = arith.addf %110, %114 : vector<8x128xf32>
    %c2_82 = arith.constant 2 : index
    %c0_83 = arith.constant 0 : index
    %c0_84 = arith.constant 0 : index
    %116 = vector.load %arg7[%c2_82, %c0_83, %c0_84] : memref<3x1x128xf32, #tpu.memory_space<vmem>>, vector<1x1x128xf32>
    %117 = vector.shape_cast %116 : vector<1x1x128xf32> to vector<1x128xf32>
    %118 = vector.broadcast %117 : vector<1x128xf32> to vector<8x128xf32>
    %119 = arith.addf %115, %118 : vector<8x128xf32>
    %120 = math.tanh %119 : vector<8x128xf32>
    %121 = vector.extract_strided_slice %8 {offsets = [32, 0], sizes = [8, 128], strides = [1, 1]} : vector<64x128xf32> to vector<8x128xf32>
    %c0_85 = arith.constant 0 : index
    %c0_86 = arith.constant 0 : index
    %122 = vector.load %arg4[%c0_85, %c0_86] : memref<128x128xbf16, #tpu.memory_space<vmem>>, vector<128x128xbf16>
    %123 = arith.truncf %78 : vector<8x128xf32> to vector<8x128xbf16>
    %cst_87 = arith.constant dense<0.000000e+00> : vector<8x128xf32>
    %124 = tpu.matmul %123, %122, %cst_87 {dimension_numbers = #tpu.dot_dimension_numbers<[1], [0], [0], [1], [0, 0, 1, 1], [], []>} : vector<8x128xbf16>, vector<128x128xbf16>, vector<8x128xf32> -> vector<8x128xf32>
    %125 = arith.addf %121, %124 : vector<8x128xf32>
    %126 = math.tanh %125 : vector<8x128xf32>
    %c0_88 = arith.constant 0 : index
    %c0_89 = arith.constant 0 : index
    %c0_90 = arith.constant 0 : index
    %127 = vector.load %arg5[%c0_88, %c0_89, %c0_90] : memref<3x128x128xbf16, #tpu.memory_space<vmem>>, vector<1x128x128xbf16>
    %128 = vector.shape_cast %127 : vector<1x128x128xbf16> to vector<128x128xbf16>
    %129 = arith.truncf %78 : vector<8x128xf32> to vector<8x128xbf16>
    %cst_91 = arith.constant dense<0.000000e+00> : vector<8x128xf32>
    %130 = tpu.matmul %129, %128, %cst_91 {dimension_numbers = #tpu.dot_dimension_numbers<[1], [0], [0], [1], [0, 0, 1, 1], [], []>} : vector<8x128xbf16>, vector<128x128xbf16>, vector<8x128xf32> -> vector<8x128xf32>
    %c0_92 = arith.constant 0 : index
    %c0_93 = arith.constant 0 : index
    %c0_94 = arith.constant 0 : index
    %131 = vector.load %arg6[%c0_92, %c0_93, %c0_94] : memref<3x128x128xbf16, #tpu.memory_space<vmem>>, vector<1x128x128xbf16>
    %132 = vector.shape_cast %131 : vector<1x128x128xbf16> to vector<128x128xbf16>
    %133 = arith.truncf %92 : vector<8x128xf32> to vector<8x128xbf16>
    %cst_95 = arith.constant dense<0.000000e+00> : vector<8x128xf32>
    %134 = tpu.matmul %133, %132, %cst_95 {dimension_numbers = #tpu.dot_dimension_numbers<[1], [0], [0], [1], [0, 0, 1, 1], [], []>} : vector<8x128xbf16>, vector<128x128xbf16>, vector<8x128xf32> -> vector<8x128xf32>
    %135 = arith.addf %130, %134 : vector<8x128xf32>
    %c0_96 = arith.constant 0 : index
    %c0_97 = arith.constant 0 : index
    %c0_98 = arith.constant 0 : index
    %136 = vector.load %arg7[%c0_96, %c0_97, %c0_98] : memref<3x1x128xf32, #tpu.memory_space<vmem>>, vector<1x1x128xf32>
    %137 = vector.shape_cast %136 : vector<1x1x128xf32> to vector<1x128xf32>
    %138 = vector.broadcast %137 : vector<1x128xf32> to vector<8x128xf32>
    %139 = arith.addf %135, %138 : vector<8x128xf32>
    %140 = math.tanh %139 : vector<8x128xf32>
    %c1_99 = arith.constant 1 : index
    %c0_100 = arith.constant 0 : index
    %c0_101 = arith.constant 0 : index
    %141 = vector.load %arg5[%c1_99, %c0_100, %c0_101] : memref<3x128x128xbf16, #tpu.memory_space<vmem>>, vector<1x128x128xbf16>
    %142 = vector.shape_cast %141 : vector<1x128x128xbf16> to vector<128x128xbf16>
    %143 = arith.truncf %92 : vector<8x128xf32> to vector<8x128xbf16>
    %cst_102 = arith.constant dense<0.000000e+00> : vector<8x128xf32>
    %144 = tpu.matmul %143, %142, %cst_102 {dimension_numbers = #tpu.dot_dimension_numbers<[1], [0], [0], [1], [0, 0, 1, 1], [], []>} : vector<8x128xbf16>, vector<128x128xbf16>, vector<8x128xf32> -> vector<8x128xf32>
    %c1_103 = arith.constant 1 : index
    %c0_104 = arith.constant 0 : index
    %c0_105 = arith.constant 0 : index
    %145 = vector.load %arg6[%c1_103, %c0_104, %c0_105] : memref<3x128x128xbf16, #tpu.memory_space<vmem>>, vector<1x128x128xbf16>
    %146 = vector.shape_cast %145 : vector<1x128x128xbf16> to vector<128x128xbf16>
    %147 = arith.truncf %106 : vector<8x128xf32> to vector<8x128xbf16>
    %cst_106 = arith.constant dense<0.000000e+00> : vector<8x128xf32>
    %148 = tpu.matmul %147, %146, %cst_106 {dimension_numbers = #tpu.dot_dimension_numbers<[1], [0], [0], [1], [0, 0, 1, 1], [], []>} : vector<8x128xbf16>, vector<128x128xbf16>, vector<8x128xf32> -> vector<8x128xf32>
    %149 = arith.addf %144, %148 : vector<8x128xf32>
    %c1_107 = arith.constant 1 : index
    %c0_108 = arith.constant 0 : index
    %c0_109 = arith.constant 0 : index
    %150 = vector.load %arg7[%c1_107, %c0_108, %c0_109] : memref<3x1x128xf32, #tpu.memory_space<vmem>>, vector<1x1x128xf32>
    %151 = vector.shape_cast %150 : vector<1x1x128xf32> to vector<1x128xf32>
    %152 = vector.broadcast %151 : vector<1x128xf32> to vector<8x128xf32>
    %153 = arith.addf %149, %152 : vector<8x128xf32>
    %154 = math.tanh %153 : vector<8x128xf32>
    %c2_110 = arith.constant 2 : index
    %c0_111 = arith.constant 0 : index
    %c0_112 = arith.constant 0 : index
    %155 = vector.load %arg5[%c2_110, %c0_111, %c0_112] : memref<3x128x128xbf16, #tpu.memory_space<vmem>>, vector<1x128x128xbf16>
    %156 = vector.shape_cast %155 : vector<1x128x128xbf16> to vector<128x128xbf16>
    %157 = arith.truncf %106 : vector<8x128xf32> to vector<8x128xbf16>
    %cst_113 = arith.constant dense<0.000000e+00> : vector<8x128xf32>
    %158 = tpu.matmul %157, %156, %cst_113 {dimension_numbers = #tpu.dot_dimension_numbers<[1], [0], [0], [1], [0, 0, 1, 1], [], []>} : vector<8x128xbf16>, vector<128x128xbf16>, vector<8x128xf32> -> vector<8x128xf32>
    %c2_114 = arith.constant 2 : index
    %c0_115 = arith.constant 0 : index
    %c0_116 = arith.constant 0 : index
    %159 = vector.load %arg6[%c2_114, %c0_115, %c0_116] : memref<3x128x128xbf16, #tpu.memory_space<vmem>>, vector<1x128x128xbf16>
    %160 = vector.shape_cast %159 : vector<1x128x128xbf16> to vector<128x128xbf16>
    %161 = arith.truncf %120 : vector<8x128xf32> to vector<8x128xbf16>
    %cst_117 = arith.constant dense<0.000000e+00> : vector<8x128xf32>
    %162 = tpu.matmul %161, %160, %cst_117 {dimension_numbers = #tpu.dot_dimension_numbers<[1], [0], [0], [1], [0, 0, 1, 1], [], []>} : vector<8x128xbf16>, vector<128x128xbf16>, vector<8x128xf32> -> vector<8x128xf32>
    %163 = arith.addf %158, %162 : vector<8x128xf32>
    %c2_118 = arith.constant 2 : index
    %c0_119 = arith.constant 0 : index
    %c0_120 = arith.constant 0 : index
    %164 = vector.load %arg7[%c2_118, %c0_119, %c0_120] : memref<3x1x128xf32, #tpu.memory_space<vmem>>, vector<1x1x128xf32>
    %165 = vector.shape_cast %164 : vector<1x1x128xf32> to vector<1x128xf32>
    %166 = vector.broadcast %165 : vector<1x128xf32> to vector<8x128xf32>
    %167 = arith.addf %163, %166 : vector<8x128xf32>
    %168 = math.tanh %167 : vector<8x128xf32>
    %169 = vector.extract_strided_slice %8 {offsets = [40, 0], sizes = [8, 128], strides = [1, 1]} : vector<64x128xf32> to vector<8x128xf32>
    %c0_121 = arith.constant 0 : index
    %c0_122 = arith.constant 0 : index
    %170 = vector.load %arg4[%c0_121, %c0_122] : memref<128x128xbf16, #tpu.memory_space<vmem>>, vector<128x128xbf16>
    %171 = arith.truncf %126 : vector<8x128xf32> to vector<8x128xbf16>
    %cst_123 = arith.constant dense<0.000000e+00> : vector<8x128xf32>
    %172 = tpu.matmul %171, %170, %cst_123 {dimension_numbers = #tpu.dot_dimension_numbers<[1], [0], [0], [1], [0, 0, 1, 1], [], []>} : vector<8x128xbf16>, vector<128x128xbf16>, vector<8x128xf32> -> vector<8x128xf32>
    %173 = arith.addf %169, %172 : vector<8x128xf32>
    %174 = math.tanh %173 : vector<8x128xf32>
    %c0_124 = arith.constant 0 : index
    %c0_125 = arith.constant 0 : index
    %c0_126 = arith.constant 0 : index
    %175 = vector.load %arg5[%c0_124, %c0_125, %c0_126] : memref<3x128x128xbf16, #tpu.memory_space<vmem>>, vector<1x128x128xbf16>
    %176 = vector.shape_cast %175 : vector<1x128x128xbf16> to vector<128x128xbf16>
    %177 = arith.truncf %126 : vector<8x128xf32> to vector<8x128xbf16>
    %cst_127 = arith.constant dense<0.000000e+00> : vector<8x128xf32>
    %178 = tpu.matmul %177, %176, %cst_127 {dimension_numbers = #tpu.dot_dimension_numbers<[1], [0], [0], [1], [0, 0, 1, 1], [], []>} : vector<8x128xbf16>, vector<128x128xbf16>, vector<8x128xf32> -> vector<8x128xf32>
    %c0_128 = arith.constant 0 : index
    %c0_129 = arith.constant 0 : index
    %c0_130 = arith.constant 0 : index
    %179 = vector.load %arg6[%c0_128, %c0_129, %c0_130] : memref<3x128x128xbf16, #tpu.memory_space<vmem>>, vector<1x128x128xbf16>
    %180 = vector.shape_cast %179 : vector<1x128x128xbf16> to vector<128x128xbf16>
    %181 = arith.truncf %140 : vector<8x128xf32> to vector<8x128xbf16>
    %cst_131 = arith.constant dense<0.000000e+00> : vector<8x128xf32>
    %182 = tpu.matmul %181, %180, %cst_131 {dimension_numbers = #tpu.dot_dimension_numbers<[1], [0], [0], [1], [0, 0, 1, 1], [], []>} : vector<8x128xbf16>, vector<128x128xbf16>, vector<8x128xf32> -> vector<8x128xf32>
    %183 = arith.addf %178, %182 : vector<8x128xf32>
    %c0_132 = arith.constant 0 : index
    %c0_133 = arith.constant 0 : index
    %c0_134 = arith.constant 0 : index
    %184 = vector.load %arg7[%c0_132, %c0_133, %c0_134] : memref<3x1x128xf32, #tpu.memory_space<vmem>>, vector<1x1x128xf32>
    %185 = vector.shape_cast %184 : vector<1x1x128xf32> to vector<1x128xf32>
    %186 = vector.broadcast %185 : vector<1x128xf32> to vector<8x128xf32>
    %187 = arith.addf %183, %186 : vector<8x128xf32>
    %188 = math.tanh %187 : vector<8x128xf32>
    %c1_135 = arith.constant 1 : index
    %c0_136 = arith.constant 0 : index
    %c0_137 = arith.constant 0 : index
    %189 = vector.load %arg5[%c1_135, %c0_136, %c0_137] : memref<3x128x128xbf16, #tpu.memory_space<vmem>>, vector<1x128x128xbf16>
    %190 = vector.shape_cast %189 : vector<1x128x128xbf16> to vector<128x128xbf16>
    %191 = arith.truncf %140 : vector<8x128xf32> to vector<8x128xbf16>
    %cst_138 = arith.constant dense<0.000000e+00> : vector<8x128xf32>
    %192 = tpu.matmul %191, %190, %cst_138 {dimension_numbers = #tpu.dot_dimension_numbers<[1], [0], [0], [1], [0, 0, 1, 1], [], []>} : vector<8x128xbf16>, vector<128x128xbf16>, vector<8x128xf32> -> vector<8x128xf32>
    %c1_139 = arith.constant 1 : index
    %c0_140 = arith.constant 0 : index
    %c0_141 = arith.constant 0 : index
    %193 = vector.load %arg6[%c1_139, %c0_140, %c0_141] : memref<3x128x128xbf16, #tpu.memory_space<vmem>>, vector<1x128x128xbf16>
    %194 = vector.shape_cast %193 : vector<1x128x128xbf16> to vector<128x128xbf16>
    %195 = arith.truncf %154 : vector<8x128xf32> to vector<8x128xbf16>
    %cst_142 = arith.constant dense<0.000000e+00> : vector<8x128xf32>
    %196 = tpu.matmul %195, %194, %cst_142 {dimension_numbers = #tpu.dot_dimension_numbers<[1], [0], [0], [1], [0, 0, 1, 1], [], []>} : vector<8x128xbf16>, vector<128x128xbf16>, vector<8x128xf32> -> vector<8x128xf32>
    %197 = arith.addf %192, %196 : vector<8x128xf32>
    %c1_143 = arith.constant 1 : index
    %c0_144 = arith.constant 0 : index
    %c0_145 = arith.constant 0 : index
    %198 = vector.load %arg7[%c1_143, %c0_144, %c0_145] : memref<3x1x128xf32, #tpu.memory_space<vmem>>, vector<1x1x128xf32>
    %199 = vector.shape_cast %198 : vector<1x1x128xf32> to vector<1x128xf32>
    %200 = vector.broadcast %199 : vector<1x128xf32> to vector<8x128xf32>
    %201 = arith.addf %197, %200 : vector<8x128xf32>
    %202 = math.tanh %201 : vector<8x128xf32>
    %c2_146 = arith.constant 2 : index
    %c0_147 = arith.constant 0 : index
    %c0_148 = arith.constant 0 : index
    %203 = vector.load %arg5[%c2_146, %c0_147, %c0_148] : memref<3x128x128xbf16, #tpu.memory_space<vmem>>, vector<1x128x128xbf16>
    %204 = vector.shape_cast %203 : vector<1x128x128xbf16> to vector<128x128xbf16>
    %205 = arith.truncf %154 : vector<8x128xf32> to vector<8x128xbf16>
    %cst_149 = arith.constant dense<0.000000e+00> : vector<8x128xf32>
    %206 = tpu.matmul %205, %204, %cst_149 {dimension_numbers = #tpu.dot_dimension_numbers<[1], [0], [0], [1], [0, 0, 1, 1], [], []>} : vector<8x128xbf16>, vector<128x128xbf16>, vector<8x128xf32> -> vector<8x128xf32>
    %c2_150 = arith.constant 2 : index
    %c0_151 = arith.constant 0 : index
    %c0_152 = arith.constant 0 : index
    %207 = vector.load %arg6[%c2_150, %c0_151, %c0_152] : memref<3x128x128xbf16, #tpu.memory_space<vmem>>, vector<1x128x128xbf16>
    %208 = vector.shape_cast %207 : vector<1x128x128xbf16> to vector<128x128xbf16>
    %209 = arith.truncf %168 : vector<8x128xf32> to vector<8x128xbf16>
    %cst_153 = arith.constant dense<0.000000e+00> : vector<8x128xf32>
    %210 = tpu.matmul %209, %208, %cst_153 {dimension_numbers = #tpu.dot_dimension_numbers<[1], [0], [0], [1], [0, 0, 1, 1], [], []>} : vector<8x128xbf16>, vector<128x128xbf16>, vector<8x128xf32> -> vector<8x128xf32>
    %211 = arith.addf %206, %210 : vector<8x128xf32>
    %c2_154 = arith.constant 2 : index
    %c0_155 = arith.constant 0 : index
    %c0_156 = arith.constant 0 : index
    %212 = vector.load %arg7[%c2_154, %c0_155, %c0_156] : memref<3x1x128xf32, #tpu.memory_space<vmem>>, vector<1x1x128xf32>
    %213 = vector.shape_cast %212 : vector<1x1x128xf32> to vector<1x128xf32>
    %214 = vector.broadcast %213 : vector<1x128xf32> to vector<8x128xf32>
    %215 = arith.addf %211, %214 : vector<8x128xf32>
    %216 = math.tanh %215 : vector<8x128xf32>
    %217 = vector.extract_strided_slice %8 {offsets = [48, 0], sizes = [8, 128], strides = [1, 1]} : vector<64x128xf32> to vector<8x128xf32>
    %c0_157 = arith.constant 0 : index
    %c0_158 = arith.constant 0 : index
    %218 = vector.load %arg4[%c0_157, %c0_158] : memref<128x128xbf16, #tpu.memory_space<vmem>>, vector<128x128xbf16>
    %219 = arith.truncf %174 : vector<8x128xf32> to vector<8x128xbf16>
    %cst_159 = arith.constant dense<0.000000e+00> : vector<8x128xf32>
    %220 = tpu.matmul %219, %218, %cst_159 {dimension_numbers = #tpu.dot_dimension_numbers<[1], [0], [0], [1], [0, 0, 1, 1], [], []>} : vector<8x128xbf16>, vector<128x128xbf16>, vector<8x128xf32> -> vector<8x128xf32>
    %221 = arith.addf %217, %220 : vector<8x128xf32>
    %222 = math.tanh %221 : vector<8x128xf32>
    %c0_160 = arith.constant 0 : index
    %c0_161 = arith.constant 0 : index
    %c0_162 = arith.constant 0 : index
    %223 = vector.load %arg5[%c0_160, %c0_161, %c0_162] : memref<3x128x128xbf16, #tpu.memory_space<vmem>>, vector<1x128x128xbf16>
    %224 = vector.shape_cast %223 : vector<1x128x128xbf16> to vector<128x128xbf16>
    %225 = arith.truncf %174 : vector<8x128xf32> to vector<8x128xbf16>
    %cst_163 = arith.constant dense<0.000000e+00> : vector<8x128xf32>
    %226 = tpu.matmul %225, %224, %cst_163 {dimension_numbers = #tpu.dot_dimension_numbers<[1], [0], [0], [1], [0, 0, 1, 1], [], []>} : vector<8x128xbf16>, vector<128x128xbf16>, vector<8x128xf32> -> vector<8x128xf32>
    %c0_164 = arith.constant 0 : index
    %c0_165 = arith.constant 0 : index
    %c0_166 = arith.constant 0 : index
    %227 = vector.load %arg6[%c0_164, %c0_165, %c0_166] : memref<3x128x128xbf16, #tpu.memory_space<vmem>>, vector<1x128x128xbf16>
    %228 = vector.shape_cast %227 : vector<1x128x128xbf16> to vector<128x128xbf16>
    %229 = arith.truncf %188 : vector<8x128xf32> to vector<8x128xbf16>
    %cst_167 = arith.constant dense<0.000000e+00> : vector<8x128xf32>
    %230 = tpu.matmul %229, %228, %cst_167 {dimension_numbers = #tpu.dot_dimension_numbers<[1], [0], [0], [1], [0, 0, 1, 1], [], []>} : vector<8x128xbf16>, vector<128x128xbf16>, vector<8x128xf32> -> vector<8x128xf32>
    %231 = arith.addf %226, %230 : vector<8x128xf32>
    %c0_168 = arith.constant 0 : index
    %c0_169 = arith.constant 0 : index
    %c0_170 = arith.constant 0 : index
    %232 = vector.load %arg7[%c0_168, %c0_169, %c0_170] : memref<3x1x128xf32, #tpu.memory_space<vmem>>, vector<1x1x128xf32>
    %233 = vector.shape_cast %232 : vector<1x1x128xf32> to vector<1x128xf32>
    %234 = vector.broadcast %233 : vector<1x128xf32> to vector<8x128xf32>
    %235 = arith.addf %231, %234 : vector<8x128xf32>
    %236 = math.tanh %235 : vector<8x128xf32>
    %c1_171 = arith.constant 1 : index
    %c0_172 = arith.constant 0 : index
    %c0_173 = arith.constant 0 : index
    %237 = vector.load %arg5[%c1_171, %c0_172, %c0_173] : memref<3x128x128xbf16, #tpu.memory_space<vmem>>, vector<1x128x128xbf16>
    %238 = vector.shape_cast %237 : vector<1x128x128xbf16> to vector<128x128xbf16>
    %239 = arith.truncf %188 : vector<8x128xf32> to vector<8x128xbf16>
    %cst_174 = arith.constant dense<0.000000e+00> : vector<8x128xf32>
    %240 = tpu.matmul %239, %238, %cst_174 {dimension_numbers = #tpu.dot_dimension_numbers<[1], [0], [0], [1], [0, 0, 1, 1], [], []>} : vector<8x128xbf16>, vector<128x128xbf16>, vector<8x128xf32> -> vector<8x128xf32>
    %c1_175 = arith.constant 1 : index
    %c0_176 = arith.constant 0 : index
    %c0_177 = arith.constant 0 : index
    %241 = vector.load %arg6[%c1_175, %c0_176, %c0_177] : memref<3x128x128xbf16, #tpu.memory_space<vmem>>, vector<1x128x128xbf16>
    %242 = vector.shape_cast %241 : vector<1x128x128xbf16> to vector<128x128xbf16>
    %243 = arith.truncf %202 : vector<8x128xf32> to vector<8x128xbf16>
    %cst_178 = arith.constant dense<0.000000e+00> : vector<8x128xf32>
    %244 = tpu.matmul %243, %242, %cst_178 {dimension_numbers = #tpu.dot_dimension_numbers<[1], [0], [0], [1], [0, 0, 1, 1], [], []>} : vector<8x128xbf16>, vector<128x128xbf16>, vector<8x128xf32> -> vector<8x128xf32>
    %245 = arith.addf %240, %244 : vector<8x128xf32>
    %c1_179 = arith.constant 1 : index
    %c0_180 = arith.constant 0 : index
    %c0_181 = arith.constant 0 : index
    %246 = vector.load %arg7[%c1_179, %c0_180, %c0_181] : memref<3x1x128xf32, #tpu.memory_space<vmem>>, vector<1x1x128xf32>
    %247 = vector.shape_cast %246 : vector<1x1x128xf32> to vector<1x128xf32>
    %248 = vector.broadcast %247 : vector<1x128xf32> to vector<8x128xf32>
    %249 = arith.addf %245, %248 : vector<8x128xf32>
    %250 = math.tanh %249 : vector<8x128xf32>
    %c2_182 = arith.constant 2 : index
    %c0_183 = arith.constant 0 : index
    %c0_184 = arith.constant 0 : index
    %251 = vector.load %arg5[%c2_182, %c0_183, %c0_184] : memref<3x128x128xbf16, #tpu.memory_space<vmem>>, vector<1x128x128xbf16>
    %252 = vector.shape_cast %251 : vector<1x128x128xbf16> to vector<128x128xbf16>
    %253 = arith.truncf %202 : vector<8x128xf32> to vector<8x128xbf16>
    %cst_185 = arith.constant dense<0.000000e+00> : vector<8x128xf32>
    %254 = tpu.matmul %253, %252, %cst_185 {dimension_numbers = #tpu.dot_dimension_numbers<[1], [0], [0], [1], [0, 0, 1, 1], [], []>} : vector<8x128xbf16>, vector<128x128xbf16>, vector<8x128xf32> -> vector<8x128xf32>
    %c2_186 = arith.constant 2 : index
    %c0_187 = arith.constant 0 : index
    %c0_188 = arith.constant 0 : index
    %255 = vector.load %arg6[%c2_186, %c0_187, %c0_188] : memref<3x128x128xbf16, #tpu.memory_space<vmem>>, vector<1x128x128xbf16>
    %256 = vector.shape_cast %255 : vector<1x128x128xbf16> to vector<128x128xbf16>
    %257 = arith.truncf %216 : vector<8x128xf32> to vector<8x128xbf16>
    %cst_189 = arith.constant dense<0.000000e+00> : vector<8x128xf32>
    %258 = tpu.matmul %257, %256, %cst_189 {dimension_numbers = #tpu.dot_dimension_numbers<[1], [0], [0], [1], [0, 0, 1, 1], [], []>} : vector<8x128xbf16>, vector<128x128xbf16>, vector<8x128xf32> -> vector<8x128xf32>
    %259 = arith.addf %254, %258 : vector<8x128xf32>
    %c2_190 = arith.constant 2 : index
    %c0_191 = arith.constant 0 : index
    %c0_192 = arith.constant 0 : index
    %260 = vector.load %arg7[%c2_190, %c0_191, %c0_192] : memref<3x1x128xf32, #tpu.memory_space<vmem>>, vector<1x1x128xf32>
    %261 = vector.shape_cast %260 : vector<1x1x128xf32> to vector<1x128xf32>
    %262 = vector.broadcast %261 : vector<1x128xf32> to vector<8x128xf32>
    %263 = arith.addf %259, %262 : vector<8x128xf32>
    %264 = math.tanh %263 : vector<8x128xf32>
    %265 = vector.extract_strided_slice %8 {offsets = [56, 0], sizes = [8, 128], strides = [1, 1]} : vector<64x128xf32> to vector<8x128xf32>
    %c0_193 = arith.constant 0 : index
    %c0_194 = arith.constant 0 : index
    %266 = vector.load %arg4[%c0_193, %c0_194] : memref<128x128xbf16, #tpu.memory_space<vmem>>, vector<128x128xbf16>
    %267 = arith.truncf %222 : vector<8x128xf32> to vector<8x128xbf16>
    %cst_195 = arith.constant dense<0.000000e+00> : vector<8x128xf32>
    %268 = tpu.matmul %267, %266, %cst_195 {dimension_numbers = #tpu.dot_dimension_numbers<[1], [0], [0], [1], [0, 0, 1, 1], [], []>} : vector<8x128xbf16>, vector<128x128xbf16>, vector<8x128xf32> -> vector<8x128xf32>
    %269 = arith.addf %265, %268 : vector<8x128xf32>
    %270 = math.tanh %269 : vector<8x128xf32>
    %c0_196 = arith.constant 0 : index
    %c0_197 = arith.constant 0 : index
    %c0_198 = arith.constant 0 : index
    %271 = vector.load %arg5[%c0_196, %c0_197, %c0_198] : memref<3x128x128xbf16, #tpu.memory_space<vmem>>, vector<1x128x128xbf16>
    %272 = vector.shape_cast %271 : vector<1x128x128xbf16> to vector<128x128xbf16>
    %273 = arith.truncf %222 : vector<8x128xf32> to vector<8x128xbf16>
    %cst_199 = arith.constant dense<0.000000e+00> : vector<8x128xf32>
    %274 = tpu.matmul %273, %272, %cst_199 {dimension_numbers = #tpu.dot_dimension_numbers<[1], [0], [0], [1], [0, 0, 1, 1], [], []>} : vector<8x128xbf16>, vector<128x128xbf16>, vector<8x128xf32> -> vector<8x128xf32>
    %c0_200 = arith.constant 0 : index
    %c0_201 = arith.constant 0 : index
    %c0_202 = arith.constant 0 : index
    %275 = vector.load %arg6[%c0_200, %c0_201, %c0_202] : memref<3x128x128xbf16, #tpu.memory_space<vmem>>, vector<1x128x128xbf16>
    %276 = vector.shape_cast %275 : vector<1x128x128xbf16> to vector<128x128xbf16>
    %277 = arith.truncf %236 : vector<8x128xf32> to vector<8x128xbf16>
    %cst_203 = arith.constant dense<0.000000e+00> : vector<8x128xf32>
    %278 = tpu.matmul %277, %276, %cst_203 {dimension_numbers = #tpu.dot_dimension_numbers<[1], [0], [0], [1], [0, 0, 1, 1], [], []>} : vector<8x128xbf16>, vector<128x128xbf16>, vector<8x128xf32> -> vector<8x128xf32>
    %279 = arith.addf %274, %278 : vector<8x128xf32>
    %c0_204 = arith.constant 0 : index
    %c0_205 = arith.constant 0 : index
    %c0_206 = arith.constant 0 : index
    %280 = vector.load %arg7[%c0_204, %c0_205, %c0_206] : memref<3x1x128xf32, #tpu.memory_space<vmem>>, vector<1x1x128xf32>
    %281 = vector.shape_cast %280 : vector<1x1x128xf32> to vector<1x128xf32>
    %282 = vector.broadcast %281 : vector<1x128xf32> to vector<8x128xf32>
    %283 = arith.addf %279, %282 : vector<8x128xf32>
    %284 = math.tanh %283 : vector<8x128xf32>
    %c1_207 = arith.constant 1 : index
    %c0_208 = arith.constant 0 : index
    %c0_209 = arith.constant 0 : index
    %285 = vector.load %arg5[%c1_207, %c0_208, %c0_209] : memref<3x128x128xbf16, #tpu.memory_space<vmem>>, vector<1x128x128xbf16>
    %286 = vector.shape_cast %285 : vector<1x128x128xbf16> to vector<128x128xbf16>
    %287 = arith.truncf %236 : vector<8x128xf32> to vector<8x128xbf16>
    %cst_210 = arith.constant dense<0.000000e+00> : vector<8x128xf32>
    %288 = tpu.matmul %287, %286, %cst_210 {dimension_numbers = #tpu.dot_dimension_numbers<[1], [0], [0], [1], [0, 0, 1, 1], [], []>} : vector<8x128xbf16>, vector<128x128xbf16>, vector<8x128xf32> -> vector<8x128xf32>
    %c1_211 = arith.constant 1 : index
    %c0_212 = arith.constant 0 : index
    %c0_213 = arith.constant 0 : index
    %289 = vector.load %arg6[%c1_211, %c0_212, %c0_213] : memref<3x128x128xbf16, #tpu.memory_space<vmem>>, vector<1x128x128xbf16>
    %290 = vector.shape_cast %289 : vector<1x128x128xbf16> to vector<128x128xbf16>
    %291 = arith.truncf %250 : vector<8x128xf32> to vector<8x128xbf16>
    %cst_214 = arith.constant dense<0.000000e+00> : vector<8x128xf32>
    %292 = tpu.matmul %291, %290, %cst_214 {dimension_numbers = #tpu.dot_dimension_numbers<[1], [0], [0], [1], [0, 0, 1, 1], [], []>} : vector<8x128xbf16>, vector<128x128xbf16>, vector<8x128xf32> -> vector<8x128xf32>
    %293 = arith.addf %288, %292 : vector<8x128xf32>
    %c1_215 = arith.constant 1 : index
    %c0_216 = arith.constant 0 : index
    %c0_217 = arith.constant 0 : index
    %294 = vector.load %arg7[%c1_215, %c0_216, %c0_217] : memref<3x1x128xf32, #tpu.memory_space<vmem>>, vector<1x1x128xf32>
    %295 = vector.shape_cast %294 : vector<1x1x128xf32> to vector<1x128xf32>
    %296 = vector.broadcast %295 : vector<1x128xf32> to vector<8x128xf32>
    %297 = arith.addf %293, %296 : vector<8x128xf32>
    %298 = math.tanh %297 : vector<8x128xf32>
    %c2_218 = arith.constant 2 : index
    %c0_219 = arith.constant 0 : index
    %c0_220 = arith.constant 0 : index
    %299 = vector.load %arg5[%c2_218, %c0_219, %c0_220] : memref<3x128x128xbf16, #tpu.memory_space<vmem>>, vector<1x128x128xbf16>
    %300 = vector.shape_cast %299 : vector<1x128x128xbf16> to vector<128x128xbf16>
    %301 = arith.truncf %250 : vector<8x128xf32> to vector<8x128xbf16>
    %cst_221 = arith.constant dense<0.000000e+00> : vector<8x128xf32>
    %302 = tpu.matmul %301, %300, %cst_221 {dimension_numbers = #tpu.dot_dimension_numbers<[1], [0], [0], [1], [0, 0, 1, 1], [], []>} : vector<8x128xbf16>, vector<128x128xbf16>, vector<8x128xf32> -> vector<8x128xf32>
    %c2_222 = arith.constant 2 : index
    %c0_223 = arith.constant 0 : index
    %c0_224 = arith.constant 0 : index
    %303 = vector.load %arg6[%c2_222, %c0_223, %c0_224] : memref<3x128x128xbf16, #tpu.memory_space<vmem>>, vector<1x128x128xbf16>
    %304 = vector.shape_cast %303 : vector<1x128x128xbf16> to vector<128x128xbf16>
    %305 = arith.truncf %264 : vector<8x128xf32> to vector<8x128xbf16>
    %cst_225 = arith.constant dense<0.000000e+00> : vector<8x128xf32>
    %306 = tpu.matmul %305, %304, %cst_225 {dimension_numbers = #tpu.dot_dimension_numbers<[1], [0], [0], [1], [0, 0, 1, 1], [], []>} : vector<8x128xbf16>, vector<128x128xbf16>, vector<8x128xf32> -> vector<8x128xf32>
    %307 = arith.addf %302, %306 : vector<8x128xf32>
    %c2_226 = arith.constant 2 : index
    %c0_227 = arith.constant 0 : index
    %c0_228 = arith.constant 0 : index
    %308 = vector.load %arg7[%c2_226, %c0_227, %c0_228] : memref<3x1x128xf32, #tpu.memory_space<vmem>>, vector<1x1x128xf32>
    %309 = vector.shape_cast %308 : vector<1x1x128xf32> to vector<1x128xf32>
    %310 = vector.broadcast %309 : vector<1x128xf32> to vector<8x128xf32>
    %311 = arith.addf %307, %310 : vector<8x128xf32>
    %312 = math.tanh %311 : vector<8x128xf32>
    %c0_229 = arith.constant 0 : index
    %c0_230 = arith.constant 0 : index
    %c0_231 = arith.constant 0 : index
    %313 = vector.load %arg5[%c0_229, %c0_230, %c0_231] : memref<3x128x128xbf16, #tpu.memory_space<vmem>>, vector<1x128x128xbf16>
    %314 = vector.shape_cast %313 : vector<1x128x128xbf16> to vector<128x128xbf16>
    %315 = arith.truncf %270 : vector<8x128xf32> to vector<8x128xbf16>
    %cst_232 = arith.constant dense<0.000000e+00> : vector<8x128xf32>
    %316 = tpu.matmul %315, %314, %cst_232 {dimension_numbers = #tpu.dot_dimension_numbers<[1], [0], [0], [1], [0, 0, 1, 1], [], []>} : vector<8x128xbf16>, vector<128x128xbf16>, vector<8x128xf32> -> vector<8x128xf32>
    %c0_233 = arith.constant 0 : index
    %c0_234 = arith.constant 0 : index
    %c0_235 = arith.constant 0 : index
    %317 = vector.load %arg6[%c0_233, %c0_234, %c0_235] : memref<3x128x128xbf16, #tpu.memory_space<vmem>>, vector<1x128x128xbf16>
    %318 = vector.shape_cast %317 : vector<1x128x128xbf16> to vector<128x128xbf16>
    %319 = arith.truncf %284 : vector<8x128xf32> to vector<8x128xbf16>
    %cst_236 = arith.constant dense<0.000000e+00> : vector<8x128xf32>
    %320 = tpu.matmul %319, %318, %cst_236 {dimension_numbers = #tpu.dot_dimension_numbers<[1], [0], [0], [1], [0, 0, 1, 1], [], []>} : vector<8x128xbf16>, vector<128x128xbf16>, vector<8x128xf32> -> vector<8x128xf32>
    %321 = arith.addf %316, %320 : vector<8x128xf32>
    %c0_237 = arith.constant 0 : index
    %c0_238 = arith.constant 0 : index
    %c0_239 = arith.constant 0 : index
    %322 = vector.load %arg7[%c0_237, %c0_238, %c0_239] : memref<3x1x128xf32, #tpu.memory_space<vmem>>, vector<1x1x128xf32>
    %323 = vector.shape_cast %322 : vector<1x1x128xf32> to vector<1x128xf32>
    %324 = vector.broadcast %323 : vector<1x128xf32> to vector<8x128xf32>
    %325 = arith.addf %321, %324 : vector<8x128xf32>
    %326 = math.tanh %325 : vector<8x128xf32>
    %c1_240 = arith.constant 1 : index
    %c0_241 = arith.constant 0 : index
    %c0_242 = arith.constant 0 : index
    %327 = vector.load %arg5[%c1_240, %c0_241, %c0_242] : memref<3x128x128xbf16, #tpu.memory_space<vmem>>, vector<1x128x128xbf16>
    %328 = vector.shape_cast %327 : vector<1x128x128xbf16> to vector<128x128xbf16>
    %329 = arith.truncf %284 : vector<8x128xf32> to vector<8x128xbf16>
    %cst_243 = arith.constant dense<0.000000e+00> : vector<8x128xf32>
    %330 = tpu.matmul %329, %328, %cst_243 {dimension_numbers = #tpu.dot_dimension_numbers<[1], [0], [0], [1], [0, 0, 1, 1], [], []>} : vector<8x128xbf16>, vector<128x128xbf16>, vector<8x128xf32> -> vector<8x128xf32>
    %c1_244 = arith.constant 1 : index
    %c0_245 = arith.constant 0 : index
    %c0_246 = arith.constant 0 : index
    %331 = vector.load %arg6[%c1_244, %c0_245, %c0_246] : memref<3x128x128xbf16, #tpu.memory_space<vmem>>, vector<1x128x128xbf16>
    %332 = vector.shape_cast %331 : vector<1x128x128xbf16> to vector<128x128xbf16>
    %333 = arith.truncf %298 : vector<8x128xf32> to vector<8x128xbf16>
    %cst_247 = arith.constant dense<0.000000e+00> : vector<8x128xf32>
    %334 = tpu.matmul %333, %332, %cst_247 {dimension_numbers = #tpu.dot_dimension_numbers<[1], [0], [0], [1], [0, 0, 1, 1], [], []>} : vector<8x128xbf16>, vector<128x128xbf16>, vector<8x128xf32> -> vector<8x128xf32>
    %335 = arith.addf %330, %334 : vector<8x128xf32>
    %c1_248 = arith.constant 1 : index
    %c0_249 = arith.constant 0 : index
    %c0_250 = arith.constant 0 : index
    %336 = vector.load %arg7[%c1_248, %c0_249, %c0_250] : memref<3x1x128xf32, #tpu.memory_space<vmem>>, vector<1x1x128xf32>
    %337 = vector.shape_cast %336 : vector<1x1x128xf32> to vector<1x128xf32>
    %338 = vector.broadcast %337 : vector<1x128xf32> to vector<8x128xf32>
    %339 = arith.addf %335, %338 : vector<8x128xf32>
    %340 = math.tanh %339 : vector<8x128xf32>
    %c2_251 = arith.constant 2 : index
    %c0_252 = arith.constant 0 : index
    %c0_253 = arith.constant 0 : index
    %341 = vector.load %arg5[%c2_251, %c0_252, %c0_253] : memref<3x128x128xbf16, #tpu.memory_space<vmem>>, vector<1x128x128xbf16>
    %342 = vector.shape_cast %341 : vector<1x128x128xbf16> to vector<128x128xbf16>
    %343 = arith.truncf %298 : vector<8x128xf32> to vector<8x128xbf16>
    %cst_254 = arith.constant dense<0.000000e+00> : vector<8x128xf32>
    %344 = tpu.matmul %343, %342, %cst_254 {dimension_numbers = #tpu.dot_dimension_numbers<[1], [0], [0], [1], [0, 0, 1, 1], [], []>} : vector<8x128xbf16>, vector<128x128xbf16>, vector<8x128xf32> -> vector<8x128xf32>
    %c2_255 = arith.constant 2 : index
    %c0_256 = arith.constant 0 : index
    %c0_257 = arith.constant 0 : index
    %345 = vector.load %arg6[%c2_255, %c0_256, %c0_257] : memref<3x128x128xbf16, #tpu.memory_space<vmem>>, vector<1x128x128xbf16>
    %346 = vector.shape_cast %345 : vector<1x128x128xbf16> to vector<128x128xbf16>
    %347 = arith.truncf %312 : vector<8x128xf32> to vector<8x128xbf16>
    %cst_258 = arith.constant dense<0.000000e+00> : vector<8x128xf32>
    %348 = tpu.matmul %347, %346, %cst_258 {dimension_numbers = #tpu.dot_dimension_numbers<[1], [0], [0], [1], [0, 0, 1, 1], [], []>} : vector<8x128xbf16>, vector<128x128xbf16>, vector<8x128xf32> -> vector<8x128xf32>
    %349 = arith.addf %344, %348 : vector<8x128xf32>
    %c2_259 = arith.constant 2 : index
    %c0_260 = arith.constant 0 : index
    %c0_261 = arith.constant 0 : index
    %350 = vector.load %arg7[%c2_259, %c0_260, %c0_261] : memref<3x1x128xf32, #tpu.memory_space<vmem>>, vector<1x1x128xf32>
    %351 = vector.shape_cast %350 : vector<1x1x128xf32> to vector<1x128xf32>
    %352 = vector.broadcast %351 : vector<1x128xf32> to vector<8x128xf32>
    %353 = arith.addf %349, %352 : vector<8x128xf32>
    %354 = math.tanh %353 : vector<8x128xf32>
    %c1_262 = arith.constant 1 : index
    %c0_263 = arith.constant 0 : index
    %c0_264 = arith.constant 0 : index
    %355 = vector.load %arg5[%c1_262, %c0_263, %c0_264] : memref<3x128x128xbf16, #tpu.memory_space<vmem>>, vector<1x128x128xbf16>
    %356 = vector.shape_cast %355 : vector<1x128x128xbf16> to vector<128x128xbf16>
    %357 = arith.truncf %326 : vector<8x128xf32> to vector<8x128xbf16>
    %cst_265 = arith.constant dense<0.000000e+00> : vector<8x128xf32>
    %358 = tpu.matmul %357, %356, %cst_265 {dimension_numbers = #tpu.dot_dimension_numbers<[1], [0], [0], [1], [0, 0, 1, 1], [], []>} : vector<8x128xbf16>, vector<128x128xbf16>, vector<8x128xf32> -> vector<8x128xf32>
    %c1_266 = arith.constant 1 : index
    %c0_267 = arith.constant 0 : index
    %c0_268 = arith.constant 0 : index
    %359 = vector.load %arg6[%c1_266, %c0_267, %c0_268] : memref<3x128x128xbf16, #tpu.memory_space<vmem>>, vector<1x128x128xbf16>
    %360 = vector.shape_cast %359 : vector<1x128x128xbf16> to vector<128x128xbf16>
    %361 = arith.truncf %340 : vector<8x128xf32> to vector<8x128xbf16>
    %cst_269 = arith.constant dense<0.000000e+00> : vector<8x128xf32>
    %362 = tpu.matmul %361, %360, %cst_269 {dimension_numbers = #tpu.dot_dimension_numbers<[1], [0], [0], [1], [0, 0, 1, 1], [], []>} : vector<8x128xbf16>, vector<128x128xbf16>, vector<8x128xf32> -> vector<8x128xf32>
    %363 = arith.addf %358, %362 : vector<8x128xf32>
    %c1_270 = arith.constant 1 : index
    %c0_271 = arith.constant 0 : index
    %c0_272 = arith.constant 0 : index
    %364 = vector.load %arg7[%c1_270, %c0_271, %c0_272] : memref<3x1x128xf32, #tpu.memory_space<vmem>>, vector<1x1x128xf32>
    %365 = vector.shape_cast %364 : vector<1x1x128xf32> to vector<1x128xf32>
    %366 = vector.broadcast %365 : vector<1x128xf32> to vector<8x128xf32>
    %367 = arith.addf %363, %366 : vector<8x128xf32>
    %368 = math.tanh %367 : vector<8x128xf32>
    %c2_273 = arith.constant 2 : index
    %c0_274 = arith.constant 0 : index
    %c0_275 = arith.constant 0 : index
    %369 = vector.load %arg5[%c2_273, %c0_274, %c0_275] : memref<3x128x128xbf16, #tpu.memory_space<vmem>>, vector<1x128x128xbf16>
    %370 = vector.shape_cast %369 : vector<1x128x128xbf16> to vector<128x128xbf16>
    %371 = arith.truncf %340 : vector<8x128xf32> to vector<8x128xbf16>
    %cst_276 = arith.constant dense<0.000000e+00> : vector<8x128xf32>
    %372 = tpu.matmul %371, %370, %cst_276 {dimension_numbers = #tpu.dot_dimension_numbers<[1], [0], [0], [1], [0, 0, 1, 1], [], []>} : vector<8x128xbf16>, vector<128x128xbf16>, vector<8x128xf32> -> vector<8x128xf32>
    %c2_277 = arith.constant 2 : index
    %c0_278 = arith.constant 0 : index
    %c0_279 = arith.constant 0 : index
    %373 = vector.load %arg6[%c2_277, %c0_278, %c0_279] : memref<3x128x128xbf16, #tpu.memory_space<vmem>>, vector<1x128x128xbf16>
    %374 = vector.shape_cast %373 : vector<1x128x128xbf16> to vector<128x128xbf16>
    %375 = arith.truncf %354 : vector<8x128xf32> to vector<8x128xbf16>
    %cst_280 = arith.constant dense<0.000000e+00> : vector<8x128xf32>
    %376 = tpu.matmul %375, %374, %cst_280 {dimension_numbers = #tpu.dot_dimension_numbers<[1], [0], [0], [1], [0, 0, 1, 1], [], []>} : vector<8x128xbf16>, vector<128x128xbf16>, vector<8x128xf32> -> vector<8x128xf32>
    %377 = arith.addf %372, %376 : vector<8x128xf32>
    %c2_281 = arith.constant 2 : index
    %c0_282 = arith.constant 0 : index
    %c0_283 = arith.constant 0 : index
    %378 = vector.load %arg7[%c2_281, %c0_282, %c0_283] : memref<3x1x128xf32, #tpu.memory_space<vmem>>, vector<1x1x128xf32>
    %379 = vector.shape_cast %378 : vector<1x1x128xf32> to vector<1x128xf32>
    %380 = vector.broadcast %379 : vector<1x128xf32> to vector<8x128xf32>
    %381 = arith.addf %377, %380 : vector<8x128xf32>
    %382 = math.tanh %381 : vector<8x128xf32>
    %c2_284 = arith.constant 2 : index
    %c0_285 = arith.constant 0 : index
    %c0_286 = arith.constant 0 : index
    %383 = vector.load %arg5[%c2_284, %c0_285, %c0_286] : memref<3x128x128xbf16, #tpu.memory_space<vmem>>, vector<1x128x128xbf16>
    %384 = vector.shape_cast %383 : vector<1x128x128xbf16> to vector<128x128xbf16>
    %385 = arith.truncf %368 : vector<8x128xf32> to vector<8x128xbf16>
    %cst_287 = arith.constant dense<0.000000e+00> : vector<8x128xf32>
    %386 = tpu.matmul %385, %384, %cst_287 {dimension_numbers = #tpu.dot_dimension_numbers<[1], [0], [0], [1], [0, 0, 1, 1], [], []>} : vector<8x128xbf16>, vector<128x128xbf16>, vector<8x128xf32> -> vector<8x128xf32>
    %c2_288 = arith.constant 2 : index
    %c0_289 = arith.constant 0 : index
    %c0_290 = arith.constant 0 : index
    %387 = vector.load %arg6[%c2_288, %c0_289, %c0_290] : memref<3x128x128xbf16, #tpu.memory_space<vmem>>, vector<1x128x128xbf16>
    %388 = vector.shape_cast %387 : vector<1x128x128xbf16> to vector<128x128xbf16>
    %389 = arith.truncf %382 : vector<8x128xf32> to vector<8x128xbf16>
    %cst_291 = arith.constant dense<0.000000e+00> : vector<8x128xf32>
    %390 = tpu.matmul %389, %388, %cst_291 {dimension_numbers = #tpu.dot_dimension_numbers<[1], [0], [0], [1], [0, 0, 1, 1], [], []>} : vector<8x128xbf16>, vector<128x128xbf16>, vector<8x128xf32> -> vector<8x128xf32>
    %391 = arith.addf %386, %390 : vector<8x128xf32>
    %c2_292 = arith.constant 2 : index
    %c0_293 = arith.constant 0 : index
    %c0_294 = arith.constant 0 : index
    %392 = vector.load %arg7[%c2_292, %c0_293, %c0_294] : memref<3x1x128xf32, #tpu.memory_space<vmem>>, vector<1x1x128xf32>
    %393 = vector.shape_cast %392 : vector<1x1x128xf32> to vector<1x128xf32>
    %394 = vector.broadcast %393 : vector<1x128xf32> to vector<8x128xf32>
    %395 = arith.addf %391, %394 : vector<8x128xf32>
    %396 = math.tanh %395 : vector<8x128xf32>
    %c0_295 = arith.constant 0 : index
    %c0_296 = arith.constant 0 : index
    %397 = vector.load %arg8[%c0_295, %c0_296] : memref<128x128xbf16, #tpu.memory_space<vmem>>, vector<128x128xbf16>
    %398 = arith.truncf %396 : vector<8x128xf32> to vector<8x128xbf16>
    %cst_297 = arith.constant dense<0.000000e+00> : vector<8x128xf32>
    %399 = tpu.matmul %398, %397, %cst_297 {dimension_numbers = #tpu.dot_dimension_numbers<[1], [0], [0], [1], [0, 0, 1, 1], [], []>} : vector<8x128xbf16>, vector<128x128xbf16>, vector<8x128xf32> -> vector<8x128xf32>
    %c0_298 = arith.constant 0 : index
    %c0_299 = arith.constant 0 : index
    %400 = vector.load %arg9[%c0_298, %c0_299] : memref<1x128xf32, #tpu.memory_space<vmem>>, vector<1x128xf32>
    %401 = vector.broadcast %400 : vector<1x128xf32> to vector<8x128xf32>
    %402 = arith.addf %399, %401 : vector<8x128xf32>
    %c0_300 = arith.constant 0 : index
    %c0_301 = arith.constant 0 : index
    %403 = vector.load %arg10[%c0_300, %c0_301] : memref<8x128xf32, #tpu.memory_space<vmem>>, vector<8x128xf32>
    tpu.vector_store %arg10[%c0_300, %c0_301], %402 {strides = array<i32>} : memref<8x128xf32, #tpu.memory_space<vmem>>, vector<8x128xf32>,
    return
  }
  func.func @transform_0(%arg0: i32) -> (i32, i32, i32) {
    %c0_i32 = arith.constant 0 : i32
    %c0_i32_0 = arith.constant 0 : i32
    %c0_i32_1 = arith.constant 0 : i32
    return %c0_i32, %arg0, %c0_i32_0 : i32, i32, i32
  }
  func.func @transform_1(%arg0: i32) -> (i32, i32) {
    %c0_i32 = arith.constant 0 : i32
    %c0_i32_0 = arith.constant 0 : i32
    %c0_i32_1 = arith.constant 0 : i32
    return %c0_i32, %c0_i32_0 : i32, i32
  }
  func.func @transform_2(%arg0: i32) -> (i32, i32) {
    %c0_i32 = arith.constant 0 : i32
    %c0_i32_0 = arith.constant 0 : i32
    %c0_i32_1 = arith.constant 0 : i32
    return %c0_i32, %c0_i32_0 : i32, i32
  }
  func.func @transform_3(%arg0: i32) -> (i32, i32) {
    %c0_i32 = arith.constant 0 : i32
    %c0_i32_0 = arith.constant 0 : i32
    %c0_i32_1 = arith.constant 0 : i32
    return %c0_i32, %c0_i32_0 : i32, i32
  }
  func.func @transform_4(%arg0: i32) -> (i32, i32, i32) {
    %c0_i32 = arith.constant 0 : i32
    %c0_i32_0 = arith.constant 0 : i32
    %c0_i32_1 = arith.constant 0 : i32
    %c0_i32_2 = arith.constant 0 : i32
    return %c0_i32, %c0_i32_0, %c0_i32_1 : i32, i32, i32
  }
  func.func @transform_5(%arg0: i32) -> (i32, i32, i32) {
    %c0_i32 = arith.constant 0 : i32
    %c0_i32_0 = arith.constant 0 : i32
    %c0_i32_1 = arith.constant 0 : i32
    %c0_i32_2 = arith.constant 0 : i32
    return %c0_i32, %c0_i32_0, %c0_i32_1 : i32, i32, i32
  }
  func.func @transform_6(%arg0: i32) -> (i32, i32, i32) {
    %c0_i32 = arith.constant 0 : i32
    %c0_i32_0 = arith.constant 0 : i32
    %c0_i32_1 = arith.constant 0 : i32
    %c0_i32_2 = arith.constant 0 : i32
    return %c0_i32, %c0_i32_0, %c0_i32_1 : i32, i32, i32
  }
  func.func @transform_7(%arg0: i32) -> (i32, i32) {
    %c0_i32 = arith.constant 0 : i32
    %c0_i32_0 = arith.constant 0 : i32
    %c0_i32_1 = arith.constant 0 : i32
    return %c0_i32, %c0_i32_0 : i32, i32
  }
  func.func @transform_8(%arg0: i32) -> (i32, i32) {
    %c0_i32 = arith.constant 0 : i32
    %c0_i32_0 = arith.constant 0 : i32
    %c0_i32_1 = arith.constant 0 : i32
    return %c0_i32, %c0_i32_0 : i32, i32
  }
  func.func @transform_9(%arg0: i32) -> (i32, i32) {
    %c0_i32 = arith.constant 0 : i32
    %c0_i32_0 = arith.constant 0 : i32
    return %arg0, %c0_i32 : i32, i32
  }
}

</mosaic_0001>

<llo_original>
// kernel: tpu_custom_call.1
$region0: #{tpu_custom_call.1}
  #allocation0 [shape = 'u32[]', space=smem, size = 0x4, offset = 0x4, fixed_abs, tag = 'smem constant byte address 0x4 - core index']
  #allocation1 [shape = 'u32[144,128]{1,0:T(1,128)}', space=vmem, size = 0x12000, scoped, tag = 'internal scratch']
  %s0 = inlined_call_operand.vmem [shape: f32[8,8,1], index: 0, kind: input, shape index: {}]
  %s1 = inlined_call_operand.vmem [shape: f32[1,128], index: 1, kind: input, shape index: {}]
  %s2 = inlined_call_operand.vmem [shape: f32[1,128], index: 2, kind: input, shape index: {}]
  %s3 = inlined_call_operand.vmem [shape: bf16[128,128], index: 3, kind: input, shape index: {}]
  %s4 = inlined_call_operand.hbm [shape: bf16[3,128,128], index: 4, kind: input, shape index: {}]
  %s5 = inlined_call_operand.hbm [shape: bf16[3,128,128], index: 5, kind: input, shape index: {}]
  %s6 = inlined_call_operand.vmem [shape: f32[3,1,128], index: 6, kind: input, shape index: {}]
  %s7 = inlined_call_operand.hbm [shape: bf16[128,128], index: 7, kind: input, shape index: {}]
  %s8 = inlined_call_operand.vmem [shape: f32[1,128], index: 8, kind: input, shape index: {}]
  %s9 = inlined_call_operand.hbm [shape: f32[8,128], index: 9, kind: output, shape index: {}]
  %s10 = sld [smem:[#allocation0]]
  $region58: #{tpu_custom_call.1} parent=0
    _
  %s12 = ssub.s32 1, %s10
  %s13 = scalar_select 0, %s12, %s10
  $region1: #{tpu_custom_call.1} parent=0
    #allocation2 [shape = 'u8[98304]{0}', space=vmem, size = 0x18000, scoped, tag = 'input window, operand 4, single buffered']
    #allocation3 [shape = 's32[1]{0}', space=sflag, size = 0x4, scoped, tag = 'scoped memory for tpu_custom_call.1']
    #allocation4 [shape = 's32[1]{0}', space=sflag, size = 0x4, scoped, tag = 'scoped memory for tpu_custom_call.1']
    #allocation5 [shape = 'u8[98304]{0}', space=vmem, size = 0x18000, scoped, tag = 'input window, operand 5, single buffered']
    #allocation6 [shape = 's32[1]{0}', space=sflag, size = 0x4, scoped, tag = 'scoped memory for tpu_custom_call.1']
    #allocation7 [shape = 'u8[32768]{0}', space=vmem, size = 0x8000, scoped, tag = 'input window, operand 7, single buffered']
    #allocation8 [shape = 'u8[4096]{0}', space=vmem, size = 0x1000, scoped, tag = 'output window, operand 0, single buffered']
    %14 = vsyncpa [#allocation3], 0
    %15 = vsyncpa [#allocation6], 0
    %16 = vsyncpa [#allocation4], 0
    // Predicated region
    $region2: #{tpu_custom_call.1} parent=1 // pred_check
      _
    $region3: #{tpu_custom_call.1} parent=1 // pred_check_branch
      %18 = sbr.rel (0) target = $region5
    $region4: #{tpu_custom_call.1} parent=1 // pred_region
      _
    $region5: #{tpu_custom_call.1} parent=1 // pred_fallthru
      _
    // Predicated region
    $region6: #{tpu_custom_call.1} parent=1 // pred_check
      _
    $region7: #{tpu_custom_call.1} parent=1 // pred_check_branch
      %20 = sbr.rel (0) target = $region9
    $region8: #{tpu_custom_call.1} parent=1 // pred_region
      _
    $region9: #{tpu_custom_call.1} parent=1 // pred_fallthru
      _
    // Predicated region
    $region10: #{tpu_custom_call.1} parent=1 // pred_check
      _
    $region11: #{tpu_custom_call.1} parent=1 // pred_check_branch
      %22 = sbr.rel (0) target = $region13
    $region12: #{tpu_custom_call.1} parent=1 // pred_region
      _
    $region13: #{tpu_custom_call.1} parent=1 // pred_fallthru
      _
    // Predicated region
    $region14: #{tpu_custom_call.1} parent=1 // pred_check
      _
    $region15: #{tpu_custom_call.1} parent=1 // pred_check_branch
      %24 = sbr.rel (0) target = $region17
    $region16: #{tpu_custom_call.1} parent=1 // pred_region
      _
    $region17: #{tpu_custom_call.1} parent=1 // pred_fallthru
      _
    // Predicated region
    $region18: #{tpu_custom_call.1} parent=1 // pred_check
      _
    $region19: #{tpu_custom_call.1} parent=1 // pred_check_branch
      %26 = sbr.rel (0) target = $region21
    $region20: #{tpu_custom_call.1} parent=1 // pred_region
      %s28 = ssub.s32 3072, 3072
      %29 = vsyncadd [#allocation3], %s28
      %s30 = sshll.u32 [#allocation2], 4
      %s31 = int_to_ptr.vmem [resolvable:$true] %s30
      %36 = dma.hbm_to_vmem [thread:$0]  %s4, 3072, %s31, [#allocation3], 64, 64, 4
    $region21: #{tpu_custom_call.1} parent=1 // pred_fallthru
      _
    // Predicated region
    $region22: #{tpu_custom_call.1} parent=1 // pred_check
      _
    $region23: #{tpu_custom_call.1} parent=1 // pred_check_branch
      %38 = sbr.rel (0) target = $region25
    $region24: #{tpu_custom_call.1} parent=1 // pred_region
      %s40 = ssub.s32 3072, 3072
      %41 = vsyncadd [#allocation6], %s40
      %s42 = sshll.u32 [#allocation5], 4
      %s43 = int_to_ptr.vmem [resolvable:$true] %s42
      %48 = dma.hbm_to_vmem [thread:$0]  %s5, 3072, %s43, [#allocation6], 64, 64, 4
    $region25: #{tpu_custom_call.1} parent=1 // pred_fallthru
      _
    // Predicated region
    $region26: #{tpu_custom_call.1} parent=1 // pred_check
      _
    $region27: #{tpu_custom_call.1} parent=1 // pred_check_branch
      %50 = sbr.rel (0) target = $region29
    $region28: #{tpu_custom_call.1} parent=1 // pred_region
      _
    $region29: #{tpu_custom_call.1} parent=1 // pred_fallthru
      _
    // Predicated region
    $region30: #{tpu_custom_call.1} parent=1 // pred_check
      _
    $region31: #{tpu_custom_call.1} parent=1 // pred_check_branch
      %52 = sbr.rel (0) target = $region33
    $region32: #{tpu_custom_call.1} parent=1 // pred_region
      %s54 = ssub.s32 1024, 1024
      %55 = vsyncadd [#allocation6], %s54
      %s56 = sshll.u32 [#allocation7], 4
      %s57 = int_to_ptr.vmem [resolvable:$true] %s56
      %62 = dma.hbm_to_vmem [thread:$0]  %s7, 1024, %s57, [#allocation6], 64, 64, 4
    $region33: #{tpu_custom_call.1} parent=1 // pred_fallthru
      _
    // Predicated region
    $region34: #{tpu_custom_call.1} parent=1 // pred_check
      _
    $region35: #{tpu_custom_call.1} parent=1 // pred_check_branch
      %64 = sbr.rel (0) target = $region37
    $region36: #{tpu_custom_call.1} parent=1 // pred_region
      _
    $region37: #{tpu_custom_call.1} parent=1 // pred_fallthru
      _
    // Predicated region
    $region38: #{tpu_custom_call.1} parent=1 // pred_check
      _
    $region39: #{tpu_custom_call.1} parent=1 // pred_check_branch
      %66 = sbr.rel (0) target = $region41
    $region40: #{tpu_custom_call.1} parent=1 // pred_region
      %67 = dma.done [#allocation3], 3072
    $region41: #{tpu_custom_call.1} parent=1 // pred_fallthru
      _
    // Predicated region
    $region42: #{tpu_custom_call.1} parent=1 // pred_check
      _
    $region43: #{tpu_custom_call.1} parent=1 // pred_check_branch
      %69 = sbr.rel (0) target = $region45
    $region44: #{tpu_custom_call.1} parent=1 // pred_region
      %70 = dma.done [#allocation6], 3072
    $region45: #{tpu_custom_call.1} parent=1 // pred_fallthru
      _
    // Predicated region
    $region46: #{tpu_custom_call.1} parent=1 // pred_check
      _
    $region47: #{tpu_custom_call.1} parent=1 // pred_check_branch
      %72 = sbr.rel (0) target = $region49
    $region48: #{tpu_custom_call.1} parent=1 // pred_region
      %73 = dma.done [#allocation6], 1024
    $region49: #{tpu_custom_call.1} parent=1 // pred_fallthru
      _
    %v75 = vld [vmem:[%s0] sm:$0xff]
    %v76 = vld [vmem:[%s0 + $0x8] sm:$0xff]
    %v77 = vld [vmem:[%s0 + $0x10] sm:$0xff]
    %v78 = vld [vmem:[%s0 + $0x18] sm:$0xff]
    %v79 = vld [vmem:[%s0 + $0x20] sm:$0xff]
    %v80 = vld [vmem:[%s0 + $0x28] sm:$0xff]
    %v81 = vld [vmem:[%s0 + $0x30] sm:$0xff]
    %v82 = vld [vmem:[%s0 + $0x38] sm:$0xff]
    %v83 = vld [vmem:[%s1] sm:$0x1]
    %85 = vset.pattern.permute.xlu0 0
    %86 = vperm.xlu0 %85, %v75
    %v87 = vpop.permute.xlu0 %86
    %90 = vset.pattern.permute.xlu0 0
    %91 = vperm.xlu0 %90, %v76
    %v92 = vpop.permute.xlu0 %91
    %95 = vset.pattern.permute.xlu0 0
    %96 = vperm.xlu0 %95, %v77
    %v97 = vpop.permute.xlu0 %96
    %100 = vset.pattern.permute.xlu0 0
    %101 = vperm.xlu0 %100, %v78
    %v102 = vpop.permute.xlu0 %101
    %105 = vset.pattern.permute.xlu0 0
    %106 = vperm.xlu0 %105, %v79
    %v107 = vpop.permute.xlu0 %106
    %110 = vset.pattern.permute.xlu0 0
    %111 = vperm.xlu0 %110, %v80
    %v112 = vpop.permute.xlu0 %111
    %115 = vset.pattern.permute.xlu0 0
    %116 = vperm.xlu0 %115, %v81
    %v117 = vpop.permute.xlu0 %116
    %120 = vset.pattern.permute.xlu0 0
    %121 = vperm.xlu0 %120, %v82
    %v122 = vpop.permute.xlu0 %121
    %v125 = vlaneseq
    %v126 = vshrl.u32 %v125, 7
    %v127 = vsub.s32 0, %v126
    %v128 = vrot.slane %v83, %v127
    %v130 = vmul.f32 %v87, %v128
    %v131 = vmul.f32 %v92, %v128
    %v132 = vmul.f32 %v97, %v128
    %v133 = vmul.f32 %v102, %v128
    %v134 = vmul.f32 %v107, %v128
    %v135 = vmul.f32 %v112, %v128
    %v136 = vmul.f32 %v117, %v128
    %v137 = vmul.f32 %v122, %v128
    %v138 = vld [vmem:[%s2] sm:$0x1]
    %v140 = vlaneseq
    %v141 = vshrl.u32 %v140, 7
    %v142 = vsub.s32 0, %v141
    %v143 = vrot.slane %v138, %v142
    %v145 = vadd.f32 %v130, %v143
    %v146 = vadd.f32 %v131, %v143
    %v147 = vadd.f32 %v132, %v143
    %v148 = vadd.f32 %v133, %v143
    %v149 = vadd.f32 %v134, %v143
    %v150 = vadd.f32 %v135, %v143
    %v151 = vadd.f32 %v136, %v143
    %v152 = vadd.f32 %v137, %v143
    %v153 = vld [vmem:[%s3] sm:$0xf]
    %v154 = vld [vmem:[%s3 + $0x4] sm:$0xf]
    %v155 = vld [vmem:[%s3 + $0x8] sm:$0xf]
    %v156 = vld [vmem:[%s3 + $0xc] sm:$0xf]
    %v157 = vld [vmem:[%s3 + $0x10] sm:$0xf]
    %v158 = vld [vmem:[%s3 + $0x14] sm:$0xf]
    %v159 = vld [vmem:[%s3 + $0x18] sm:$0xf]
    %v160 = vld [vmem:[%s3 + $0x1c] sm:$0xf]
    %v161 = vld [vmem:[%s3 + $0x20] sm:$0xf]
    %v162 = vld [vmem:[%s3 + $0x24] sm:$0xf]
    %v163 = vld [vmem:[%s3 + $0x28] sm:$0xf]
    %v164 = vld [vmem:[%s3 + $0x2c] sm:$0xf]
    %v165 = vld [vmem:[%s3 + $0x30] sm:$0xf]
    %v166 = vld [vmem:[%s3 + $0x34] sm:$0xf]
    %v167 = vld [vmem:[%s3 + $0x38] sm:$0xf]
    %v168 = vld [vmem:[%s3 + $0x3c] sm:$0xf]
    %v185 = vunpack.c.l.b16 %v153
    %v186 = vunpack.c.l.b16 %v154
    %v187 = vunpack.c.l.b16 %v155
    %v188 = vunpack.c.l.b16 %v156
    %v189 = vunpack.c.l.b16 %v157
    %v190 = vunpack.c.l.b16 %v158
    %v191 = vunpack.c.l.b16 %v159
    %v192 = vunpack.c.l.b16 %v160
    %v193 = vunpack.c.l.b16 %v161
    %v194 = vunpack.c.l.b16 %v162
    %v195 = vunpack.c.l.b16 %v163
    %v196 = vunpack.c.l.b16 %v164
    %v197 = vunpack.c.l.b16 %v165
    %v198 = vunpack.c.l.b16 %v166
    %v199 = vunpack.c.l.b16 %v167
    %v200 = vunpack.c.l.b16 %v168
    %v201 = vpack.c.b16 %v186, %v185
    %v202 = vpack.c.b16 %v188, %v187
    %v203 = vpack.c.b16 %v190, %v189
    %v204 = vpack.c.b16 %v192, %v191
    %v205 = vpack.c.b16 %v194, %v193
    %v206 = vpack.c.b16 %v196, %v195
    %v207 = vpack.c.b16 %v198, %v197
    %v208 = vpack.c.b16 %v200, %v199
    %217 = vmatprep.subr.bf16.mxu0 0
    %218 = vmatpush1.bf16.msra.mxu0 %v201
    %219 = vmatprep.subr.bf16.mxu0 0
    %220 = vmatpush1.bf16.msra.mxu0 %v202
    %221 = vmatprep.subr.bf16.mxu0 0
    %222 = vmatpush1.bf16.msra.mxu0 %v203
    %223 = vmatprep.subr.bf16.mxu0 0
    %224 = vmatpush1.bf16.msra.mxu0 %v204
    %225 = vmatprep.subr.bf16.mxu0 0
    %226 = vmatpush1.bf16.msra.mxu0 %v205
    %227 = vmatprep.subr.bf16.mxu0 0
    %228 = vmatpush1.bf16.msra.mxu0 %v206
    %229 = vmatprep.subr.bf16.mxu0 0
    %230 = vmatpush1.bf16.msra.mxu0 %v207
    %231 = vmatprep.subr.bf16.mxu0 0
    %232 = vmatpush1.bf16.msra.mxu0 %v208
    %233 = vmatprep.subr.bf16.mxu0 0
    %234 = vmatpush1.bf16.msra.mxu0 0
    %235 = vmatprep.subr.bf16.mxu0 0
    %236 = vmatpush1.bf16.msra.mxu0 0
    %237 = vmatprep.subr.bf16.mxu0 0
    %238 = vmatpush1.bf16.msra.mxu0 0
    %239 = vmatprep.subr.bf16.mxu0 0
    %240 = vmatpush1.bf16.msra.mxu0 0
    %241 = vmatprep.subr.bf16.mxu0 0
    %242 = vmatpush1.bf16.msra.mxu0 0
    %243 = vmatprep.subr.bf16.mxu0 0
    %244 = vmatpush1.bf16.msra.mxu0 0
    %245 = vmatprep.subr.bf16.mxu0 0
    %246 = vmatpush1.bf16.msra.mxu0 0
    %247 = vmatprep.subr.bf16.mxu0 0
    %248 = vmatpush1.bf16.msra.mxu0 0
    %249 = vmatprep.mubr.bf16.mxu0 0
    %250 = vmatmul.mubr.bf16.gmra.mrb[0].mxu0 0
    %v251 = vpop.f32.mrb[0].mxu0
    %v252 = vadd.f32 0.0, %v251
    %v253 = vpop.f32.mrb[0].mxu0
    %v254 = vpop.f32.mrb[0].mxu0
    %v255 = vpop.f32.mrb[0].mxu0
    %256 = vdwg.mxu0
    %v257 = vadd.f32 %v145, %v252
    %v258 = vtanh.pop %v257
    %v259 = vpack.c.bf16 %v258, %v258
    %260 = vmatprep.subr.bf16.mxu0 0
    %261 = vmatpush1.bf16.msra.mxu0 %v201
    %262 = vmatprep.subr.bf16.mxu0 0
    %263 = vmatpush1.bf16.msra.mxu0 %v202
    %264 = vmatprep.subr.bf16.mxu0 0
    %265 = vmatpush1.bf16.msra.mxu0 %v203
    %266 = vmatprep.subr.bf16.mxu0 0
    %267 = vmatpush1.bf16.msra.mxu0 %v204
    %268 = vmatprep.subr.bf16.mxu0 0
    %269 = vmatpush1.bf16.msra.mxu0 %v205
    %270 = vmatprep.subr.bf16.mxu0 0
    %271 = vmatpush1.bf16.msra.mxu0 %v206
    %272 = vmatprep.subr.bf16.mxu0 0
    %273 = vmatpush1.bf16.msra.mxu0 %v207
    %274 = vmatprep.subr.bf16.mxu0 0
    %275 = vmatpush1.bf16.msra.mxu0 %v208
    %276 = vmatprep.subr.bf16.mxu0 0
    %277 = vmatpush1.bf16.msra.mxu0 0
    %278 = vmatprep.subr.bf16.mxu0 0
    %279 = vmatpush1.bf16.msra.mxu0 0
    %280 = vmatprep.subr.bf16.mxu0 0
    %281 = vmatpush1.bf16.msra.mxu0 0
    %282 = vmatprep.subr.bf16.mxu0 0
    %283 = vmatpush1.bf16.msra.mxu0 0
    %284 = vmatprep.subr.bf16.mxu0 0
    %285 = vmatpush1.bf16.msra.mxu0 0
    %286 = vmatprep.subr.bf16.mxu0 0
    %287 = vmatpush1.bf16.msra.mxu0 0
    %288 = vmatprep.subr.bf16.mxu0 0
    %289 = vmatpush1.bf16.msra.mxu0 0
    %290 = vmatprep.subr.bf16.mxu0 0
    %291 = vmatpush1.bf16.msra.mxu0 0
    %292 = vmatprep.mubr.bf16.mxu0 0
    %293 = vmatmul.mubr.bf16.gmra.mrb[0].mxu0 %v259
    %v294 = vpop.f32.mrb[0].mxu0
    %v295 = vadd.f32 0.0, %v294
    %v296 = vpop.f32.mrb[0].mxu0
    %v297 = vpop.f32.mrb[0].mxu0
    %v298 = vpop.f32.mrb[0].mxu0
    %299 = vdwg.mxu0
    %v300 = vadd.f32 %v146, %v295
    %v301 = vtanh.pop %v300
    %v302 = vld [vmem:[#allocation2] sm:$0xf]
    %v303 = vld [vmem:[#allocation2 + $0x4] sm:$0xf]
    %v304 = vld [vmem:[#allocation2 + $0x8] sm:$0xf]
    %v305 = vld [vmem:[#allocation2 + $0xc] sm:$0xf]
    %v306 = vld [vmem:[#allocation2 + $0x10] sm:$0xf]
    %v307 = vld [vmem:[#allocation2 + $0x14] sm:$0xf]
    %v308 = vld [vmem:[#allocation2 + $0x18] sm:$0xf]
    %v309 = vld [vmem:[#allocation2 + $0x1c] sm:$0xf]
    %v310 = vld [vmem:[#allocation2 + $0x20] sm:$0xf]
    %v311 = vld [vmem:[#allocation2 + $0x24] sm:$0xf]
    %v312 = vld [vmem:[#allocation2 + $0x28] sm:$0xf]
    %v313 = vld [vmem:[#allocation2 + $0x2c] sm:$0xf]
    %v314 = vld [vmem:[#allocation2 + $0x30] sm:$0xf]
    %v315 = vld [vmem:[#allocation2 + $0x34] sm:$0xf]
    %v316 = vld [vmem:[#allocation2 + $0x38] sm:$0xf]
    %v317 = vld [vmem:[#allocation2 + $0x3c] sm:$0xf]
    %v318 = vld [vmem:[#allocation5] sm:$0xf]
    %v319 = vld [vmem:[#allocation5 + $0x4] sm:$0xf]
    %v320 = vld [vmem:[#allocation5 + $0x8] sm:$0xf]
    %v321 = vld [vmem:[#allocation5 + $0xc] sm:$0xf]
    %v322 = vld [vmem:[#allocation5 + $0x10] sm:$0xf]
    %v323 = vld [vmem:[#allocation5 + $0x14] sm:$0xf]
    %v324 = vld [vmem:[#allocation5 + $0x18] sm:$0xf]
    %v325 = vld [vmem:[#allocation5 + $0x1c] sm:$0xf]
    %v326 = vld [vmem:[#allocation5 + $0x20] sm:$0xf]
    %v327 = vld [vmem:[#allocation5 + $0x24] sm:$0xf]
    %v328 = vld [vmem:[#allocation5 + $0x28] sm:$0xf]
    %v329 = vld [vmem:[#allocation5 + $0x2c] sm:$0xf]
    %v330 = vld [vmem:[#allocation5 + $0x30] sm:$0xf]
    %v331 = vld [vmem:[#allocation5 + $0x34] sm:$0xf]
    %v332 = vld [vmem:[#allocation5 + $0x38] sm:$0xf]
    %v333 = vld [vmem:[#allocation5 + $0x3c] sm:$0xf]
    %v350 = vunpack.c.l.b16 %v318
    %v351 = vunpack.c.l.b16 %v319
    %v352 = vunpack.c.l.b16 %v320
    %v353 = vunpack.c.l.b16 %v321
    %v354 = vunpack.c.l.b16 %v322
    %v355 = vunpack.c.l.b16 %v323
    %v356 = vunpack.c.l.b16 %v324
    %v357 = vunpack.c.l.b16 %v325
    %v358 = vunpack.c.l.b16 %v326
    %v359 = vunpack.c.l.b16 %v327
    %v360 = vunpack.c.l.b16 %v328
    %v361 = vunpack.c.l.b16 %v329
    %v362 = vunpack.c.l.b16 %v330
    %v363 = vunpack.c.l.b16 %v331
    %v364 = vunpack.c.l.b16 %v332
    %v365 = vunpack.c.l.b16 %v333
    %v366 = vpack.c.b16 %v351, %v350
    %v367 = vpack.c.b16 %v353, %v352
    %v368 = vpack.c.b16 %v355, %v354
    %v369 = vpack.c.b16 %v357, %v356
    %v370 = vpack.c.b16 %v359, %v358
    %v371 = vpack.c.b16 %v361, %v360
    %v372 = vpack.c.b16 %v363, %v362
    %v373 = vpack.c.b16 %v365, %v364
    %382 = vmatprep.subr.bf16.mxu0 0
    %383 = vmatpush1.bf16.msra.mxu0 %v366
    %384 = vmatprep.subr.bf16.mxu0 0
    %385 = vmatpush1.bf16.msra.mxu0 %v367
    %386 = vmatprep.subr.bf16.mxu0 0
    %387 = vmatpush1.bf16.msra.mxu0 %v368
    %388 = vmatprep.subr.bf16.mxu0 0
    %389 = vmatpush1.bf16.msra.mxu0 %v369
    %390 = vmatprep.subr.bf16.mxu0 0
    %391 = vmatpush1.bf16.msra.mxu0 %v370
    %392 = vmatprep.subr.bf16.mxu0 0
    %393 = vmatpush1.bf16.msra.mxu0 %v371
    %394 = vmatprep.subr.bf16.mxu0 0
    %395 = vmatpush1.bf16.msra.mxu0 %v372
    %396 = vmatprep.subr.bf16.mxu0 0
    %397 = vmatpush1.bf16.msra.mxu0 %v373
    %398 = vmatprep.subr.bf16.mxu0 0
    %399 = vmatpush1.bf16.msra.mxu0 0
    %400 = vmatprep.subr.bf16.mxu0 0
    %401 = vmatpush1.bf16.msra.mxu0 0
    %402 = vmatprep.subr.bf16.mxu0 0
    %403 = vmatpush1.bf16.msra.mxu0 0
    %404 = vmatprep.subr.bf16.mxu0 0
    %405 = vmatpush1.bf16.msra.mxu0 0
    %406 = vmatprep.subr.bf16.mxu0 0
    %407 = vmatpush1.bf16.msra.mxu0 0
    %408 = vmatprep.subr.bf16.mxu0 0
    %409 = vmatpush1.bf16.msra.mxu0 0
    %410 = vmatprep.subr.bf16.mxu0 0
    %411 = vmatpush1.bf16.msra.mxu0 0
    %412 = vmatprep.subr.bf16.mxu0 0
    %413 = vmatpush1.bf16.msra.mxu0 0
    %414 = vmatprep.mubr.bf16.mxu0 0
    %415 = vmatmul.mubr.bf16.gmra.mrb[0].mxu0 0
    %v416 = vpop.f32.mrb[0].mxu0
    %v417 = vadd.f32 0.0, %v416
    %v418 = vpop.f32.mrb[0].mxu0
    %v419 = vpop.f32.mrb[0].mxu0
    %v420 = vpop.f32.mrb[0].mxu0
    %421 = vdwg.mxu0
    %v438 = vunpack.c.l.b16 %v302
    %v439 = vunpack.c.l.b16 %v303
    %v440 = vunpack.c.l.b16 %v304
    %v441 = vunpack.c.l.b16 %v305
    %v442 = vunpack.c.l.b16 %v306
    %v443 = vunpack.c.l.b16 %v307
    %v444 = vunpack.c.l.b16 %v308
    %v445 = vunpack.c.l.b16 %v309
    %v446 = vunpack.c.l.b16 %v310
    %v447 = vunpack.c.l.b16 %v311
    %v448 = vunpack.c.l.b16 %v312
    %v449 = vunpack.c.l.b16 %v313
    %v450 = vunpack.c.l.b16 %v314
    %v451 = vunpack.c.l.b16 %v315
    %v452 = vunpack.c.l.b16 %v316
    %v453 = vunpack.c.l.b16 %v317
    %v454 = vpack.c.b16 %v439, %v438
    %v455 = vpack.c.b16 %v441, %v440
    %v456 = vpack.c.b16 %v443, %v442
    %v457 = vpack.c.b16 %v445, %v444
    %v458 = vpack.c.b16 %v447, %v446
    %v459 = vpack.c.b16 %v449, %v448
    %v460 = vpack.c.b16 %v451, %v450
    %v461 = vpack.c.b16 %v453, %v452
    %470 = vmatprep.subr.bf16.mxu0 0
    %471 = vmatpush1.bf16.msra.mxu0 %v454
    %472 = vmatprep.subr.bf16.mxu0 0
    %473 = vmatpush1.bf16.msra.mxu0 %v455
    %474 = vmatprep.subr.bf16.mxu0 0
    %475 = vmatpush1.bf16.msra.mxu0 %v456
    %476 = vmatprep.subr.bf16.mxu0 0
    %477 = vmatpush1.bf16.msra.mxu0 %v457
    %478 = vmatprep.subr.bf16.mxu0 0
    %479 = vmatpush1.bf16.msra.mxu0 %v458
    %480 = vmatprep.subr.bf16.mxu0 0
    %481 = vmatpush1.bf16.msra.mxu0 %v459
    %482 = vmatprep.subr.bf16.mxu0 0
    %483 = vmatpush1.bf16.msra.mxu0 %v460
    %484 = vmatprep.subr.bf16.mxu0 0
    %485 = vmatpush1.bf16.msra.mxu0 %v461
    %486 = vmatprep.subr.bf16.mxu0 0
    %487 = vmatpush1.bf16.msra.mxu0 0
    %488 = vmatprep.subr.bf16.mxu0 0
    %489 = vmatpush1.bf16.msra.mxu0 0
    %490 = vmatprep.subr.bf16.mxu0 0
    %491 = vmatpush1.bf16.msra.mxu0 0
    %492 = vmatprep.subr.bf16.mxu0 0
    %493 = vmatpush1.bf16.msra.mxu0 0
    %494 = vmatprep.subr.bf16.mxu0 0
    %495 = vmatpush1.bf16.msra.mxu0 0
    %496 = vmatprep.subr.bf16.mxu0 0
    %497 = vmatpush1.bf16.msra.mxu0 0
    %498 = vmatprep.subr.bf16.mxu0 0
    %499 = vmatpush1.bf16.msra.mxu0 0
    %500 = vmatprep.subr.bf16.mxu0 0
    %501 = vmatpush1.bf16.msra.mxu0 0
    %502 = vmatprep.mubr.bf16.mxu0 0
    %503 = vmatmul.mubr.bf16.gmra.mrb[0].mxu0 %v259
    %v504 = vpop.f32.mrb[0].mxu0
    %v505 = vadd.f32 %v417, %v504
    %v506 = vpop.f32.mrb[0].mxu0
    %v507 = vpop.f32.mrb[0].mxu0
    %v508 = vpop.f32.mrb[0].mxu0
    %509 = vdwg.mxu0
    %v510 = vld [vmem:[%s6] sm:$0x1]
    %v512 = vlaneseq
    %v513 = vshrl.u32 %v512, 7
    %v514 = vsub.s32 0, %v513
    %v515 = vrot.slane %v510, %v514
    %v517 = vadd.f32 %v505, %v515
    %v518 = vtanh.pop %v517
    %v519 = vpack.c.bf16 %v301, %v301
    %520 = vmatprep.subr.bf16.mxu0 0
    %521 = vmatpush1.bf16.msra.mxu0 %v201
    %522 = vmatprep.subr.bf16.mxu0 0
    %523 = vmatpush1.bf16.msra.mxu0 %v202
    %524 = vmatprep.subr.bf16.mxu0 0
    %525 = vmatpush1.bf16.msra.mxu0 %v203
    %526 = vmatprep.subr.bf16.mxu0 0
    %527 = vmatpush1.bf16.msra.mxu0 %v204
    %528 = vmatprep.subr.bf16.mxu0 0
    %529 = vmatpush1.bf16.msra.mxu0 %v205
    %530 = vmatprep.subr.bf16.mxu0 0
    %531 = vmatpush1.bf16.msra.mxu0 %v206
    %532 = vmatprep.subr.bf16.mxu0 0
    %533 = vmatpush1.bf16.msra.mxu0 %v207
    %534 = vmatprep.subr.bf16.mxu0 0
    %535 = vmatpush1.bf16.msra.mxu0 %v208
    %536 = vmatprep.subr.bf16.mxu0 0
    %537 = vmatpush1.bf16.msra.mxu0 0
    %538 = vmatprep.subr.bf16.mxu0 0
    %539 = vmatpush1.bf16.msra.mxu0 0
    %540 = vmatprep.subr.bf16.mxu0 0
    %541 = vmatpush1.bf16.msra.mxu0 0
    %542 = vmatprep.subr.bf16.mxu0 0
    %543 = vmatpush1.bf16.msra.mxu0 0
    %544 = vmatprep.subr.bf16.mxu0 0
    %545 = vmatpush1.bf16.msra.mxu0 0
    %546 = vmatprep.subr.bf16.mxu0 0
    %547 = vmatpush1.bf16.msra.mxu0 0
    %548 = vmatprep.subr.bf16.mxu0 0
    %549 = vmatpush1.bf16.msra.mxu0 0
    %550 = vmatprep.subr.bf16.mxu0 0
    %551 = vmatpush1.bf16.msra.mxu0 0
    %552 = vmatprep.mubr.bf16.mxu0 0
    %553 = vmatmul.mubr.bf16.gmra.mrb[0].mxu0 %v519
    %v554 = vpop.f32.mrb[0].mxu0
    %v555 = vadd.f32 0.0, %v554
    %v556 = vpop.f32.mrb[0].mxu0
    %v557 = vpop.f32.mrb[0].mxu0
    %v558 = vpop.f32.mrb[0].mxu0
    %559 = vdwg.mxu0
    %v560 = vadd.f32 %v147, %v555
    %v561 = vtanh.pop %v560
    %v562 = vpack.c.bf16 %v518, %v518
    %563 = vmatprep.subr.bf16.mxu0 0
    %564 = vmatpush1.bf16.msra.mxu0 %v366
    %565 = vmatprep.subr.bf16.mxu0 0
    %566 = vmatpush1.bf16.msra.mxu0 %v367
    %567 = vmatprep.subr.bf16.mxu0 0
    %568 = vmatpush1.bf16.msra.mxu0 %v368
    %569 = vmatprep.subr.bf16.mxu0 0
    %570 = vmatpush1.bf16.msra.mxu0 %v369
    %571 = vmatprep.subr.bf16.mxu0 0
    %572 = vmatpush1.bf16.msra.mxu0 %v370
    %573 = vmatprep.subr.bf16.mxu0 0
    %574 = vmatpush1.bf16.msra.mxu0 %v371
    %575 = vmatprep.subr.bf16.mxu0 0
    %576 = vmatpush1.bf16.msra.mxu0 %v372
    %577 = vmatprep.subr.bf16.mxu0 0
    %578 = vmatpush1.bf16.msra.mxu0 %v373
    %579 = vmatprep.subr.bf16.mxu0 0
    %580 = vmatpush1.bf16.msra.mxu0 0
    %581 = vmatprep.subr.bf16.mxu0 0
    %582 = vmatpush1.bf16.msra.mxu0 0
    %583 = vmatprep.subr.bf16.mxu0 0
    %584 = vmatpush1.bf16.msra.mxu0 0
    %585 = vmatprep.subr.bf16.mxu0 0
    %586 = vmatpush1.bf16.msra.mxu0 0
    %587 = vmatprep.subr.bf16.mxu0 0
    %588 = vmatpush1.bf16.msra.mxu0 0
    %589 = vmatprep.subr.bf16.mxu0 0
    %590 = vmatpush1.bf16.msra.mxu0 0
    %591 = vmatprep.subr.bf16.mxu0 0
    %592 = vmatpush1.bf16.msra.mxu0 0
    %593 = vmatprep.subr.bf16.mxu0 0
    %594 = vmatpush1.bf16.msra.mxu0 0
    %595 = vmatprep.mubr.bf16.mxu0 0
    %596 = vmatmul.mubr.bf16.gmra.mrb[0].mxu0 %v562
    %v597 = vpop.f32.mrb[0].mxu0
    %v598 = vadd.f32 0.0, %v597
    %v599 = vpop.f32.mrb[0].mxu0
    %v600 = vpop.f32.mrb[0].mxu0
    %v601 = vpop.f32.mrb[0].mxu0
    %602 = vdwg.mxu0
    %603 = vmatprep.subr.bf16.mxu0 0
    %604 = vmatpush1.bf16.msra.mxu0 %v454
    %605 = vmatprep.subr.bf16.mxu0 0
    %606 = vmatpush1.bf16.msra.mxu0 %v455
    %607 = vmatprep.subr.bf16.mxu0 0
    %608 = vmatpush1.bf16.msra.mxu0 %v456
    %609 = vmatprep.subr.bf16.mxu0 0
    %610 = vmatpush1.bf16.msra.mxu0 %v457
    %611 = vmatprep.subr.bf16.mxu0 0
    %612 = vmatpush1.bf16.msra.mxu0 %v458
    %613 = vmatprep.subr.bf16.mxu0 0
    %614 = vmatpush1.bf16.msra.mxu0 %v459
    %615 = vmatprep.subr.bf16.mxu0 0
    %616 = vmatpush1.bf16.msra.mxu0 %v460
    %617 = vmatprep.subr.bf16.mxu0 0
    %618 = vmatpush1.bf16.msra.mxu0 %v461
    %619 = vmatprep.subr.bf16.mxu0 0
    %620 = vmatpush1.bf16.msra.mxu0 0
    %621 = vmatprep.subr.bf16.mxu0 0
    %622 = vmatpush1.bf16.msra.mxu0 0
    %623 = vmatprep.subr.bf16.mxu0 0
    %624 = vmatpush1.bf16.msra.mxu0 0
    %625 = vmatprep.subr.bf16.mxu0 0
    %626 = vmatpush1.bf16.msra.mxu0 0
    %627 = vmatprep.subr.bf16.mxu0 0
    %628 = vmatpush1.bf16.msra.mxu0 0
    %629 = vmatprep.subr.bf16.mxu0 0
    %630 = vmatpush1.bf16.msra.mxu0 0
    %631 = vmatprep.subr.bf16.mxu0 0
    %632 = vmatpush1.bf16.msra.mxu0 0
    %633 = vmatprep.subr.bf16.mxu0 0
    %634 = vmatpush1.bf16.msra.mxu0 0
    %635 = vmatprep.mubr.bf16.mxu0 0
    %636 = vmatmul.mubr.bf16.gmra.mrb[0].mxu0 %v519
    %v637 = vpop.f32.mrb[0].mxu0
    %v638 = vadd.f32 %v598, %v637
    %v639 = vpop.f32.mrb[0].mxu0
    %v640 = vpop.f32.mrb[0].mxu0
    %v641 = vpop.f32.mrb[0].mxu0
    %642 = vdwg.mxu0
    %v643 = vadd.f32 %v638, %v515
    %v644 = vtanh.pop %v643
    %s645 = scalar_lea.vmem [#allocation2], 64
    %v646 = vld [vmem:[%s645] sm:$0xf]
    %v647 = vld [vmem:[%s645 + $0x4] sm:$0xf]
    %v648 = vld [vmem:[%s645 + $0x8] sm:$0xf]
    %v649 = vld [vmem:[%s645 + $0xc] sm:$0xf]
    %v650 = vld [vmem:[%s645 + $0x10] sm:$0xf]
    %v651 = vld [vmem:[%s645 + $0x14] sm:$0xf]
    %v652 = vld [vmem:[%s645 + $0x18] sm:$0xf]
    %v653 = vld [vmem:[%s645 + $0x1c] sm:$0xf]
    %v654 = vld [vmem:[%s645 + $0x20] sm:$0xf]
    %v655 = vld [vmem:[%s645 + $0x24] sm:$0xf]
    %v656 = vld [vmem:[%s645 + $0x28] sm:$0xf]
    %v657 = vld [vmem:[%s645 + $0x2c] sm:$0xf]
    %v658 = vld [vmem:[%s645 + $0x30] sm:$0xf]
    %v659 = vld [vmem:[%s645 + $0x34] sm:$0xf]
    %v660 = vld [vmem:[%s645 + $0x38] sm:$0xf]
    %v661 = vld [vmem:[%s645 + $0x3c] sm:$0xf]
    %s662 = scalar_lea.vmem [#allocation5], 64
    %v663 = vld [vmem:[%s662] sm:$0xf]
    %v664 = vld [vmem:[%s662 + $0x4] sm:$0xf]
    %v665 = vld [vmem:[%s662 + $0x8] sm:$0xf]
    %v666 = vld [vmem:[%s662 + $0xc] sm:$0xf]
    %v667 = vld [vmem:[%s662 + $0x10] sm:$0xf]
    %v668 = vld [vmem:[%s662 + $0x14] sm:$0xf]
    %v669 = vld [vmem:[%s662 + $0x18] sm:$0xf]
    %v670 = vld [vmem:[%s662 + $0x1c] sm:$0xf]
    %v671 = vld [vmem:[%s662 + $0x20] sm:$0xf]
    %v672 = vld [vmem:[%s662 + $0x24] sm:$0xf]
    %v673 = vld [vmem:[%s662 + $0x28] sm:$0xf]
    %v674 = vld [vmem:[%s662 + $0x2c] sm:$0xf]
    %v675 = vld [vmem:[%s662 + $0x30] sm:$0xf]
    %v676 = vld [vmem:[%s662 + $0x34] sm:$0xf]
    %v677 = vld [vmem:[%s662 + $0x38] sm:$0xf]
    %v678 = vld [vmem:[%s662 + $0x3c] sm:$0xf]
    %v695 = vunpack.c.l.b16 %v663
    %v696 = vunpack.c.l.b16 %v664
    %v697 = vunpack.c.l.b16 %v665
    %v698 = vunpack.c.l.b16 %v666
    %v699 = vunpack.c.l.b16 %v667
    %v700 = vunpack.c.l.b16 %v668
    %v701 = vunpack.c.l.b16 %v669
    %v702 = vunpack.c.l.b16 %v670
    %v703 = vunpack.c.l.b16 %v671
    %v704 = vunpack.c.l.b16 %v672
    %v705 = vunpack.c.l.b16 %v673
    %v706 = vunpack.c.l.b16 %v674
    %v707 = vunpack.c.l.b16 %v675
    %v708 = vunpack.c.l.b16 %v676
    %v709 = vunpack.c.l.b16 %v677
    %v710 = vunpack.c.l.b16 %v678
    %v711 = vpack.c.b16 %v696, %v695
    %v712 = vpack.c.b16 %v698, %v697
    %v713 = vpack.c.b16 %v700, %v699
    %v714 = vpack.c.b16 %v702, %v701
    %v715 = vpack.c.b16 %v704, %v703
    %v716 = vpack.c.b16 %v706, %v705
    %v717 = vpack.c.b16 %v708, %v707
    %v718 = vpack.c.b16 %v710, %v709
    %727 = vmatprep.subr.bf16.mxu0 0
    %728 = vmatpush1.bf16.msra.mxu0 %v711
    %729 = vmatprep.subr.bf16.mxu0 0
    %730 = vmatpush1.bf16.msra.mxu0 %v712
    %731 = vmatprep.subr.bf16.mxu0 0
    %732 = vmatpush1.bf16.msra.mxu0 %v713
    %733 = vmatprep.subr.bf16.mxu0 0
    %734 = vmatpush1.bf16.msra.mxu0 %v714
    %735 = vmatprep.subr.bf16.mxu0 0
    %736 = vmatpush1.bf16.msra.mxu0 %v715
    %737 = vmatprep.subr.bf16.mxu0 0
    %738 = vmatpush1.bf16.msra.mxu0 %v716
    %739 = vmatprep.subr.bf16.mxu0 0
    %740 = vmatpush1.bf16.msra.mxu0 %v717
    %741 = vmatprep.subr.bf16.mxu0 0
    %742 = vmatpush1.bf16.msra.mxu0 %v718
    %743 = vmatprep.subr.bf16.mxu0 0
    %744 = vmatpush1.bf16.msra.mxu0 0
    %745 = vmatprep.subr.bf16.mxu0 0
    %746 = vmatpush1.bf16.msra.mxu0 0
    %747 = vmatprep.subr.bf16.mxu0 0
    %748 = vmatpush1.bf16.msra.mxu0 0
    %749 = vmatprep.subr.bf16.mxu0 0
    %750 = vmatpush1.bf16.msra.mxu0 0
    %751 = vmatprep.subr.bf16.mxu0 0
    %752 = vmatpush1.bf16.msra.mxu0 0
    %753 = vmatprep.subr.bf16.mxu0 0
    %754 = vmatpush1.bf16.msra.mxu0 0
    %755 = vmatprep.subr.bf16.mxu0 0
    %756 = vmatpush1.bf16.msra.mxu0 0
    %757 = vmatprep.subr.bf16.mxu0 0
    %758 = vmatpush1.bf16.msra.mxu0 0
    %759 = vmatprep.mubr.bf16.mxu0 0
    %760 = vmatmul.mubr.bf16.gmra.mrb[0].mxu0 0
    %v761 = vpop.f32.mrb[0].mxu0
    %v762 = vadd.f32 0.0, %v761
    %v763 = vpop.f32.mrb[0].mxu0
    %v764 = vpop.f32.mrb[0].mxu0
    %v765 = vpop.f32.mrb[0].mxu0
    %766 = vdwg.mxu0
    %v783 = vunpack.c.l.b16 %v646
    %v784 = vunpack.c.l.b16 %v647
    %v785 = vunpack.c.l.b16 %v648
    %v786 = vunpack.c.l.b16 %v649
    %v787 = vunpack.c.l.b16 %v650
    %v788 = vunpack.c.l.b16 %v651
    %v789 = vunpack.c.l.b16 %v652
    %v790 = vunpack.c.l.b16 %v653
    %v791 = vunpack.c.l.b16 %v654
    %v792 = vunpack.c.l.b16 %v655
    %v793 = vunpack.c.l.b16 %v656
    %v794 = vunpack.c.l.b16 %v657
    %v795 = vunpack.c.l.b16 %v658
    %v796 = vunpack.c.l.b16 %v659
    %v797 = vunpack.c.l.b16 %v660
    %v798 = vunpack.c.l.b16 %v661
    %v799 = vpack.c.b16 %v784, %v783
    %v800 = vpack.c.b16 %v786, %v785
    %v801 = vpack.c.b16 %v788, %v787
    %v802 = vpack.c.b16 %v790, %v789
    %v803 = vpack.c.b16 %v792, %v791
    %v804 = vpack.c.b16 %v794, %v793
    %v805 = vpack.c.b16 %v796, %v795
    %v806 = vpack.c.b16 %v798, %v797
    %815 = vmatprep.subr.bf16.mxu0 0
    %816 = vmatpush1.bf16.msra.mxu0 %v799
    %817 = vmatprep.subr.bf16.mxu0 0
    %818 = vmatpush1.bf16.msra.mxu0 %v800
    %819 = vmatprep.subr.bf16.mxu0 0
    %820 = vmatpush1.bf16.msra.mxu0 %v801
    %821 = vmatprep.subr.bf16.mxu0 0
    %822 = vmatpush1.bf16.msra.mxu0 %v802
    %823 = vmatprep.subr.bf16.mxu0 0
    %824 = vmatpush1.bf16.msra.mxu0 %v803
    %825 = vmatprep.subr.bf16.mxu0 0
    %826 = vmatpush1.bf16.msra.mxu0 %v804
    %827 = vmatprep.subr.bf16.mxu0 0
    %828 = vmatpush1.bf16.msra.mxu0 %v805
    %829 = vmatprep.subr.bf16.mxu0 0
    %830 = vmatpush1.bf16.msra.mxu0 %v806
    %831 = vmatprep.subr.bf16.mxu0 0
    %832 = vmatpush1.bf16.msra.mxu0 0
    %833 = vmatprep.subr.bf16.mxu0 0
    %834 = vmatpush1.bf16.msra.mxu0 0
    %835 = vmatprep.subr.bf16.mxu0 0
    %836 = vmatpush1.bf16.msra.mxu0 0
    %837 = vmatprep.subr.bf16.mxu0 0
    %838 = vmatpush1.bf16.msra.mxu0 0
    %839 = vmatprep.subr.bf16.mxu0 0
    %840 = vmatpush1.bf16.msra.mxu0 0
    %841 = vmatprep.subr.bf16.mxu0 0
    %842 = vmatpush1.bf16.msra.mxu0 0
    %843 = vmatprep.subr.bf16.mxu0 0
    %844 = vmatpush1.bf16.msra.mxu0 0
    %845 = vmatprep.subr.bf16.mxu0 0
    %846 = vmatpush1.bf16.msra.mxu0 0
    %847 = vmatprep.mubr.bf16.mxu0 0
    %848 = vmatmul.mubr.bf16.gmra.mrb[0].mxu0 %v562
    %v849 = vpop.f32.mrb[0].mxu0
    %v850 = vadd.f32 %v762, %v849
    %v851 = vpop.f32.mrb[0].mxu0
    %v852 = vpop.f32.mrb[0].mxu0
    %v853 = vpop.f32.mrb[0].mxu0
    %854 = vdwg.mxu0
    %s855 = scalar_lea.vmem %s6, 1
    %v856 = vld [vmem:[%s855] sm:$0x1]
    %v858 = vlaneseq
    %v859 = vshrl.u32 %v858, 7
    %v860 = vsub.s32 0, %v859
    %v861 = vrot.slane %v856, %v860
    %v863 = vadd.f32 %v850, %v861
    %v864 = vtanh.pop %v863
    %v865 = vpack.c.bf16 %v561, %v561
    %866 = vmatprep.subr.bf16.mxu0 0
    %867 = vmatpush1.bf16.msra.mxu0 %v201
    %868 = vmatprep.subr.bf16.mxu0 0
    %869 = vmatpush1.bf16.msra.mxu0 %v202
    %870 = vmatprep.subr.bf16.mxu0 0
    %871 = vmatpush1.bf16.msra.mxu0 %v203
    %872 = vmatprep.subr.bf16.mxu0 0
    %873 = vmatpush1.bf16.msra.mxu0 %v204
    %874 = vmatprep.subr.bf16.mxu0 0
    %875 = vmatpush1.bf16.msra.mxu0 %v205
    %876 = vmatprep.subr.bf16.mxu0 0
    %877 = vmatpush1.bf16.msra.mxu0 %v206
    %878 = vmatprep.subr.bf16.mxu0 0
    %879 = vmatpush1.bf16.msra.mxu0 %v207
    %880 = vmatprep.subr.bf16.mxu0 0
    %881 = vmatpush1.bf16.msra.mxu0 %v208
    %882 = vmatprep.subr.bf16.mxu0 0
    %883 = vmatpush1.bf16.msra.mxu0 0
    %884 = vmatprep.subr.bf16.mxu0 0
    %885 = vmatpush1.bf16.msra.mxu0 0
    %886 = vmatprep.subr.bf16.mxu0 0
    %887 = vmatpush1.bf16.msra.mxu0 0
    %888 = vmatprep.subr.bf16.mxu0 0
    %889 = vmatpush1.bf16.msra.mxu0 0
    %890 = vmatprep.subr.bf16.mxu0 0
    %891 = vmatpush1.bf16.msra.mxu0 0
    %892 = vmatprep.subr.bf16.mxu0 0
    %893 = vmatpush1.bf16.msra.mxu0 0
    %894 = vmatprep.subr.bf16.mxu0 0
    %895 = vmatpush1.bf16.msra.mxu0 0
    %896 = vmatprep.subr.bf16.mxu0 0
    %897 = vmatpush1.bf16.msra.mxu0 0
    %898 = vmatprep.mubr.bf16.mxu0 0
    %899 = vmatmul.mubr.bf16.gmra.mrb[0].mxu0 %v865
    %v900 = vpop.f32.mrb[0].mxu0
    %v901 = vadd.f32 0.0, %v900
    %v902 = vpop.f32.mrb[0].mxu0
    %v903 = vpop.f32.mrb[0].mxu0
    %v904 = vpop.f32.mrb[0].mxu0
    %905 = vdwg.mxu0
    %v906 = vadd.f32 %v148, %v901
    %v907 = vtanh.pop %v906
    %v908 = vpack.c.bf16 %v644, %v644
    %909 = vmatprep.subr.bf16.mxu0 0
    %910 = vmatpush1.bf16.msra.mxu0 %v366
    %911 = vmatprep.subr.bf16.mxu0 0
    %912 = vmatpush1.bf16.msra.mxu0 %v367
    %913 = vmatprep.subr.bf16.mxu0 0
    %914 = vmatpush1.bf16.msra.mxu0 %v368
    %915 = vmatprep.subr.bf16.mxu0 0
    %916 = vmatpush1.bf16.msra.mxu0 %v369
    %917 = vmatprep.subr.bf16.mxu0 0
    %918 = vmatpush1.bf16.msra.mxu0 %v370
    %919 = vmatprep.subr.bf16.mxu0 0
    %920 = vmatpush1.bf16.msra.mxu0 %v371
    %921 = vmatprep.subr.bf16.mxu0 0
    %922 = vmatpush1.bf16.msra.mxu0 %v372
    %923 = vmatprep.subr.bf16.mxu0 0
    %924 = vmatpush1.bf16.msra.mxu0 %v373
    %925 = vmatprep.subr.bf16.mxu0 0
    %926 = vmatpush1.bf16.msra.mxu0 0
    %927 = vmatprep.subr.bf16.mxu0 0
    %928 = vmatpush1.bf16.msra.mxu0 0
    %929 = vmatprep.subr.bf16.mxu0 0
    %930 = vmatpush1.bf16.msra.mxu0 0
    %931 = vmatprep.subr.bf16.mxu0 0
    %932 = vmatpush1.bf16.msra.mxu0 0
    %933 = vmatprep.subr.bf16.mxu0 0
    %934 = vmatpush1.bf16.msra.mxu0 0
    %935 = vmatprep.subr.bf16.mxu0 0
    %936 = vmatpush1.bf16.msra.mxu0 0
    %937 = vmatprep.subr.bf16.mxu0 0
    %938 = vmatpush1.bf16.msra.mxu0 0
    %939 = vmatprep.subr.bf16.mxu0 0
    %940 = vmatpush1.bf16.msra.mxu0 0
    %941 = vmatprep.mubr.bf16.mxu0 0
    %942 = vmatmul.mubr.bf16.gmra.mrb[0].mxu0 %v908
    %v943 = vpop.f32.mrb[0].mxu0
    %v944 = vadd.f32 0.0, %v943
    %v945 = vpop.f32.mrb[0].mxu0
    %v946 = vpop.f32.mrb[0].mxu0
    %v947 = vpop.f32.mrb[0].mxu0
    %948 = vdwg.mxu0
    %949 = vmatprep.subr.bf16.mxu0 0
    %950 = vmatpush1.bf16.msra.mxu0 %v454
    %951 = vmatprep.subr.bf16.mxu0 0
    %952 = vmatpush1.bf16.msra.mxu0 %v455
    %953 = vmatprep.subr.bf16.mxu0 0
    %954 = vmatpush1.bf16.msra.mxu0 %v456
    %955 = vmatprep.subr.bf16.mxu0 0
    %956 = vmatpush1.bf16.msra.mxu0 %v457
    %957 = vmatprep.subr.bf16.mxu0 0
    %958 = vmatpush1.bf16.msra.mxu0 %v458
    %959 = vmatprep.subr.bf16.mxu0 0
    %960 = vmatpush1.bf16.msra.mxu0 %v459
    %961 = vmatprep.subr.bf16.mxu0 0
    %962 = vmatpush1.bf16.msra.mxu0 %v460
    %963 = vmatprep.subr.bf16.mxu0 0
    %964 = vmatpush1.bf16.msra.mxu0 %v461
    %965 = vmatprep.subr.bf16.mxu0 0
    %966 = vmatpush1.bf16.msra.mxu0 0
    %967 = vmatprep.subr.bf16.mxu0 0
    %968 = vmatpush1.bf16.msra.mxu0 0
    %969 = vmatprep.subr.bf16.mxu0 0
    %970 = vmatpush1.bf16.msra.mxu0 0
    %971 = vmatprep.subr.bf16.mxu0 0
    %972 = vmatpush1.bf16.msra.mxu0 0
    %973 = vmatprep.subr.bf16.mxu0 0
    %974 = vmatpush1.bf16.msra.mxu0 0
    %975 = vmatprep.subr.bf16.mxu0 0
    %976 = vmatpush1.bf16.msra.mxu0 0
    %977 = vmatprep.subr.bf16.mxu0 0
    %978 = vmatpush1.bf16.msra.mxu0 0
    %979 = vmatprep.subr.bf16.mxu0 0
    %980 = vmatpush1.bf16.msra.mxu0 0
    %981 = vmatprep.mubr.bf16.mxu0 0
    %982 = vmatmul.mubr.bf16.gmra.mrb[0].mxu0 %v865
    %v983 = vpop.f32.mrb[0].mxu0
    %v984 = vadd.f32 %v944, %v983
    %v985 = vpop.f32.mrb[0].mxu0
    %v986 = vpop.f32.mrb[0].mxu0
    %v987 = vpop.f32.mrb[0].mxu0
    %988 = vdwg.mxu0
    %v989 = vadd.f32 %v984, %v515
    %v990 = vtanh.pop %v989
    %v991 = vpack.c.bf16 %v864, %v864
    %992 = vmatprep.subr.bf16.mxu0 0
    %993 = vmatpush1.bf16.msra.mxu0 %v711
    %994 = vmatprep.subr.bf16.mxu0 0
    %995 = vmatpush1.bf16.msra.mxu0 %v712
    %996 = vmatprep.subr.bf16.mxu0 0
    %997 = vmatpush1.bf16.msra.mxu0 %v713
    %998 = vmatprep.subr.bf16.mxu0 0
    %999 = vmatpush1.bf16.msra.mxu0 %v714
    %1000 = vmatprep.subr.bf16.mxu0 0
    %1001 = vmatpush1.bf16.msra.mxu0 %v715
    %1002 = vmatprep.subr.bf16.mxu0 0
    %1003 = vmatpush1.bf16.msra.mxu0 %v716
    %1004 = vmatprep.subr.bf16.mxu0 0
    %1005 = vmatpush1.bf16.msra.mxu0 %v717
    %1006 = vmatprep.subr.bf16.mxu0 0
    %1007 = vmatpush1.bf16.msra.mxu0 %v718
    %1008 = vmatprep.subr.bf16.mxu0 0
    %1009 = vmatpush1.bf16.msra.mxu0 0
    %1010 = vmatprep.subr.bf16.mxu0 0
    %1011 = vmatpush1.bf16.msra.mxu0 0
    %1012 = vmatprep.subr.bf16.mxu0 0
    %1013 = vmatpush1.bf16.msra.mxu0 0
    %1014 = vmatprep.subr.bf16.mxu0 0
    %1015 = vmatpush1.bf16.msra.mxu0 0
    %1016 = vmatprep.subr.bf16.mxu0 0
    %1017 = vmatpush1.bf16.msra.mxu0 0
    %1018 = vmatprep.subr.bf16.mxu0 0
    %1019 = vmatpush1.bf16.msra.mxu0 0
    %1020 = vmatprep.subr.bf16.mxu0 0
    %1021 = vmatpush1.bf16.msra.mxu0 0
    %1022 = vmatprep.subr.bf16.mxu0 0
    %1023 = vmatpush1.bf16.msra.mxu0 0
    %1024 = vmatprep.mubr.bf16.mxu0 0
    %1025 = vmatmul.mubr.bf16.gmra.mrb[0].mxu0 %v991
    %v1026 = vpop.f32.mrb[0].mxu0
    %v1027 = vadd.f32 0.0, %v1026
    %v1028 = vpop.f32.mrb[0].mxu0
    %v1029 = vpop.f32.mrb[0].mxu0
    %v1030 = vpop.f32.mrb[0].mxu0
    %1031 = vdwg.mxu0
    %1032 = vmatprep.subr.bf16.mxu0 0
    %1033 = vmatpush1.bf16.msra.mxu0 %v799
    %1034 = vmatprep.subr.bf16.mxu0 0
    %1035 = vmatpush1.bf16.msra.mxu0 %v800
    %1036 = vmatprep.subr.bf16.mxu0 0
    %1037 = vmatpush1.bf16.msra.mxu0 %v801
    %1038 = vmatprep.subr.bf16.mxu0 0
    %1039 = vmatpush1.bf16.msra.mxu0 %v802
    %1040 = vmatprep.subr.bf16.mxu0 0
    %1041 = vmatpush1.bf16.msra.mxu0 %v803
    %1042 = vmatprep.subr.bf16.mxu0 0
    %1043 = vmatpush1.bf16.msra.mxu0 %v804
    %1044 = vmatprep.subr.bf16.mxu0 0
    %1045 = vmatpush1.bf16.msra.mxu0 %v805
    %1046 = vmatprep.subr.bf16.mxu0 0
    %1047 = vmatpush1.bf16.msra.mxu0 %v806
    %1048 = vmatprep.subr.bf16.mxu0 0
    %1049 = vmatpush1.bf16.msra.mxu0 0
    %1050 = vmatprep.subr.bf16.mxu0 0
    %1051 = vmatpush1.bf16.msra.mxu0 0
    %1052 = vmatprep.subr.bf16.mxu0 0
    %1053 = vmatpush1.bf16.msra.mxu0 0
    %1054 = vmatprep.subr.bf16.mxu0 0
    %1055 = vmatpush1.bf16.msra.mxu0 0
    %1056 = vmatprep.subr.bf16.mxu0 0
    %1057 = vmatpush1.bf16.msra.mxu0 0
    %1058 = vmatprep.subr.bf16.mxu0 0
    %1059 = vmatpush1.bf16.msra.mxu0 0
    %1060 = vmatprep.subr.bf16.mxu0 0
    %1061 = vmatpush1.bf16.msra.mxu0 0
    %1062 = vmatprep.subr.bf16.mxu0 0
    %1063 = vmatpush1.bf16.msra.mxu0 0
    %1064 = vmatprep.mubr.bf16.mxu0 0
    %1065 = vmatmul.mubr.bf16.gmra.mrb[0].mxu0 %v908
    %v1066 = vpop.f32.mrb[0].mxu0
    %v1067 = vadd.f32 %v1027, %v1066
    %v1068 = vpop.f32.mrb[0].mxu0
    %v1069 = vpop.f32.mrb[0].mxu0
    %v1070 = vpop.f32.mrb[0].mxu0
    %1071 = vdwg.mxu0
    %v1072 = vadd.f32 %v1067, %v861
    %v1073 = vtanh.pop %v1072
    %s1074 = scalar_lea.vmem [#allocation2], 128
    %v1075 = vld [vmem:[%s1074] sm:$0xf]
    %v1076 = vld [vmem:[%s1074 + $0x4] sm:$0xf]
    %v1077 = vld [vmem:[%s1074 + $0x8] sm:$0xf]
    %v1078 = vld [vmem:[%s1074 + $0xc] sm:$0xf]
    %v1079 = vld [vmem:[%s1074 + $0x10] sm:$0xf]
    %v1080 = vld [vmem:[%s1074 + $0x14] sm:$0xf]
    %v1081 = vld [vmem:[%s1074 + $0x18] sm:$0xf]
    %v1082 = vld [vmem:[%s1074 + $0x1c] sm:$0xf]
    %v1083 = vld [vmem:[%s1074 + $0x20] sm:$0xf]
    %v1084 = vld [vmem:[%s1074 + $0x24] sm:$0xf]
    %v1085 = vld [vmem:[%s1074 + $0x28] sm:$0xf]
    %v1086 = vld [vmem:[%s1074 + $0x2c] sm:$0xf]
    %v1087 = vld [vmem:[%s1074 + $0x30] sm:$0xf]
    %v1088 = vld [vmem:[%s1074 + $0x34] sm:$0xf]
    %v1089 = vld [vmem:[%s1074 + $0x38] sm:$0xf]
    %v1090 = vld [vmem:[%s1074 + $0x3c] sm:$0xf]
    %s1091 = scalar_lea.vmem [#allocation5], 128
    %v1092 = vld [vmem:[%s1091] sm:$0xf]
    %v1093 = vld [vmem:[%s1091 + $0x4] sm:$0xf]
    %v1094 = vld [vmem:[%s1091 + $0x8] sm:$0xf]
    %v1095 = vld [vmem:[%s1091 + $0xc] sm:$0xf]
    %v1096 = vld [vmem:[%s1091 + $0x10] sm:$0xf]
    %v1097 = vld [vmem:[%s1091 + $0x14] sm:$0xf]
    %v1098 = vld [vmem:[%s1091 + $0x18] sm:$0xf]
    %v1099 = vld [vmem:[%s1091 + $0x1c] sm:$0xf]
    %v1100 = vld [vmem:[%s1091 + $0x20] sm:$0xf]
    %v1101 = vld [vmem:[%s1091 + $0x24] sm:$0xf]
    %v1102 = vld [vmem:[%s1091 + $0x28] sm:$0xf]
    %v1103 = vld [vmem:[%s1091 + $0x2c] sm:$0xf]
    %v1104 = vld [vmem:[%s1091 + $0x30] sm:$0xf]
    %v1105 = vld [vmem:[%s1091 + $0x34] sm:$0xf]
    %v1106 = vld [vmem:[%s1091 + $0x38] sm:$0xf]
    %v1107 = vld [vmem:[%s1091 + $0x3c] sm:$0xf]
    %v1124 = vunpack.c.l.b16 %v1092
    %v1125 = vunpack.c.l.b16 %v1093
    %v1126 = vunpack.c.l.b16 %v1094
    %v1127 = vunpack.c.l.b16 %v1095
    %v1128 = vunpack.c.l.b16 %v1096
    %v1129 = vunpack.c.l.b16 %v1097
    %v1130 = vunpack.c.l.b16 %v1098
    %v1131 = vunpack.c.l.b16 %v1099
    %v1132 = vunpack.c.l.b16 %v1100
    %v1133 = vunpack.c.l.b16 %v1101
    %v1134 = vunpack.c.l.b16 %v1102
    %v1135 = vunpack.c.l.b16 %v1103
    %v1136 = vunpack.c.l.b16 %v1104
    %v1137 = vunpack.c.l.b16 %v1105
    %v1138 = vunpack.c.l.b16 %v1106
    %v1139 = vunpack.c.l.b16 %v1107
    %v1140 = vpack.c.b16 %v1125, %v1124
    %v1141 = vpack.c.b16 %v1127, %v1126
    %v1142 = vpack.c.b16 %v1129, %v1128
    %v1143 = vpack.c.b16 %v1131, %v1130
    %v1144 = vpack.c.b16 %v1133, %v1132
    %v1145 = vpack.c.b16 %v1135, %v1134
    %v1146 = vpack.c.b16 %v1137, %v1136
    %v1147 = vpack.c.b16 %v1139, %v1138
    %1156 = vmatprep.subr.bf16.mxu0 0
    %1157 = vmatpush1.bf16.msra.mxu0 %v1140
    %1158 = vmatprep.subr.bf16.mxu0 0
    %1159 = vmatpush1.bf16.msra.mxu0 %v1141
    %1160 = vmatprep.subr.bf16.mxu0 0
    %1161 = vmatpush1.bf16.msra.mxu0 %v1142
    %1162 = vmatprep.subr.bf16.mxu0 0
    %1163 = vmatpush1.bf16.msra.mxu0 %v1143
    %1164 = vmatprep.subr.bf16.mxu0 0
    %1165 = vmatpush1.bf16.msra.mxu0 %v1144
    %1166 = vmatprep.subr.bf16.mxu0 0
    %1167 = vmatpush1.bf16.msra.mxu0 %v1145
    %1168 = vmatprep.subr.bf16.mxu0 0
    %1169 = vmatpush1.bf16.msra.mxu0 %v1146
    %1170 = vmatprep.subr.bf16.mxu0 0
    %1171 = vmatpush1.bf16.msra.mxu0 %v1147
    %1172 = vmatprep.subr.bf16.mxu0 0
    %1173 = vmatpush1.bf16.msra.mxu0 0
    %1174 = vmatprep.subr.bf16.mxu0 0
    %1175 = vmatpush1.bf16.msra.mxu0 0
    %1176 = vmatprep.subr.bf16.mxu0 0
    %1177 = vmatpush1.bf16.msra.mxu0 0
    %1178 = vmatprep.subr.bf16.mxu0 0
    %1179 = vmatpush1.bf16.msra.mxu0 0
    %1180 = vmatprep.subr.bf16.mxu0 0
    %1181 = vmatpush1.bf16.msra.mxu0 0
    %1182 = vmatprep.subr.bf16.mxu0 0
    %1183 = vmatpush1.bf16.msra.mxu0 0
    %1184 = vmatprep.subr.bf16.mxu0 0
    %1185 = vmatpush1.bf16.msra.mxu0 0
    %1186 = vmatprep.subr.bf16.mxu0 0
    %1187 = vmatpush1.bf16.msra.mxu0 0
    %1188 = vmatprep.mubr.bf16.mxu0 0
    %1189 = vmatmul.mubr.bf16.gmra.mrb[0].mxu0 0
    %v1190 = vpop.f32.mrb[0].mxu0
    %v1191 = vadd.f32 0.0, %v1190
    %v1192 = vpop.f32.mrb[0].mxu0
    %v1193 = vpop.f32.mrb[0].mxu0
    %v1194 = vpop.f32.mrb[0].mxu0
    %1195 = vdwg.mxu0
    %v1212 = vunpack.c.l.b16 %v1075
    %v1213 = vunpack.c.l.b16 %v1076
    %v1214 = vunpack.c.l.b16 %v1077
    %v1215 = vunpack.c.l.b16 %v1078
    %v1216 = vunpack.c.l.b16 %v1079
    %v1217 = vunpack.c.l.b16 %v1080
    %v1218 = vunpack.c.l.b16 %v1081
    %v1219 = vunpack.c.l.b16 %v1082
    %v1220 = vunpack.c.l.b16 %v1083
    %v1221 = vunpack.c.l.b16 %v1084
    %v1222 = vunpack.c.l.b16 %v1085
    %v1223 = vunpack.c.l.b16 %v1086
    %v1224 = vunpack.c.l.b16 %v1087
    %v1225 = vunpack.c.l.b16 %v1088
    %v1226 = vunpack.c.l.b16 %v1089
    %v1227 = vunpack.c.l.b16 %v1090
    %v1228 = vpack.c.b16 %v1213, %v1212
    %v1229 = vpack.c.b16 %v1215, %v1214
    %v1230 = vpack.c.b16 %v1217, %v1216
    %v1231 = vpack.c.b16 %v1219, %v1218
    %v1232 = vpack.c.b16 %v1221, %v1220
    %v1233 = vpack.c.b16 %v1223, %v1222
    %v1234 = vpack.c.b16 %v1225, %v1224
    %v1235 = vpack.c.b16 %v1227, %v1226
    %1244 = vmatprep.subr.bf16.mxu0 0
    %1245 = vmatpush1.bf16.msra.mxu0 %v1228
    %1246 = vmatprep.subr.bf16.mxu0 0
    %1247 = vmatpush1.bf16.msra.mxu0 %v1229
    %1248 = vmatprep.subr.bf16.mxu0 0
    %1249 = vmatpush1.bf16.msra.mxu0 %v1230
    %1250 = vmatprep.subr.bf16.mxu0 0
    %1251 = vmatpush1.bf16.msra.mxu0 %v1231
    %1252 = vmatprep.subr.bf16.mxu0 0
    %1253 = vmatpush1.bf16.msra.mxu0 %v1232
    %1254 = vmatprep.subr.bf16.mxu0 0
    %1255 = vmatpush1.bf16.msra.mxu0 %v1233
    %1256 = vmatprep.subr.bf16.mxu0 0
    %1257 = vmatpush1.bf16.msra.mxu0 %v1234
    %1258 = vmatprep.subr.bf16.mxu0 0
    %1259 = vmatpush1.bf16.msra.mxu0 %v1235
    %1260 = vmatprep.subr.bf16.mxu0 0
    %1261 = vmatpush1.bf16.msra.mxu0 0
    %1262 = vmatprep.subr.bf16.mxu0 0
    %1263 = vmatpush1.bf16.msra.mxu0 0
    %1264 = vmatprep.subr.bf16.mxu0 0
    %1265 = vmatpush1.bf16.msra.mxu0 0
    %1266 = vmatprep.subr.bf16.mxu0 0
    %1267 = vmatpush1.bf16.msra.mxu0 0
    %1268 = vmatprep.subr.bf16.mxu0 0
    %1269 = vmatpush1.bf16.msra.mxu0 0
    %1270 = vmatprep.subr.bf16.mxu0 0
    %1271 = vmatpush1.bf16.msra.mxu0 0
    %1272 = vmatprep.subr.bf16.mxu0 0
    %1273 = vmatpush1.bf16.msra.mxu0 0
    %1274 = vmatprep.subr.bf16.mxu0 0
    %1275 = vmatpush1.bf16.msra.mxu0 0
    %1276 = vmatprep.mubr.bf16.mxu0 0
    %1277 = vmatmul.mubr.bf16.gmra.mrb[0].mxu0 %v991
    %v1278 = vpop.f32.mrb[0].mxu0
    %v1279 = vadd.f32 %v1191, %v1278
    %v1280 = vpop.f32.mrb[0].mxu0
    %v1281 = vpop.f32.mrb[0].mxu0
    %v1282 = vpop.f32.mrb[0].mxu0
    %1283 = vdwg.mxu0
    %s1284 = scalar_lea.vmem %s6, 2
    %v1285 = vld [vmem:[%s1284] sm:$0x1]
    %v1287 = vlaneseq
    %v1288 = vshrl.u32 %v1287, 7
    %v1289 = vsub.s32 0, %v1288
    %v1290 = vrot.slane %v1285, %v1289
    %v1292 = vadd.f32 %v1279, %v1290
    %v1293 = vtanh.pop %v1292
    %v1294 = vpack.c.bf16 %v907, %v907
    %1295 = vmatprep.subr.bf16.mxu0 0
    %1296 = vmatpush1.bf16.msra.mxu0 %v201
    %1297 = vmatprep.subr.bf16.mxu0 0
    %1298 = vmatpush1.bf16.msra.mxu0 %v202
    %1299 = vmatprep.subr.bf16.mxu0 0
    %1300 = vmatpush1.bf16.msra.mxu0 %v203
    %1301 = vmatprep.subr.bf16.mxu0 0
    %1302 = vmatpush1.bf16.msra.mxu0 %v204
    %1303 = vmatprep.subr.bf16.mxu0 0
    %1304 = vmatpush1.bf16.msra.mxu0 %v205
    %1305 = vmatprep.subr.bf16.mxu0 0
    %1306 = vmatpush1.bf16.msra.mxu0 %v206
    %1307 = vmatprep.subr.bf16.mxu0 0
    %1308 = vmatpush1.bf16.msra.mxu0 %v207
    %1309 = vmatprep.subr.bf16.mxu0 0
    %1310 = vmatpush1.bf16.msra.mxu0 %v208
    %1311 = vmatprep.subr.bf16.mxu0 0
    %1312 = vmatpush1.bf16.msra.mxu0 0
    %1313 = vmatprep.subr.bf16.mxu0 0
    %1314 = vmatpush1.bf16.msra.mxu0 0
    %1315 = vmatprep.subr.bf16.mxu0 0
    %1316 = vmatpush1.bf16.msra.mxu0 0
    %1317 = vmatprep.subr.bf16.mxu0 0
    %1318 = vmatpush1.bf16.msra.mxu0 0
    %1319 = vmatprep.subr.bf16.mxu0 0
    %1320 = vmatpush1.bf16.msra.mxu0 0
    %1321 = vmatprep.subr.bf16.mxu0 0
    %1322 = vmatpush1.bf16.msra.mxu0 0
    %1323 = vmatprep.subr.bf16.mxu0 0
    %1324 = vmatpush1.bf16.msra.mxu0 0
    %1325 = vmatprep.subr.bf16.mxu0 0
    %1326 = vmatpush1.bf16.msra.mxu0 0
    %1327 = vmatprep.mubr.bf16.mxu0 0
    %1328 = vmatmul.mubr.bf16.gmra.mrb[0].mxu0 %v1294
    %v1329 = vpop.f32.mrb[0].mxu0
    %v1330 = vadd.f32 0.0, %v1329
    %v1331 = vpop.f32.mrb[0].mxu0
    %v1332 = vpop.f32.mrb[0].mxu0
    %v1333 = vpop.f32.mrb[0].mxu0
    %1334 = vdwg.mxu0
    %v1335 = vadd.f32 %v149, %v1330
    %v1336 = vtanh.pop %v1335
    %v1337 = vpack.c.bf16 %v990, %v990
    %1338 = vmatprep.subr.bf16.mxu0 0
    %1339 = vmatpush1.bf16.msra.mxu0 %v366
    %1340 = vmatprep.subr.bf16.mxu0 0
    %1341 = vmatpush1.bf16.msra.mxu0 %v367
    %1342 = vmatprep.subr.bf16.mxu0 0
    %1343 = vmatpush1.bf16.msra.mxu0 %v368
    %1344 = vmatprep.subr.bf16.mxu0 0
    %1345 = vmatpush1.bf16.msra.mxu0 %v369
    %1346 = vmatprep.subr.bf16.mxu0 0
    %1347 = vmatpush1.bf16.msra.mxu0 %v370
    %1348 = vmatprep.subr.bf16.mxu0 0
    %1349 = vmatpush1.bf16.msra.mxu0 %v371
    %1350 = vmatprep.subr.bf16.mxu0 0
    %1351 = vmatpush1.bf16.msra.mxu0 %v372
    %1352 = vmatprep.subr.bf16.mxu0 0
    %1353 = vmatpush1.bf16.msra.mxu0 %v373
    %1354 = vmatprep.subr.bf16.mxu0 0
    %1355 = vmatpush1.bf16.msra.mxu0 0
    %1356 = vmatprep.subr.bf16.mxu0 0
    %1357 = vmatpush1.bf16.msra.mxu0 0
    %1358 = vmatprep.subr.bf16.mxu0 0
    %1359 = vmatpush1.bf16.msra.mxu0 0
    %1360 = vmatprep.subr.bf16.mxu0 0
    %1361 = vmatpush1.bf16.msra.mxu0 0
    %1362 = vmatprep.subr.bf16.mxu0 0
    %1363 = vmatpush1.bf16.msra.mxu0 0
    %1364 = vmatprep.subr.bf16.mxu0 0
    %1365 = vmatpush1.bf16.msra.mxu0 0
    %1366 = vmatprep.subr.bf16.mxu0 0
    %1367 = vmatpush1.bf16.msra.mxu0 0
    %1368 = vmatprep.subr.bf16.mxu0 0
    %1369 = vmatpush1.bf16.msra.mxu0 0
    %1370 = vmatprep.mubr.bf16.mxu0 0
    %1371 = vmatmul.mubr.bf16.gmra.mrb[0].mxu0 %v1337
    %v1372 = vpop.f32.mrb[0].mxu0
    %v1373 = vadd.f32 0.0, %v1372
    %v1374 = vpop.f32.mrb[0].mxu0
    %v1375 = vpop.f32.mrb[0].mxu0
    %v1376 = vpop.f32.mrb[0].mxu0
    %1377 = vdwg.mxu0
    %1378 = vmatprep.subr.bf16.mxu0 0
    %1379 = vmatpush1.bf16.msra.mxu0 %v454
    %1380 = vmatprep.subr.bf16.mxu0 0
    %1381 = vmatpush1.bf16.msra.mxu0 %v455
    %1382 = vmatprep.subr.bf16.mxu0 0
    %1383 = vmatpush1.bf16.msra.mxu0 %v456
    %1384 = vmatprep.subr.bf16.mxu0 0
    %1385 = vmatpush1.bf16.msra.mxu0 %v457
    %1386 = vmatprep.subr.bf16.mxu0 0
    %1387 = vmatpush1.bf16.msra.mxu0 %v458
    %1388 = vmatprep.subr.bf16.mxu0 0
    %1389 = vmatpush1.bf16.msra.mxu0 %v459
    %1390 = vmatprep.subr.bf16.mxu0 0
    %1391 = vmatpush1.bf16.msra.mxu0 %v460
    %1392 = vmatprep.subr.bf16.mxu0 0
    %1393 = vmatpush1.bf16.msra.mxu0 %v461
    %1394 = vmatprep.subr.bf16.mxu0 0
    %1395 = vmatpush1.bf16.msra.mxu0 0
    %1396 = vmatprep.subr.bf16.mxu0 0
    %1397 = vmatpush1.bf16.msra.mxu0 0
    %1398 = vmatprep.subr.bf16.mxu0 0
    %1399 = vmatpush1.bf16.msra.mxu0 0
    %1400 = vmatprep.subr.bf16.mxu0 0
    %1401 = vmatpush1.bf16.msra.mxu0 0
    %1402 = vmatprep.subr.bf16.mxu0 0
    %1403 = vmatpush1.bf16.msra.mxu0 0
    %1404 = vmatprep.subr.bf16.mxu0 0
    %1405 = vmatpush1.bf16.msra.mxu0 0
    %1406 = vmatprep.subr.bf16.mxu0 0
    %1407 = vmatpush1.bf16.msra.mxu0 0
    %1408 = vmatprep.subr.bf16.mxu0 0
    %1409 = vmatpush1.bf16.msra.mxu0 0
    %1410 = vmatprep.mubr.bf16.mxu0 0
    %1411 = vmatmul.mubr.bf16.gmra.mrb[0].mxu0 %v1294
    %v1412 = vpop.f32.mrb[0].mxu0
    %v1413 = vadd.f32 %v1373, %v1412
    %v1414 = vpop.f32.mrb[0].mxu0
    %v1415 = vpop.f32.mrb[0].mxu0
    %v1416 = vpop.f32.mrb[0].mxu0
    %1417 = vdwg.mxu0
    %v1418 = vadd.f32 %v1413, %v515
    %v1419 = vtanh.pop %v1418
    %v1420 = vpack.c.bf16 %v1073, %v1073
    %1421 = vmatprep.subr.bf16.mxu0 0
    %1422 = vmatpush1.bf16.msra.mxu0 %v711
    %1423 = vmatprep.subr.bf16.mxu0 0
    %1424 = vmatpush1.bf16.msra.mxu0 %v712
    %1425 = vmatprep.subr.bf16.mxu0 0
    %1426 = vmatpush1.bf16.msra.mxu0 %v713
    %1427 = vmatprep.subr.bf16.mxu0 0
    %1428 = vmatpush1.bf16.msra.mxu0 %v714
    %1429 = vmatprep.subr.bf16.mxu0 0
    %1430 = vmatpush1.bf16.msra.mxu0 %v715
    %1431 = vmatprep.subr.bf16.mxu0 0
    %1432 = vmatpush1.bf16.msra.mxu0 %v716
    %1433 = vmatprep.subr.bf16.mxu0 0
    %1434 = vmatpush1.bf16.msra.mxu0 %v717
    %1435 = vmatprep.subr.bf16.mxu0 0
    %1436 = vmatpush1.bf16.msra.mxu0 %v718
    %1437 = vmatprep.subr.bf16.mxu0 0
    %1438 = vmatpush1.bf16.msra.mxu0 0
    %1439 = vmatprep.subr.bf16.mxu0 0
    %1440 = vmatpush1.bf16.msra.mxu0 0
    %1441 = vmatprep.subr.bf16.mxu0 0
    %1442 = vmatpush1.bf16.msra.mxu0 0
    %1443 = vmatprep.subr.bf16.mxu0 0
    %1444 = vmatpush1.bf16.msra.mxu0 0
    %1445 = vmatprep.subr.bf16.mxu0 0
    %1446 = vmatpush1.bf16.msra.mxu0 0
    %1447 = vmatprep.subr.bf16.mxu0 0
    %1448 = vmatpush1.bf16.msra.mxu0 0
    %1449 = vmatprep.subr.bf16.mxu0 0
    %1450 = vmatpush1.bf16.msra.mxu0 0
    %1451 = vmatprep.subr.bf16.mxu0 0
    %1452 = vmatpush1.bf16.msra.mxu0 0
    %1453 = vmatprep.mubr.bf16.mxu0 0
    %1454 = vmatmul.mubr.bf16.gmra.mrb[0].mxu0 %v1420
    %v1455 = vpop.f32.mrb[0].mxu0
    %v1456 = vadd.f32 0.0, %v1455
    %v1457 = vpop.f32.mrb[0].mxu0
    %v1458 = vpop.f32.mrb[0].mxu0
    %v1459 = vpop.f32.mrb[0].mxu0
    %1460 = vdwg.mxu0
    %1461 = vmatprep.subr.bf16.mxu0 0
    %1462 = vmatpush1.bf16.msra.mxu0 %v799
    %1463 = vmatprep.subr.bf16.mxu0 0
    %1464 = vmatpush1.bf16.msra.mxu0 %v800
    %1465 = vmatprep.subr.bf16.mxu0 0
    %1466 = vmatpush1.bf16.msra.mxu0 %v801
    %1467 = vmatprep.subr.bf16.mxu0 0
    %1468 = vmatpush1.bf16.msra.mxu0 %v802
    %1469 = vmatprep.subr.bf16.mxu0 0
    %1470 = vmatpush1.bf16.msra.mxu0 %v803
    %1471 = vmatprep.subr.bf16.mxu0 0
    %1472 = vmatpush1.bf16.msra.mxu0 %v804
    %1473 = vmatprep.subr.bf16.mxu0 0
    %1474 = vmatpush1.bf16.msra.mxu0 %v805
    %1475 = vmatprep.subr.bf16.mxu0 0
    %1476 = vmatpush1.bf16.msra.mxu0 %v806
    %1477 = vmatprep.subr.bf16.mxu0 0
    %1478 = vmatpush1.bf16.msra.mxu0 0
    %1479 = vmatprep.subr.bf16.mxu0 0
    %1480 = vmatpush1.bf16.msra.mxu0 0
    %1481 = vmatprep.subr.bf16.mxu0 0
    %1482 = vmatpush1.bf16.msra.mxu0 0
    %1483 = vmatprep.subr.bf16.mxu0 0
    %1484 = vmatpush1.bf16.msra.mxu0 0
    %1485 = vmatprep.subr.bf16.mxu0 0
    %1486 = vmatpush1.bf16.msra.mxu0 0
    %1487 = vmatprep.subr.bf16.mxu0 0
    %1488 = vmatpush1.bf16.msra.mxu0 0
    %1489 = vmatprep.subr.bf16.mxu0 0
    %1490 = vmatpush1.bf16.msra.mxu0 0
    %1491 = vmatprep.subr.bf16.mxu0 0
    %1492 = vmatpush1.bf16.msra.mxu0 0
    %1493 = vmatprep.mubr.bf16.mxu0 0
    %1494 = vmatmul.mubr.bf16.gmra.mrb[0].mxu0 %v1337
    %v1495 = vpop.f32.mrb[0].mxu0
    %v1496 = vadd.f32 %v1456, %v1495
    %v1497 = vpop.f32.mrb[0].mxu0
    %v1498 = vpop.f32.mrb[0].mxu0
    %v1499 = vpop.f32.mrb[0].mxu0
    %1500 = vdwg.mxu0
    %v1501 = vadd.f32 %v1496, %v861
    %v1502 = vtanh.pop %v1501
    %v1503 = vpack.c.bf16 %v1293, %v1293
    %1504 = vmatprep.subr.bf16.mxu0 0
    %1505 = vmatpush1.bf16.msra.mxu0 %v1140
    %1506 = vmatprep.subr.bf16.mxu0 0
    %1507 = vmatpush1.bf16.msra.mxu0 %v1141
    %1508 = vmatprep.subr.bf16.mxu0 0
    %1509 = vmatpush1.bf16.msra.mxu0 %v1142
    %1510 = vmatprep.subr.bf16.mxu0 0
    %1511 = vmatpush1.bf16.msra.mxu0 %v1143
    %1512 = vmatprep.subr.bf16.mxu0 0
    %1513 = vmatpush1.bf16.msra.mxu0 %v1144
    %1514 = vmatprep.subr.bf16.mxu0 0
    %1515 = vmatpush1.bf16.msra.mxu0 %v1145
    %1516 = vmatprep.subr.bf16.mxu0 0
    %1517 = vmatpush1.bf16.msra.mxu0 %v1146
    %1518 = vmatprep.subr.bf16.mxu0 0
    %1519 = vmatpush1.bf16.msra.mxu0 %v1147
    %1520 = vmatprep.subr.bf16.mxu0 0
    %1521 = vmatpush1.bf16.msra.mxu0 0
    %1522 = vmatprep.subr.bf16.mxu0 0
    %1523 = vmatpush1.bf16.msra.mxu0 0
    %1524 = vmatprep.subr.bf16.mxu0 0
    %1525 = vmatpush1.bf16.msra.mxu0 0
    %1526 = vmatprep.subr.bf16.mxu0 0
    %1527 = vmatpush1.bf16.msra.mxu0 0
    %1528 = vmatprep.subr.bf16.mxu0 0
    %1529 = vmatpush1.bf16.msra.mxu0 0
    %1530 = vmatprep.subr.bf16.mxu0 0
    %1531 = vmatpush1.bf16.msra.mxu0 0
    %1532 = vmatprep.subr.bf16.mxu0 0
    %1533 = vmatpush1.bf16.msra.mxu0 0
    %1534 = vmatprep.subr.bf16.mxu0 0
    %1535 = vmatpush1.bf16.msra.mxu0 0
    %1536 = vmatprep.mubr.bf16.mxu0 0
    %1537 = vmatmul.mubr.bf16.gmra.mrb[0].mxu0 %v1503
    %v1538 = vpop.f32.mrb[0].mxu0
    %v1539 = vadd.f32 0.0, %v1538
    %v1540 = vpop.f32.mrb[0].mxu0
    %v1541 = vpop.f32.mrb[0].mxu0
    %v1542 = vpop.f32.mrb[0].mxu0
    %1543 = vdwg.mxu0
    %1544 = vmatprep.subr.bf16.mxu0 0
    %1545 = vmatpush1.bf16.msra.mxu0 %v1228
    %1546 = vmatprep.subr.bf16.mxu0 0
    %1547 = vmatpush1.bf16.msra.mxu0 %v1229
    %1548 = vmatprep.subr.bf16.mxu0 0
    %1549 = vmatpush1.bf16.msra.mxu0 %v1230
    %1550 = vmatprep.subr.bf16.mxu0 0
    %1551 = vmatpush1.bf16.msra.mxu0 %v1231
    %1552 = vmatprep.subr.bf16.mxu0 0
    %1553 = vmatpush1.bf16.msra.mxu0 %v1232
    %1554 = vmatprep.subr.bf16.mxu0 0
    %1555 = vmatpush1.bf16.msra.mxu0 %v1233
    %1556 = vmatprep.subr.bf16.mxu0 0
    %1557 = vmatpush1.bf16.msra.mxu0 %v1234
    %1558 = vmatprep.subr.bf16.mxu0 0
    %1559 = vmatpush1.bf16.msra.mxu0 %v1235
    %1560 = vmatprep.subr.bf16.mxu0 0
    %1561 = vmatpush1.bf16.msra.mxu0 0
    %1562 = vmatprep.subr.bf16.mxu0 0
    %1563 = vmatpush1.bf16.msra.mxu0 0
    %1564 = vmatprep.subr.bf16.mxu0 0
    %1565 = vmatpush1.bf16.msra.mxu0 0
    %1566 = vmatprep.subr.bf16.mxu0 0
    %1567 = vmatpush1.bf16.msra.mxu0 0
    %1568 = vmatprep.subr.bf16.mxu0 0
    %1569 = vmatpush1.bf16.msra.mxu0 0
    %1570 = vmatprep.subr.bf16.mxu0 0
    %1571 = vmatpush1.bf16.msra.mxu0 0
    %1572 = vmatprep.subr.bf16.mxu0 0
    %1573 = vmatpush1.bf16.msra.mxu0 0
    %1574 = vmatprep.subr.bf16.mxu0 0
    %1575 = vmatpush1.bf16.msra.mxu0 0
    %1576 = vmatprep.mubr.bf16.mxu0 0
    %1577 = vmatmul.mubr.bf16.gmra.mrb[0].mxu0 %v1420
    %v1578 = vpop.f32.mrb[0].mxu0
    %v1579 = vadd.f32 %v1539, %v1578
    %v1580 = vpop.f32.mrb[0].mxu0
    %v1581 = vpop.f32.mrb[0].mxu0
    %v1582 = vpop.f32.mrb[0].mxu0
    %1583 = vdwg.mxu0
    %v1584 = vadd.f32 %v1579, %v1290
    %v1585 = vtanh.pop %v1584
    %v1586 = vpack.c.bf16 %v1336, %v1336
    %1587 = vmatprep.subr.bf16.mxu0 0
    %1588 = vmatpush1.bf16.msra.mxu0 %v201
    %1589 = vmatprep.subr.bf16.mxu0 0
    %1590 = vmatpush1.bf16.msra.mxu0 %v202
    %1591 = vmatprep.subr.bf16.mxu0 0
    %1592 = vmatpush1.bf16.msra.mxu0 %v203
    %1593 = vmatprep.subr.bf16.mxu0 0
    %1594 = vmatpush1.bf16.msra.mxu0 %v204
    %1595 = vmatprep.subr.bf16.mxu0 0
    %1596 = vmatpush1.bf16.msra.mxu0 %v205
    %1597 = vmatprep.subr.bf16.mxu0 0
    %1598 = vmatpush1.bf16.msra.mxu0 %v206
    %1599 = vmatprep.subr.bf16.mxu0 0
    %1600 = vmatpush1.bf16.msra.mxu0 %v207
    %1601 = vmatprep.subr.bf16.mxu0 0
    %1602 = vmatpush1.bf16.msra.mxu0 %v208
    %1603 = vmatprep.subr.bf16.mxu0 0
    %1604 = vmatpush1.bf16.msra.mxu0 0
    %1605 = vmatprep.subr.bf16.mxu0 0
    %1606 = vmatpush1.bf16.msra.mxu0 0
    %1607 = vmatprep.subr.bf16.mxu0 0
    %1608 = vmatpush1.bf16.msra.mxu0 0
    %1609 = vmatprep.subr.bf16.mxu0 0
    %1610 = vmatpush1.bf16.msra.mxu0 0
    %1611 = vmatprep.subr.bf16.mxu0 0
    %1612 = vmatpush1.bf16.msra.mxu0 0
    %1613 = vmatprep.subr.bf16.mxu0 0
    %1614 = vmatpush1.bf16.msra.mxu0 0
    %1615 = vmatprep.subr.bf16.mxu0 0
    %1616 = vmatpush1.bf16.msra.mxu0 0
    %1617 = vmatprep.subr.bf16.mxu0 0
    %1618 = vmatpush1.bf16.msra.mxu0 0
    %1619 = vmatprep.mubr.bf16.mxu0 0
    %1620 = vmatmul.mubr.bf16.gmra.mrb[0].mxu0 %v1586
    %v1621 = vpop.f32.mrb[0].mxu0
    %v1622 = vadd.f32 0.0, %v1621
    %v1623 = vpop.f32.mrb[0].mxu0
    %v1624 = vpop.f32.mrb[0].mxu0
    %v1625 = vpop.f32.mrb[0].mxu0
    %1626 = vdwg.mxu0
    %v1627 = vadd.f32 %v150, %v1622
    %v1628 = vtanh.pop %v1627
    %v1629 = vpack.c.bf16 %v1419, %v1419
    %1630 = vmatprep.subr.bf16.mxu0 0
    %1631 = vmatpush1.bf16.msra.mxu0 %v366
    %1632 = vmatprep.subr.bf16.mxu0 0
    %1633 = vmatpush1.bf16.msra.mxu0 %v367
    %1634 = vmatprep.subr.bf16.mxu0 0
    %1635 = vmatpush1.bf16.msra.mxu0 %v368
    %1636 = vmatprep.subr.bf16.mxu0 0
    %1637 = vmatpush1.bf16.msra.mxu0 %v369
    %1638 = vmatprep.subr.bf16.mxu0 0
    %1639 = vmatpush1.bf16.msra.mxu0 %v370
    %1640 = vmatprep.subr.bf16.mxu0 0
    %1641 = vmatpush1.bf16.msra.mxu0 %v371
    %1642 = vmatprep.subr.bf16.mxu0 0
    %1643 = vmatpush1.bf16.msra.mxu0 %v372
    %1644 = vmatprep.subr.bf16.mxu0 0
    %1645 = vmatpush1.bf16.msra.mxu0 %v373
    %1646 = vmatprep.subr.bf16.mxu0 0
    %1647 = vmatpush1.bf16.msra.mxu0 0
    %1648 = vmatprep.subr.bf16.mxu0 0
    %1649 = vmatpush1.bf16.msra.mxu0 0
    %1650 = vmatprep.subr.bf16.mxu0 0
    %1651 = vmatpush1.bf16.msra.mxu0 0
    %1652 = vmatprep.subr.bf16.mxu0 0
    %1653 = vmatpush1.bf16.msra.mxu0 0
    %1654 = vmatprep.subr.bf16.mxu0 0
    %1655 = vmatpush1.bf16.msra.mxu0 0
    %1656 = vmatprep.subr.bf16.mxu0 0
    %1657 = vmatpush1.bf16.msra.mxu0 0
    %1658 = vmatprep.subr.bf16.mxu0 0
    %1659 = vmatpush1.bf16.msra.mxu0 0
    %1660 = vmatprep.subr.bf16.mxu0 0
    %1661 = vmatpush1.bf16.msra.mxu0 0
    %1662 = vmatprep.mubr.bf16.mxu0 0
    %1663 = vmatmul.mubr.bf16.gmra.mrb[0].mxu0 %v1629
    %v1664 = vpop.f32.mrb[0].mxu0
    %v1665 = vadd.f32 0.0, %v1664
    %v1666 = vpop.f32.mrb[0].mxu0
    %v1667 = vpop.f32.mrb[0].mxu0
    %v1668 = vpop.f32.mrb[0].mxu0
    %1669 = vdwg.mxu0
    %1670 = vmatprep.subr.bf16.mxu0 0
    %1671 = vmatpush1.bf16.msra.mxu0 %v454
    %1672 = vmatprep.subr.bf16.mxu0 0
    %1673 = vmatpush1.bf16.msra.mxu0 %v455
    %1674 = vmatprep.subr.bf16.mxu0 0
    %1675 = vmatpush1.bf16.msra.mxu0 %v456
    %1676 = vmatprep.subr.bf16.mxu0 0
    %1677 = vmatpush1.bf16.msra.mxu0 %v457
    %1678 = vmatprep.subr.bf16.mxu0 0
    %1679 = vmatpush1.bf16.msra.mxu0 %v458
    %1680 = vmatprep.subr.bf16.mxu0 0
    %1681 = vmatpush1.bf16.msra.mxu0 %v459
    %1682 = vmatprep.subr.bf16.mxu0 0
    %1683 = vmatpush1.bf16.msra.mxu0 %v460
    %1684 = vmatprep.subr.bf16.mxu0 0
    %1685 = vmatpush1.bf16.msra.mxu0 %v461
    %1686 = vmatprep.subr.bf16.mxu0 0
    %1687 = vmatpush1.bf16.msra.mxu0 0
    %1688 = vmatprep.subr.bf16.mxu0 0
    %1689 = vmatpush1.bf16.msra.mxu0 0
    %1690 = vmatprep.subr.bf16.mxu0 0
    %1691 = vmatpush1.bf16.msra.mxu0 0
    %1692 = vmatprep.subr.bf16.mxu0 0
    %1693 = vmatpush1.bf16.msra.mxu0 0
    %1694 = vmatprep.subr.bf16.mxu0 0
    %1695 = vmatpush1.bf16.msra.mxu0 0
    %1696 = vmatprep.subr.bf16.mxu0 0
    %1697 = vmatpush1.bf16.msra.mxu0 0
    %1698 = vmatprep.subr.bf16.mxu0 0
    %1699 = vmatpush1.bf16.msra.mxu0 0
    %1700 = vmatprep.subr.bf16.mxu0 0
    %1701 = vmatpush1.bf16.msra.mxu0 0
    %1702 = vmatprep.mubr.bf16.mxu0 0
    %1703 = vmatmul.mubr.bf16.gmra.mrb[0].mxu0 %v1586
    %v1704 = vpop.f32.mrb[0].mxu0
    %v1705 = vadd.f32 %v1665, %v1704
    %v1706 = vpop.f32.mrb[0].mxu0
    %v1707 = vpop.f32.mrb[0].mxu0
    %v1708 = vpop.f32.mrb[0].mxu0
    %1709 = vdwg.mxu0
    %v1710 = vadd.f32 %v1705, %v515
    %v1711 = vtanh.pop %v1710
    %v1712 = vpack.c.bf16 %v1502, %v1502
    %1713 = vmatprep.subr.bf16.mxu0 0
    %1714 = vmatpush1.bf16.msra.mxu0 %v711
    %1715 = vmatprep.subr.bf16.mxu0 0
    %1716 = vmatpush1.bf16.msra.mxu0 %v712
    %1717 = vmatprep.subr.bf16.mxu0 0
    %1718 = vmatpush1.bf16.msra.mxu0 %v713
    %1719 = vmatprep.subr.bf16.mxu0 0
    %1720 = vmatpush1.bf16.msra.mxu0 %v714
    %1721 = vmatprep.subr.bf16.mxu0 0
    %1722 = vmatpush1.bf16.msra.mxu0 %v715
    %1723 = vmatprep.subr.bf16.mxu0 0
    %1724 = vmatpush1.bf16.msra.mxu0 %v716
    %1725 = vmatprep.subr.bf16.mxu0 0
    %1726 = vmatpush1.bf16.msra.mxu0 %v717
    %1727 = vmatprep.subr.bf16.mxu0 0
    %1728 = vmatpush1.bf16.msra.mxu0 %v718
    %1729 = vmatprep.subr.bf16.mxu0 0
    %1730 = vmatpush1.bf16.msra.mxu0 0
    %1731 = vmatprep.subr.bf16.mxu0 0
    %1732 = vmatpush1.bf16.msra.mxu0 0
    %1733 = vmatprep.subr.bf16.mxu0 0
    %1734 = vmatpush1.bf16.msra.mxu0 0
    %1735 = vmatprep.subr.bf16.mxu0 0
    %1736 = vmatpush1.bf16.msra.mxu0 0
    %1737 = vmatprep.subr.bf16.mxu0 0
    %1738 = vmatpush1.bf16.msra.mxu0 0
    %1739 = vmatprep.subr.bf16.mxu0 0
    %1740 = vmatpush1.bf16.msra.mxu0 0
    %1741 = vmatprep.subr.bf16.mxu0 0
    %1742 = vmatpush1.bf16.msra.mxu0 0
    %1743 = vmatprep.subr.bf16.mxu0 0
    %1744 = vmatpush1.bf16.msra.mxu0 0
    %1745 = vmatprep.mubr.bf16.mxu0 0
    %1746 = vmatmul.mubr.bf16.gmra.mrb[0].mxu0 %v1712
    %v1747 = vpop.f32.mrb[0].mxu0
    %v1748 = vadd.f32 0.0, %v1747
    %v1749 = vpop.f32.mrb[0].mxu0
    %v1750 = vpop.f32.mrb[0].mxu0
    %v1751 = vpop.f32.mrb[0].mxu0
    %1752 = vdwg.mxu0
    %1753 = vmatprep.subr.bf16.mxu0 0
    %1754 = vmatpush1.bf16.msra.mxu0 %v799
    %1755 = vmatprep.subr.bf16.mxu0 0
    %1756 = vmatpush1.bf16.msra.mxu0 %v800
    %1757 = vmatprep.subr.bf16.mxu0 0
    %1758 = vmatpush1.bf16.msra.mxu0 %v801
    %1759 = vmatprep.subr.bf16.mxu0 0
    %1760 = vmatpush1.bf16.msra.mxu0 %v802
    %1761 = vmatprep.subr.bf16.mxu0 0
    %1762 = vmatpush1.bf16.msra.mxu0 %v803
    %1763 = vmatprep.subr.bf16.mxu0 0
    %1764 = vmatpush1.bf16.msra.mxu0 %v804
    %1765 = vmatprep.subr.bf16.mxu0 0
    %1766 = vmatpush1.bf16.msra.mxu0 %v805
    %1767 = vmatprep.subr.bf16.mxu0 0
    %1768 = vmatpush1.bf16.msra.mxu0 %v806
    %1769 = vmatprep.subr.bf16.mxu0 0
    %1770 = vmatpush1.bf16.msra.mxu0 0
    %1771 = vmatprep.subr.bf16.mxu0 0
    %1772 = vmatpush1.bf16.msra.mxu0 0
    %1773 = vmatprep.subr.bf16.mxu0 0
    %1774 = vmatpush1.bf16.msra.mxu0 0
    %1775 = vmatprep.subr.bf16.mxu0 0
    %1776 = vmatpush1.bf16.msra.mxu0 0
    %1777 = vmatprep.subr.bf16.mxu0 0
    %1778 = vmatpush1.bf16.msra.mxu0 0
    %1779 = vmatprep.subr.bf16.mxu0 0
    %1780 = vmatpush1.bf16.msra.mxu0 0
    %1781 = vmatprep.subr.bf16.mxu0 0
    %1782 = vmatpush1.bf16.msra.mxu0 0
    %1783 = vmatprep.subr.bf16.mxu0 0
    %1784 = vmatpush1.bf16.msra.mxu0 0
    %1785 = vmatprep.mubr.bf16.mxu0 0
    %1786 = vmatmul.mubr.bf16.gmra.mrb[0].mxu0 %v1629
    %v1787 = vpop.f32.mrb[0].mxu0
    %v1788 = vadd.f32 %v1748, %v1787
    %v1789 = vpop.f32.mrb[0].mxu0
    %v1790 = vpop.f32.mrb[0].mxu0
    %v1791 = vpop.f32.mrb[0].mxu0
    %1792 = vdwg.mxu0
    %v1793 = vadd.f32 %v1788, %v861
    %v1794 = vtanh.pop %v1793
    %v1795 = vpack.c.bf16 %v1585, %v1585
    %1796 = vmatprep.subr.bf16.mxu0 0
    %1797 = vmatpush1.bf16.msra.mxu0 %v1140
    %1798 = vmatprep.subr.bf16.mxu0 0
    %1799 = vmatpush1.bf16.msra.mxu0 %v1141
    %1800 = vmatprep.subr.bf16.mxu0 0
    %1801 = vmatpush1.bf16.msra.mxu0 %v1142
    %1802 = vmatprep.subr.bf16.mxu0 0
    %1803 = vmatpush1.bf16.msra.mxu0 %v1143
    %1804 = vmatprep.subr.bf16.mxu0 0
    %1805 = vmatpush1.bf16.msra.mxu0 %v1144
    %1806 = vmatprep.subr.bf16.mxu0 0
    %1807 = vmatpush1.bf16.msra.mxu0 %v1145
    %1808 = vmatprep.subr.bf16.mxu0 0
    %1809 = vmatpush1.bf16.msra.mxu0 %v1146
    %1810 = vmatprep.subr.bf16.mxu0 0
    %1811 = vmatpush1.bf16.msra.mxu0 %v1147
    %1812 = vmatprep.subr.bf16.mxu0 0
    %1813 = vmatpush1.bf16.msra.mxu0 0
    %1814 = vmatprep.subr.bf16.mxu0 0
    %1815 = vmatpush1.bf16.msra.mxu0 0
    %1816 = vmatprep.subr.bf16.mxu0 0
    %1817 = vmatpush1.bf16.msra.mxu0 0
    %1818 = vmatprep.subr.bf16.mxu0 0
    %1819 = vmatpush1.bf16.msra.mxu0 0
    %1820 = vmatprep.subr.bf16.mxu0 0
    %1821 = vmatpush1.bf16.msra.mxu0 0
    %1822 = vmatprep.subr.bf16.mxu0 0
    %1823 = vmatpush1.bf16.msra.mxu0 0
    %1824 = vmatprep.subr.bf16.mxu0 0
    %1825 = vmatpush1.bf16.msra.mxu0 0
    %1826 = vmatprep.subr.bf16.mxu0 0
    %1827 = vmatpush1.bf16.msra.mxu0 0
    %1828 = vmatprep.mubr.bf16.mxu0 0
    %1829 = vmatmul.mubr.bf16.gmra.mrb[0].mxu0 %v1795
    %v1830 = vpop.f32.mrb[0].mxu0
    %v1831 = vadd.f32 0.0, %v1830
    %v1832 = vpop.f32.mrb[0].mxu0
    %v1833 = vpop.f32.mrb[0].mxu0
    %v1834 = vpop.f32.mrb[0].mxu0
    %1835 = vdwg.mxu0
    %1836 = vmatprep.subr.bf16.mxu0 0
    %1837 = vmatpush1.bf16.msra.mxu0 %v1228
    %1838 = vmatprep.subr.bf16.mxu0 0
    %1839 = vmatpush1.bf16.msra.mxu0 %v1229
    %1840 = vmatprep.subr.bf16.mxu0 0
    %1841 = vmatpush1.bf16.msra.mxu0 %v1230
    %1842 = vmatprep.subr.bf16.mxu0 0
    %1843 = vmatpush1.bf16.msra.mxu0 %v1231
    %1844 = vmatprep.subr.bf16.mxu0 0
    %1845 = vmatpush1.bf16.msra.mxu0 %v1232
    %1846 = vmatprep.subr.bf16.mxu0 0
    %1847 = vmatpush1.bf16.msra.mxu0 %v1233
    %1848 = vmatprep.subr.bf16.mxu0 0
    %1849 = vmatpush1.bf16.msra.mxu0 %v1234
    %1850 = vmatprep.subr.bf16.mxu0 0
    %1851 = vmatpush1.bf16.msra.mxu0 %v1235
    %1852 = vmatprep.subr.bf16.mxu0 0
    %1853 = vmatpush1.bf16.msra.mxu0 0
    %1854 = vmatprep.subr.bf16.mxu0 0
    %1855 = vmatpush1.bf16.msra.mxu0 0
    %1856 = vmatprep.subr.bf16.mxu0 0
    %1857 = vmatpush1.bf16.msra.mxu0 0
    %1858 = vmatprep.subr.bf16.mxu0 0
    %1859 = vmatpush1.bf16.msra.mxu0 0
    %1860 = vmatprep.subr.bf16.mxu0 0
    %1861 = vmatpush1.bf16.msra.mxu0 0
    %1862 = vmatprep.subr.bf16.mxu0 0
    %1863 = vmatpush1.bf16.msra.mxu0 0
    %1864 = vmatprep.subr.bf16.mxu0 0
    %1865 = vmatpush1.bf16.msra.mxu0 0
    %1866 = vmatprep.subr.bf16.mxu0 0
    %1867 = vmatpush1.bf16.msra.mxu0 0
    %1868 = vmatprep.mubr.bf16.mxu0 0
    %1869 = vmatmul.mubr.bf16.gmra.mrb[0].mxu0 %v1712
    %v1870 = vpop.f32.mrb[0].mxu0
    %v1871 = vadd.f32 %v1831, %v1870
    %v1872 = vpop.f32.mrb[0].mxu0
    %v1873 = vpop.f32.mrb[0].mxu0
    %v1874 = vpop.f32.mrb[0].mxu0
    %1875 = vdwg.mxu0
    %v1876 = vadd.f32 %v1871, %v1290
    %v1877 = vtanh.pop %v1876
    %v1878 = vpack.c.bf16 %v1628, %v1628
    %1879 = vmatprep.subr.bf16.mxu0 0
    %1880 = vmatpush1.bf16.msra.mxu0 %v201
    %1881 = vmatprep.subr.bf16.mxu0 0
    %1882 = vmatpush1.bf16.msra.mxu0 %v202
    %1883 = vmatprep.subr.bf16.mxu0 0
    %1884 = vmatpush1.bf16.msra.mxu0 %v203
    %1885 = vmatprep.subr.bf16.mxu0 0
    %1886 = vmatpush1.bf16.msra.mxu0 %v204
    %1887 = vmatprep.subr.bf16.mxu0 0
    %1888 = vmatpush1.bf16.msra.mxu0 %v205
    %1889 = vmatprep.subr.bf16.mxu0 0
    %1890 = vmatpush1.bf16.msra.mxu0 %v206
    %1891 = vmatprep.subr.bf16.mxu0 0
    %1892 = vmatpush1.bf16.msra.mxu0 %v207
    %1893 = vmatprep.subr.bf16.mxu0 0
    %1894 = vmatpush1.bf16.msra.mxu0 %v208
    %1895 = vmatprep.subr.bf16.mxu0 0
    %1896 = vmatpush1.bf16.msra.mxu0 0
    %1897 = vmatprep.subr.bf16.mxu0 0
    %1898 = vmatpush1.bf16.msra.mxu0 0
    %1899 = vmatprep.subr.bf16.mxu0 0
    %1900 = vmatpush1.bf16.msra.mxu0 0
    %1901 = vmatprep.subr.bf16.mxu0 0
    %1902 = vmatpush1.bf16.msra.mxu0 0
    %1903 = vmatprep.subr.bf16.mxu0 0
    %1904 = vmatpush1.bf16.msra.mxu0 0
    %1905 = vmatprep.subr.bf16.mxu0 0
    %1906 = vmatpush1.bf16.msra.mxu0 0
    %1907 = vmatprep.subr.bf16.mxu0 0
    %1908 = vmatpush1.bf16.msra.mxu0 0
    %1909 = vmatprep.subr.bf16.mxu0 0
    %1910 = vmatpush1.bf16.msra.mxu0 0
    %1911 = vmatprep.mubr.bf16.mxu0 0
    %1912 = vmatmul.mubr.bf16.gmra.mrb[0].mxu0 %v1878
    %v1913 = vpop.f32.mrb[0].mxu0
    %v1914 = vadd.f32 0.0, %v1913
    %v1915 = vpop.f32.mrb[0].mxu0
    %v1916 = vpop.f32.mrb[0].mxu0
    %v1917 = vpop.f32.mrb[0].mxu0
    %1918 = vdwg.mxu0
    %v1919 = vadd.f32 %v151, %v1914
    %v1920 = vtanh.pop %v1919
    %v1921 = vpack.c.bf16 %v1711, %v1711
    %1922 = vmatprep.subr.bf16.mxu0 0
    %1923 = vmatpush1.bf16.msra.mxu0 %v366
    %1924 = vmatprep.subr.bf16.mxu0 0
    %1925 = vmatpush1.bf16.msra.mxu0 %v367
    %1926 = vmatprep.subr.bf16.mxu0 0
    %1927 = vmatpush1.bf16.msra.mxu0 %v368
    %1928 = vmatprep.subr.bf16.mxu0 0
    %1929 = vmatpush1.bf16.msra.mxu0 %v369
    %1930 = vmatprep.subr.bf16.mxu0 0
    %1931 = vmatpush1.bf16.msra.mxu0 %v370
    %1932 = vmatprep.subr.bf16.mxu0 0
    %1933 = vmatpush1.bf16.msra.mxu0 %v371
    %1934 = vmatprep.subr.bf16.mxu0 0
    %1935 = vmatpush1.bf16.msra.mxu0 %v372
    %1936 = vmatprep.subr.bf16.mxu0 0
    %1937 = vmatpush1.bf16.msra.mxu0 %v373
    %1938 = vmatprep.subr.bf16.mxu0 0
    %1939 = vmatpush1.bf16.msra.mxu0 0
    %1940 = vmatprep.subr.bf16.mxu0 0
    %1941 = vmatpush1.bf16.msra.mxu0 0
    %1942 = vmatprep.subr.bf16.mxu0 0
    %1943 = vmatpush1.bf16.msra.mxu0 0
    %1944 = vmatprep.subr.bf16.mxu0 0
    %1945 = vmatpush1.bf16.msra.mxu0 0
    %1946 = vmatprep.subr.bf16.mxu0 0
    %1947 = vmatpush1.bf16.msra.mxu0 0
    %1948 = vmatprep.subr.bf16.mxu0 0
    %1949 = vmatpush1.bf16.msra.mxu0 0
    %1950 = vmatprep.subr.bf16.mxu0 0
    %1951 = vmatpush1.bf16.msra.mxu0 0
    %1952 = vmatprep.subr.bf16.mxu0 0
    %1953 = vmatpush1.bf16.msra.mxu0 0
    %1954 = vmatprep.mubr.bf16.mxu0 0
    %1955 = vmatmul.mubr.bf16.gmra.mrb[0].mxu0 %v1921
    %v1956 = vpop.f32.mrb[0].mxu0
    %v1957 = vadd.f32 0.0, %v1956
    %v1958 = vpop.f32.mrb[0].mxu0
    %v1959 = vpop.f32.mrb[0].mxu0
    %v1960 = vpop.f32.mrb[0].mxu0
    %1961 = vdwg.mxu0
    %1962 = vmatprep.subr.bf16.mxu0 0
    %1963 = vmatpush1.bf16.msra.mxu0 %v454
    %1964 = vmatprep.subr.bf16.mxu0 0
    %1965 = vmatpush1.bf16.msra.mxu0 %v455
    %1966 = vmatprep.subr.bf16.mxu0 0
    %1967 = vmatpush1.bf16.msra.mxu0 %v456
    %1968 = vmatprep.subr.bf16.mxu0 0
    %1969 = vmatpush1.bf16.msra.mxu0 %v457
    %1970 = vmatprep.subr.bf16.mxu0 0
    %1971 = vmatpush1.bf16.msra.mxu0 %v458
    %1972 = vmatprep.subr.bf16.mxu0 0
    %1973 = vmatpush1.bf16.msra.mxu0 %v459
    %1974 = vmatprep.subr.bf16.mxu0 0
    %1975 = vmatpush1.bf16.msra.mxu0 %v460
    %1976 = vmatprep.subr.bf16.mxu0 0
    %1977 = vmatpush1.bf16.msra.mxu0 %v461
    %1978 = vmatprep.subr.bf16.mxu0 0
    %1979 = vmatpush1.bf16.msra.mxu0 0
    %1980 = vmatprep.subr.bf16.mxu0 0
    %1981 = vmatpush1.bf16.msra.mxu0 0
    %1982 = vmatprep.subr.bf16.mxu0 0
    %1983 = vmatpush1.bf16.msra.mxu0 0
    %1984 = vmatprep.subr.bf16.mxu0 0
    %1985 = vmatpush1.bf16.msra.mxu0 0
    %1986 = vmatprep.subr.bf16.mxu0 0
    %1987 = vmatpush1.bf16.msra.mxu0 0
    %1988 = vmatprep.subr.bf16.mxu0 0
    %1989 = vmatpush1.bf16.msra.mxu0 0
    %1990 = vmatprep.subr.bf16.mxu0 0
    %1991 = vmatpush1.bf16.msra.mxu0 0
    %1992 = vmatprep.subr.bf16.mxu0 0
    %1993 = vmatpush1.bf16.msra.mxu0 0
    %1994 = vmatprep.mubr.bf16.mxu0 0
    %1995 = vmatmul.mubr.bf16.gmra.mrb[0].mxu0 %v1878
    %v1996 = vpop.f32.mrb[0].mxu0
    %v1997 = vadd.f32 %v1957, %v1996
    %v1998 = vpop.f32.mrb[0].mxu0
    %v1999 = vpop.f32.mrb[0].mxu0
    %v2000 = vpop.f32.mrb[0].mxu0
    %2001 = vdwg.mxu0
    %v2002 = vadd.f32 %v1997, %v515
    %v2003 = vtanh.pop %v2002
    %v2004 = vpack.c.bf16 %v1794, %v1794
    %2005 = vmatprep.subr.bf16.mxu0 0
    %2006 = vmatpush1.bf16.msra.mxu0 %v711
    %2007 = vmatprep.subr.bf16.mxu0 0
    %2008 = vmatpush1.bf16.msra.mxu0 %v712
    %2009 = vmatprep.subr.bf16.mxu0 0
    %2010 = vmatpush1.bf16.msra.mxu0 %v713
    %2011 = vmatprep.subr.bf16.mxu0 0
    %2012 = vmatpush1.bf16.msra.mxu0 %v714
    %2013 = vmatprep.subr.bf16.mxu0 0
    %2014 = vmatpush1.bf16.msra.mxu0 %v715
    %2015 = vmatprep.subr.bf16.mxu0 0
    %2016 = vmatpush1.bf16.msra.mxu0 %v716
    %2017 = vmatprep.subr.bf16.mxu0 0
    %2018 = vmatpush1.bf16.msra.mxu0 %v717
    %2019 = vmatprep.subr.bf16.mxu0 0
    %2020 = vmatpush1.bf16.msra.mxu0 %v718
    %2021 = vmatprep.subr.bf16.mxu0 0
    %2022 = vmatpush1.bf16.msra.mxu0 0
    %2023 = vmatprep.subr.bf16.mxu0 0
    %2024 = vmatpush1.bf16.msra.mxu0 0
    %2025 = vmatprep.subr.bf16.mxu0 0
    %2026 = vmatpush1.bf16.msra.mxu0 0
    %2027 = vmatprep.subr.bf16.mxu0 0
    %2028 = vmatpush1.bf16.msra.mxu0 0
    %2029 = vmatprep.subr.bf16.mxu0 0
    %2030 = vmatpush1.bf16.msra.mxu0 0
    %2031 = vmatprep.subr.bf16.mxu0 0
    %2032 = vmatpush1.bf16.msra.mxu0 0
    %2033 = vmatprep.subr.bf16.mxu0 0
    %2034 = vmatpush1.bf16.msra.mxu0 0
    %2035 = vmatprep.subr.bf16.mxu0 0
    %2036 = vmatpush1.bf16.msra.mxu0 0
    %2037 = vmatprep.mubr.bf16.mxu0 0
    %2038 = vmatmul.mubr.bf16.gmra.mrb[0].mxu0 %v2004
    %v2039 = vpop.f32.mrb[0].mxu0
    %v2040 = vadd.f32 0.0, %v2039
    %v2041 = vpop.f32.mrb[0].mxu0
    %v2042 = vpop.f32.mrb[0].mxu0
    %v2043 = vpop.f32.mrb[0].mxu0
    %2044 = vdwg.mxu0
    %2045 = vmatprep.subr.bf16.mxu0 0
    %2046 = vmatpush1.bf16.msra.mxu0 %v799
    %2047 = vmatprep.subr.bf16.mxu0 0
    %2048 = vmatpush1.bf16.msra.mxu0 %v800
    %2049 = vmatprep.subr.bf16.mxu0 0
    %2050 = vmatpush1.bf16.msra.mxu0 %v801
    %2051 = vmatprep.subr.bf16.mxu0 0
    %2052 = vmatpush1.bf16.msra.mxu0 %v802
    %2053 = vmatprep.subr.bf16.mxu0 0
    %2054 = vmatpush1.bf16.msra.mxu0 %v803
    %2055 = vmatprep.subr.bf16.mxu0 0
    %2056 = vmatpush1.bf16.msra.mxu0 %v804
    %2057 = vmatprep.subr.bf16.mxu0 0
    %2058 = vmatpush1.bf16.msra.mxu0 %v805
    %2059 = vmatprep.subr.bf16.mxu0 0
    %2060 = vmatpush1.bf16.msra.mxu0 %v806
    %2061 = vmatprep.subr.bf16.mxu0 0
    %2062 = vmatpush1.bf16.msra.mxu0 0
    %2063 = vmatprep.subr.bf16.mxu0 0
    %2064 = vmatpush1.bf16.msra.mxu0 0
    %2065 = vmatprep.subr.bf16.mxu0 0
    %2066 = vmatpush1.bf16.msra.mxu0 0
    %2067 = vmatprep.subr.bf16.mxu0 0
    %2068 = vmatpush1.bf16.msra.mxu0 0
    %2069 = vmatprep.subr.bf16.mxu0 0
    %2070 = vmatpush1.bf16.msra.mxu0 0
    %2071 = vmatprep.subr.bf16.mxu0 0
    %2072 = vmatpush1.bf16.msra.mxu0 0
    %2073 = vmatprep.subr.bf16.mxu0 0
    %2074 = vmatpush1.bf16.msra.mxu0 0
    %2075 = vmatprep.subr.bf16.mxu0 0
    %2076 = vmatpush1.bf16.msra.mxu0 0
    %2077 = vmatprep.mubr.bf16.mxu0 0
    %2078 = vmatmul.mubr.bf16.gmra.mrb[0].mxu0 %v1921
    %v2079 = vpop.f32.mrb[0].mxu0
    %v2080 = vadd.f32 %v2040, %v2079
    %v2081 = vpop.f32.mrb[0].mxu0
    %v2082 = vpop.f32.mrb[0].mxu0
    %v2083 = vpop.f32.mrb[0].mxu0
    %2084 = vdwg.mxu0
    %v2085 = vadd.f32 %v2080, %v861
    %v2086 = vtanh.pop %v2085
    %v2087 = vpack.c.bf16 %v1877, %v1877
    %2088 = vmatprep.subr.bf16.mxu0 0
    %2089 = vmatpush1.bf16.msra.mxu0 %v1140
    %2090 = vmatprep.subr.bf16.mxu0 0
    %2091 = vmatpush1.bf16.msra.mxu0 %v1141
    %2092 = vmatprep.subr.bf16.mxu0 0
    %2093 = vmatpush1.bf16.msra.mxu0 %v1142
    %2094 = vmatprep.subr.bf16.mxu0 0
    %2095 = vmatpush1.bf16.msra.mxu0 %v1143
    %2096 = vmatprep.subr.bf16.mxu0 0
    %2097 = vmatpush1.bf16.msra.mxu0 %v1144
    %2098 = vmatprep.subr.bf16.mxu0 0
    %2099 = vmatpush1.bf16.msra.mxu0 %v1145
    %2100 = vmatprep.subr.bf16.mxu0 0
    %2101 = vmatpush1.bf16.msra.mxu0 %v1146
    %2102 = vmatprep.subr.bf16.mxu0 0
    %2103 = vmatpush1.bf16.msra.mxu0 %v1147
    %2104 = vmatprep.subr.bf16.mxu0 0
    %2105 = vmatpush1.bf16.msra.mxu0 0
    %2106 = vmatprep.subr.bf16.mxu0 0
    %2107 = vmatpush1.bf16.msra.mxu0 0
    %2108 = vmatprep.subr.bf16.mxu0 0
    %2109 = vmatpush1.bf16.msra.mxu0 0
    %2110 = vmatprep.subr.bf16.mxu0 0
    %2111 = vmatpush1.bf16.msra.mxu0 0
    %2112 = vmatprep.subr.bf16.mxu0 0
    %2113 = vmatpush1.bf16.msra.mxu0 0
    %2114 = vmatprep.subr.bf16.mxu0 0
    %2115 = vmatpush1.bf16.msra.mxu0 0
    %2116 = vmatprep.subr.bf16.mxu0 0
    %2117 = vmatpush1.bf16.msra.mxu0 0
    %2118 = vmatprep.subr.bf16.mxu0 0
    %2119 = vmatpush1.bf16.msra.mxu0 0
    %2120 = vmatprep.mubr.bf16.mxu0 0
    %2121 = vmatmul.mubr.bf16.gmra.mrb[0].mxu0 %v2087
    %v2122 = vpop.f32.mrb[0].mxu0
    %v2123 = vadd.f32 0.0, %v2122
    %v2124 = vpop.f32.mrb[0].mxu0
    %v2125 = vpop.f32.mrb[0].mxu0
    %v2126 = vpop.f32.mrb[0].mxu0
    %2127 = vdwg.mxu0
    %2128 = vmatprep.subr.bf16.mxu0 0
    %2129 = vmatpush1.bf16.msra.mxu0 %v1228
    %2130 = vmatprep.subr.bf16.mxu0 0
    %2131 = vmatpush1.bf16.msra.mxu0 %v1229
    %2132 = vmatprep.subr.bf16.mxu0 0
    %2133 = vmatpush1.bf16.msra.mxu0 %v1230
    %2134 = vmatprep.subr.bf16.mxu0 0
    %2135 = vmatpush1.bf16.msra.mxu0 %v1231
    %2136 = vmatprep.subr.bf16.mxu0 0
    %2137 = vmatpush1.bf16.msra.mxu0 %v1232
    %2138 = vmatprep.subr.bf16.mxu0 0
    %2139 = vmatpush1.bf16.msra.mxu0 %v1233
    %2140 = vmatprep.subr.bf16.mxu0 0
    %2141 = vmatpush1.bf16.msra.mxu0 %v1234
    %2142 = vmatprep.subr.bf16.mxu0 0
    %2143 = vmatpush1.bf16.msra.mxu0 %v1235
    %2144 = vmatprep.subr.bf16.mxu0 0
    %2145 = vmatpush1.bf16.msra.mxu0 0
    %2146 = vmatprep.subr.bf16.mxu0 0
    %2147 = vmatpush1.bf16.msra.mxu0 0
    %2148 = vmatprep.subr.bf16.mxu0 0
    %2149 = vmatpush1.bf16.msra.mxu0 0
    %2150 = vmatprep.subr.bf16.mxu0 0
    %2151 = vmatpush1.bf16.msra.mxu0 0
    %2152 = vmatprep.subr.bf16.mxu0 0
    %2153 = vmatpush1.bf16.msra.mxu0 0
    %2154 = vmatprep.subr.bf16.mxu0 0
    %2155 = vmatpush1.bf16.msra.mxu0 0
    %2156 = vmatprep.subr.bf16.mxu0 0
    %2157 = vmatpush1.bf16.msra.mxu0 0
    %2158 = vmatprep.subr.bf16.mxu0 0
    %2159 = vmatpush1.bf16.msra.mxu0 0
    %2160 = vmatprep.mubr.bf16.mxu0 0
    %2161 = vmatmul.mubr.bf16.gmra.mrb[0].mxu0 %v2004
    %v2162 = vpop.f32.mrb[0].mxu0
    %v2163 = vadd.f32 %v2123, %v2162
    %v2164 = vpop.f32.mrb[0].mxu0
    %v2165 = vpop.f32.mrb[0].mxu0
    %v2166 = vpop.f32.mrb[0].mxu0
    %2167 = vdwg.mxu0
    %v2168 = vadd.f32 %v2163, %v1290
    %v2169 = vtanh.pop %v2168
    %v2170 = vpack.c.bf16 %v1920, %v1920
    %2171 = vmatprep.subr.bf16.mxu0 0
    %2172 = vmatpush1.bf16.msra.mxu0 %v201
    %2173 = vmatprep.subr.bf16.mxu0 0
    %2174 = vmatpush1.bf16.msra.mxu0 %v202
    %2175 = vmatprep.subr.bf16.mxu0 0
    %2176 = vmatpush1.bf16.msra.mxu0 %v203
    %2177 = vmatprep.subr.bf16.mxu0 0
    %2178 = vmatpush1.bf16.msra.mxu0 %v204
    %2179 = vmatprep.subr.bf16.mxu0 0
    %2180 = vmatpush1.bf16.msra.mxu0 %v205
    %2181 = vmatprep.subr.bf16.mxu0 0
    %2182 = vmatpush1.bf16.msra.mxu0 %v206
    %2183 = vmatprep.subr.bf16.mxu0 0
    %2184 = vmatpush1.bf16.msra.mxu0 %v207
    %2185 = vmatprep.subr.bf16.mxu0 0
    %2186 = vmatpush1.bf16.msra.mxu0 %v208
    %2187 = vmatprep.subr.bf16.mxu0 0
    %2188 = vmatpush1.bf16.msra.mxu0 0
    %2189 = vmatprep.subr.bf16.mxu0 0
    %2190 = vmatpush1.bf16.msra.mxu0 0
    %2191 = vmatprep.subr.bf16.mxu0 0
    %2192 = vmatpush1.bf16.msra.mxu0 0
    %2193 = vmatprep.subr.bf16.mxu0 0
    %2194 = vmatpush1.bf16.msra.mxu0 0
    %2195 = vmatprep.subr.bf16.mxu0 0
    %2196 = vmatpush1.bf16.msra.mxu0 0
    %2197 = vmatprep.subr.bf16.mxu0 0
    %2198 = vmatpush1.bf16.msra.mxu0 0
    %2199 = vmatprep.subr.bf16.mxu0 0
    %2200 = vmatpush1.bf16.msra.mxu0 0
    %2201 = vmatprep.subr.bf16.mxu0 0
    %2202 = vmatpush1.bf16.msra.mxu0 0
    %2203 = vmatprep.mubr.bf16.mxu0 0
    %2204 = vmatmul.mubr.bf16.gmra.mrb[0].mxu0 %v2170
    %v2205 = vpop.f32.mrb[0].mxu0
    %v2206 = vadd.f32 0.0, %v2205
    %v2207 = vpop.f32.mrb[0].mxu0
    %v2208 = vpop.f32.mrb[0].mxu0
    %v2209 = vpop.f32.mrb[0].mxu0
    %2210 = vdwg.mxu0
    %v2211 = vadd.f32 %v152, %v2206
    %v2212 = vtanh.pop %v2211
    %v2213 = vpack.c.bf16 %v2003, %v2003
    %2214 = vmatprep.subr.bf16.mxu0 0
    %2215 = vmatpush1.bf16.msra.mxu0 %v366
    %2216 = vmatprep.subr.bf16.mxu0 0
    %2217 = vmatpush1.bf16.msra.mxu0 %v367
    %2218 = vmatprep.subr.bf16.mxu0 0
    %2219 = vmatpush1.bf16.msra.mxu0 %v368
    %2220 = vmatprep.subr.bf16.mxu0 0
    %2221 = vmatpush1.bf16.msra.mxu0 %v369
    %2222 = vmatprep.subr.bf16.mxu0 0
    %2223 = vmatpush1.bf16.msra.mxu0 %v370
    %2224 = vmatprep.subr.bf16.mxu0 0
    %2225 = vmatpush1.bf16.msra.mxu0 %v371
    %2226 = vmatprep.subr.bf16.mxu0 0
    %2227 = vmatpush1.bf16.msra.mxu0 %v372
    %2228 = vmatprep.subr.bf16.mxu0 0
    %2229 = vmatpush1.bf16.msra.mxu0 %v373
    %2230 = vmatprep.subr.bf16.mxu0 0
    %2231 = vmatpush1.bf16.msra.mxu0 0
    %2232 = vmatprep.subr.bf16.mxu0 0
    %2233 = vmatpush1.bf16.msra.mxu0 0
    %2234 = vmatprep.subr.bf16.mxu0 0
    %2235 = vmatpush1.bf16.msra.mxu0 0
    %2236 = vmatprep.subr.bf16.mxu0 0
    %2237 = vmatpush1.bf16.msra.mxu0 0
    %2238 = vmatprep.subr.bf16.mxu0 0
    %2239 = vmatpush1.bf16.msra.mxu0 0
    %2240 = vmatprep.subr.bf16.mxu0 0
    %2241 = vmatpush1.bf16.msra.mxu0 0
    %2242 = vmatprep.subr.bf16.mxu0 0
    %2243 = vmatpush1.bf16.msra.mxu0 0
    %2244 = vmatprep.subr.bf16.mxu0 0
    %2245 = vmatpush1.bf16.msra.mxu0 0
    %2246 = vmatprep.mubr.bf16.mxu0 0
    %2247 = vmatmul.mubr.bf16.gmra.mrb[0].mxu0 %v2213
    %v2248 = vpop.f32.mrb[0].mxu0
    %v2249 = vadd.f32 0.0, %v2248
    %v2250 = vpop.f32.mrb[0].mxu0
    %v2251 = vpop.f32.mrb[0].mxu0
    %v2252 = vpop.f32.mrb[0].mxu0
    %2253 = vdwg.mxu0
    %2254 = vmatprep.subr.bf16.mxu0 0
    %2255 = vmatpush1.bf16.msra.mxu0 %v454
    %2256 = vmatprep.subr.bf16.mxu0 0
    %2257 = vmatpush1.bf16.msra.mxu0 %v455
    %2258 = vmatprep.subr.bf16.mxu0 0
    %2259 = vmatpush1.bf16.msra.mxu0 %v456
    %2260 = vmatprep.subr.bf16.mxu0 0
    %2261 = vmatpush1.bf16.msra.mxu0 %v457
    %2262 = vmatprep.subr.bf16.mxu0 0
    %2263 = vmatpush1.bf16.msra.mxu0 %v458
    %2264 = vmatprep.subr.bf16.mxu0 0
    %2265 = vmatpush1.bf16.msra.mxu0 %v459
    %2266 = vmatprep.subr.bf16.mxu0 0
    %2267 = vmatpush1.bf16.msra.mxu0 %v460
    %2268 = vmatprep.subr.bf16.mxu0 0
    %2269 = vmatpush1.bf16.msra.mxu0 %v461
    %2270 = vmatprep.subr.bf16.mxu0 0
    %2271 = vmatpush1.bf16.msra.mxu0 0
    %2272 = vmatprep.subr.bf16.mxu0 0
    %2273 = vmatpush1.bf16.msra.mxu0 0
    %2274 = vmatprep.subr.bf16.mxu0 0
    %2275 = vmatpush1.bf16.msra.mxu0 0
    %2276 = vmatprep.subr.bf16.mxu0 0
    %2277 = vmatpush1.bf16.msra.mxu0 0
    %2278 = vmatprep.subr.bf16.mxu0 0
    %2279 = vmatpush1.bf16.msra.mxu0 0
    %2280 = vmatprep.subr.bf16.mxu0 0
    %2281 = vmatpush1.bf16.msra.mxu0 0
    %2282 = vmatprep.subr.bf16.mxu0 0
    %2283 = vmatpush1.bf16.msra.mxu0 0
    %2284 = vmatprep.subr.bf16.mxu0 0
    %2285 = vmatpush1.bf16.msra.mxu0 0
    %2286 = vmatprep.mubr.bf16.mxu0 0
    %2287 = vmatmul.mubr.bf16.gmra.mrb[0].mxu0 %v2170
    %v2288 = vpop.f32.mrb[0].mxu0
    %v2289 = vadd.f32 %v2249, %v2288
    %v2290 = vpop.f32.mrb[0].mxu0
    %v2291 = vpop.f32.mrb[0].mxu0
    %v2292 = vpop.f32.mrb[0].mxu0
    %2293 = vdwg.mxu0
    %v2294 = vadd.f32 %v2289, %v515
    %v2295 = vtanh.pop %v2294
    %v2296 = vpack.c.bf16 %v2086, %v2086
    %2297 = vmatprep.subr.bf16.mxu0 0
    %2298 = vmatpush1.bf16.msra.mxu0 %v711
    %2299 = vmatprep.subr.bf16.mxu0 0
    %2300 = vmatpush1.bf16.msra.mxu0 %v712
    %2301 = vmatprep.subr.bf16.mxu0 0
    %2302 = vmatpush1.bf16.msra.mxu0 %v713
    %2303 = vmatprep.subr.bf16.mxu0 0
    %2304 = vmatpush1.bf16.msra.mxu0 %v714
    %2305 = vmatprep.subr.bf16.mxu0 0
    %2306 = vmatpush1.bf16.msra.mxu0 %v715
    %2307 = vmatprep.subr.bf16.mxu0 0
    %2308 = vmatpush1.bf16.msra.mxu0 %v716
    %2309 = vmatprep.subr.bf16.mxu0 0
    %2310 = vmatpush1.bf16.msra.mxu0 %v717
    %2311 = vmatprep.subr.bf16.mxu0 0
    %2312 = vmatpush1.bf16.msra.mxu0 %v718
    %2313 = vmatprep.subr.bf16.mxu0 0
    %2314 = vmatpush1.bf16.msra.mxu0 0
    %2315 = vmatprep.subr.bf16.mxu0 0
    %2316 = vmatpush1.bf16.msra.mxu0 0
    %2317 = vmatprep.subr.bf16.mxu0 0
    %2318 = vmatpush1.bf16.msra.mxu0 0
    %2319 = vmatprep.subr.bf16.mxu0 0
    %2320 = vmatpush1.bf16.msra.mxu0 0
    %2321 = vmatprep.subr.bf16.mxu0 0
    %2322 = vmatpush1.bf16.msra.mxu0 0
    %2323 = vmatprep.subr.bf16.mxu0 0
    %2324 = vmatpush1.bf16.msra.mxu0 0
    %2325 = vmatprep.subr.bf16.mxu0 0
    %2326 = vmatpush1.bf16.msra.mxu0 0
    %2327 = vmatprep.subr.bf16.mxu0 0
    %2328 = vmatpush1.bf16.msra.mxu0 0
    %2329 = vmatprep.mubr.bf16.mxu0 0
    %2330 = vmatmul.mubr.bf16.gmra.mrb[0].mxu0 %v2296
    %v2331 = vpop.f32.mrb[0].mxu0
    %v2332 = vadd.f32 0.0, %v2331
    %v2333 = vpop.f32.mrb[0].mxu0
    %v2334 = vpop.f32.mrb[0].mxu0
    %v2335 = vpop.f32.mrb[0].mxu0
    %2336 = vdwg.mxu0
    %2337 = vmatprep.subr.bf16.mxu0 0
    %2338 = vmatpush1.bf16.msra.mxu0 %v799
    %2339 = vmatprep.subr.bf16.mxu0 0
    %2340 = vmatpush1.bf16.msra.mxu0 %v800
    %2341 = vmatprep.subr.bf16.mxu0 0
    %2342 = vmatpush1.bf16.msra.mxu0 %v801
    %2343 = vmatprep.subr.bf16.mxu0 0
    %2344 = vmatpush1.bf16.msra.mxu0 %v802
    %2345 = vmatprep.subr.bf16.mxu0 0
    %2346 = vmatpush1.bf16.msra.mxu0 %v803
    %2347 = vmatprep.subr.bf16.mxu0 0
    %2348 = vmatpush1.bf16.msra.mxu0 %v804
    %2349 = vmatprep.subr.bf16.mxu0 0
    %2350 = vmatpush1.bf16.msra.mxu0 %v805
    %2351 = vmatprep.subr.bf16.mxu0 0
    %2352 = vmatpush1.bf16.msra.mxu0 %v806
    %2353 = vmatprep.subr.bf16.mxu0 0
    %2354 = vmatpush1.bf16.msra.mxu0 0
    %2355 = vmatprep.subr.bf16.mxu0 0
    %2356 = vmatpush1.bf16.msra.mxu0 0
    %2357 = vmatprep.subr.bf16.mxu0 0
    %2358 = vmatpush1.bf16.msra.mxu0 0
    %2359 = vmatprep.subr.bf16.mxu0 0
    %2360 = vmatpush1.bf16.msra.mxu0 0
    %2361 = vmatprep.subr.bf16.mxu0 0
    %2362 = vmatpush1.bf16.msra.mxu0 0
    %2363 = vmatprep.subr.bf16.mxu0 0
    %2364 = vmatpush1.bf16.msra.mxu0 0
    %2365 = vmatprep.subr.bf16.mxu0 0
    %2366 = vmatpush1.bf16.msra.mxu0 0
    %2367 = vmatprep.subr.bf16.mxu0 0
    %2368 = vmatpush1.bf16.msra.mxu0 0
    %2369 = vmatprep.mubr.bf16.mxu0 0
    %2370 = vmatmul.mubr.bf16.gmra.mrb[0].mxu0 %v2213
    %v2371 = vpop.f32.mrb[0].mxu0
    %v2372 = vadd.f32 %v2332, %v2371
    %v2373 = vpop.f32.mrb[0].mxu0
    %v2374 = vpop.f32.mrb[0].mxu0
    %v2375 = vpop.f32.mrb[0].mxu0
    %2376 = vdwg.mxu0
    %v2377 = vadd.f32 %v2372, %v861
    %v2378 = vtanh.pop %v2377
    %v2379 = vpack.c.bf16 %v2169, %v2169
    %2380 = vmatprep.subr.bf16.mxu0 0
    %2381 = vmatpush1.bf16.msra.mxu0 %v1140
    %2382 = vmatprep.subr.bf16.mxu0 0
    %2383 = vmatpush1.bf16.msra.mxu0 %v1141
    %2384 = vmatprep.subr.bf16.mxu0 0
    %2385 = vmatpush1.bf16.msra.mxu0 %v1142
    %2386 = vmatprep.subr.bf16.mxu0 0
    %2387 = vmatpush1.bf16.msra.mxu0 %v1143
    %2388 = vmatprep.subr.bf16.mxu0 0
    %2389 = vmatpush1.bf16.msra.mxu0 %v1144
    %2390 = vmatprep.subr.bf16.mxu0 0
    %2391 = vmatpush1.bf16.msra.mxu0 %v1145
    %2392 = vmatprep.subr.bf16.mxu0 0
    %2393 = vmatpush1.bf16.msra.mxu0 %v1146
    %2394 = vmatprep.subr.bf16.mxu0 0
    %2395 = vmatpush1.bf16.msra.mxu0 %v1147
    %2396 = vmatprep.subr.bf16.mxu0 0
    %2397 = vmatpush1.bf16.msra.mxu0 0
    %2398 = vmatprep.subr.bf16.mxu0 0
    %2399 = vmatpush1.bf16.msra.mxu0 0
    %2400 = vmatprep.subr.bf16.mxu0 0
    %2401 = vmatpush1.bf16.msra.mxu0 0
    %2402 = vmatprep.subr.bf16.mxu0 0
    %2403 = vmatpush1.bf16.msra.mxu0 0
    %2404 = vmatprep.subr.bf16.mxu0 0
    %2405 = vmatpush1.bf16.msra.mxu0 0
    %2406 = vmatprep.subr.bf16.mxu0 0
    %2407 = vmatpush1.bf16.msra.mxu0 0
    %2408 = vmatprep.subr.bf16.mxu0 0
    %2409 = vmatpush1.bf16.msra.mxu0 0
    %2410 = vmatprep.subr.bf16.mxu0 0
    %2411 = vmatpush1.bf16.msra.mxu0 0
    %2412 = vmatprep.mubr.bf16.mxu0 0
    %2413 = vmatmul.mubr.bf16.gmra.mrb[0].mxu0 %v2379
    %v2414 = vpop.f32.mrb[0].mxu0
    %v2415 = vadd.f32 0.0, %v2414
    %v2416 = vpop.f32.mrb[0].mxu0
    %v2417 = vpop.f32.mrb[0].mxu0
    %v2418 = vpop.f32.mrb[0].mxu0
    %2419 = vdwg.mxu0
    %2420 = vmatprep.subr.bf16.mxu0 0
    %2421 = vmatpush1.bf16.msra.mxu0 %v1228
    %2422 = vmatprep.subr.bf16.mxu0 0
    %2423 = vmatpush1.bf16.msra.mxu0 %v1229
    %2424 = vmatprep.subr.bf16.mxu0 0
    %2425 = vmatpush1.bf16.msra.mxu0 %v1230
    %2426 = vmatprep.subr.bf16.mxu0 0
    %2427 = vmatpush1.bf16.msra.mxu0 %v1231
    %2428 = vmatprep.subr.bf16.mxu0 0
    %2429 = vmatpush1.bf16.msra.mxu0 %v1232
    %2430 = vmatprep.subr.bf16.mxu0 0
    %2431 = vmatpush1.bf16.msra.mxu0 %v1233
    %2432 = vmatprep.subr.bf16.mxu0 0
    %2433 = vmatpush1.bf16.msra.mxu0 %v1234
    %2434 = vmatprep.subr.bf16.mxu0 0
    %2435 = vmatpush1.bf16.msra.mxu0 %v1235
    %2436 = vmatprep.subr.bf16.mxu0 0
    %2437 = vmatpush1.bf16.msra.mxu0 0
    %2438 = vmatprep.subr.bf16.mxu0 0
    %2439 = vmatpush1.bf16.msra.mxu0 0
    %2440 = vmatprep.subr.bf16.mxu0 0
    %2441 = vmatpush1.bf16.msra.mxu0 0
    %2442 = vmatprep.subr.bf16.mxu0 0
    %2443 = vmatpush1.bf16.msra.mxu0 0
    %2444 = vmatprep.subr.bf16.mxu0 0
    %2445 = vmatpush1.bf16.msra.mxu0 0
    %2446 = vmatprep.subr.bf16.mxu0 0
    %2447 = vmatpush1.bf16.msra.mxu0 0
    %2448 = vmatprep.subr.bf16.mxu0 0
    %2449 = vmatpush1.bf16.msra.mxu0 0
    %2450 = vmatprep.subr.bf16.mxu0 0
    %2451 = vmatpush1.bf16.msra.mxu0 0
    %2452 = vmatprep.mubr.bf16.mxu0 0
    %2453 = vmatmul.mubr.bf16.gmra.mrb[0].mxu0 %v2296
    %v2454 = vpop.f32.mrb[0].mxu0
    %v2455 = vadd.f32 %v2415, %v2454
    %v2456 = vpop.f32.mrb[0].mxu0
    %v2457 = vpop.f32.mrb[0].mxu0
    %v2458 = vpop.f32.mrb[0].mxu0
    %2459 = vdwg.mxu0
    %v2460 = vadd.f32 %v2455, %v1290
    %v2461 = vtanh.pop %v2460
    %v2462 = vpack.c.bf16 %v2212, %v2212
    %v2463 = vpack.c.bf16 %v2295, %v2295
    %2464 = vmatprep.subr.bf16.mxu0 0
    %2465 = vmatpush1.bf16.msra.mxu0 %v366
    %2466 = vmatprep.subr.bf16.mxu0 0
    %2467 = vmatpush1.bf16.msra.mxu0 %v367
    %2468 = vmatprep.subr.bf16.mxu0 0
    %2469 = vmatpush1.bf16.msra.mxu0 %v368
    %2470 = vmatprep.subr.bf16.mxu0 0
    %2471 = vmatpush1.bf16.msra.mxu0 %v369
    %2472 = vmatprep.subr.bf16.mxu0 0
    %2473 = vmatpush1.bf16.msra.mxu0 %v370
    %2474 = vmatprep.subr.bf16.mxu0 0
    %2475 = vmatpush1.bf16.msra.mxu0 %v371
    %2476 = vmatprep.subr.bf16.mxu0 0
    %2477 = vmatpush1.bf16.msra.mxu0 %v372
    %2478 = vmatprep.subr.bf16.mxu0 0
    %2479 = vmatpush1.bf16.msra.mxu0 %v373
    %2480 = vmatprep.subr.bf16.mxu0 0
    %2481 = vmatpush1.bf16.msra.mxu0 0
    %2482 = vmatprep.subr.bf16.mxu0 0
    %2483 = vmatpush1.bf16.msra.mxu0 0
    %2484 = vmatprep.subr.bf16.mxu0 0
    %2485 = vmatpush1.bf16.msra.mxu0 0
    %2486 = vmatprep.subr.bf16.mxu0 0
    %2487 = vmatpush1.bf16.msra.mxu0 0
    %2488 = vmatprep.subr.bf16.mxu0 0
    %2489 = vmatpush1.bf16.msra.mxu0 0
    %2490 = vmatprep.subr.bf16.mxu0 0
    %2491 = vmatpush1.bf16.msra.mxu0 0
    %2492 = vmatprep.subr.bf16.mxu0 0
    %2493 = vmatpush1.bf16.msra.mxu0 0
    %2494 = vmatprep.subr.bf16.mxu0 0
    %2495 = vmatpush1.bf16.msra.mxu0 0
    %2496 = vmatprep.mubr.bf16.mxu0 0
    %2497 = vmatmul.mubr.bf16.gmra.mrb[0].mxu0 %v2463
    %v2498 = vpop.f32.mrb[0].mxu0
    %v2499 = vadd.f32 0.0, %v2498
    %v2500 = vpop.f32.mrb[0].mxu0
    %v2501 = vpop.f32.mrb[0].mxu0
    %v2502 = vpop.f32.mrb[0].mxu0
    %2503 = vdwg.mxu0
    %2504 = vmatprep.subr.bf16.mxu0 0
    %2505 = vmatpush1.bf16.msra.mxu0 %v454
    %2506 = vmatprep.subr.bf16.mxu0 0
    %2507 = vmatpush1.bf16.msra.mxu0 %v455
    %2508 = vmatprep.subr.bf16.mxu0 0
    %2509 = vmatpush1.bf16.msra.mxu0 %v456
    %2510 = vmatprep.subr.bf16.mxu0 0
    %2511 = vmatpush1.bf16.msra.mxu0 %v457
    %2512 = vmatprep.subr.bf16.mxu0 0
    %2513 = vmatpush1.bf16.msra.mxu0 %v458
    %2514 = vmatprep.subr.bf16.mxu0 0
    %2515 = vmatpush1.bf16.msra.mxu0 %v459
    %2516 = vmatprep.subr.bf16.mxu0 0
    %2517 = vmatpush1.bf16.msra.mxu0 %v460
    %2518 = vmatprep.subr.bf16.mxu0 0
    %2519 = vmatpush1.bf16.msra.mxu0 %v461
    %2520 = vmatprep.subr.bf16.mxu0 0
    %2521 = vmatpush1.bf16.msra.mxu0 0
    %2522 = vmatprep.subr.bf16.mxu0 0
    %2523 = vmatpush1.bf16.msra.mxu0 0
    %2524 = vmatprep.subr.bf16.mxu0 0
    %2525 = vmatpush1.bf16.msra.mxu0 0
    %2526 = vmatprep.subr.bf16.mxu0 0
    %2527 = vmatpush1.bf16.msra.mxu0 0
    %2528 = vmatprep.subr.bf16.mxu0 0
    %2529 = vmatpush1.bf16.msra.mxu0 0
    %2530 = vmatprep.subr.bf16.mxu0 0
    %2531 = vmatpush1.bf16.msra.mxu0 0
    %2532 = vmatprep.subr.bf16.mxu0 0
    %2533 = vmatpush1.bf16.msra.mxu0 0
    %2534 = vmatprep.subr.bf16.mxu0 0
    %2535 = vmatpush1.bf16.msra.mxu0 0
    %2536 = vmatprep.mubr.bf16.mxu0 0
    %2537 = vmatmul.mubr.bf16.gmra.mrb[0].mxu0 %v2462
    %v2538 = vpop.f32.mrb[0].mxu0
    %v2539 = vadd.f32 %v2499, %v2538
    %v2540 = vpop.f32.mrb[0].mxu0
    %v2541 = vpop.f32.mrb[0].mxu0
    %v2542 = vpop.f32.mrb[0].mxu0
    %2543 = vdwg.mxu0
    %v2544 = vadd.f32 %v2539, %v515
    %v2545 = vtanh.pop %v2544
    %v2546 = vpack.c.bf16 %v2378, %v2378
    %2547 = vmatprep.subr.bf16.mxu0 0
    %2548 = vmatpush1.bf16.msra.mxu0 %v711
    %2549 = vmatprep.subr.bf16.mxu0 0
    %2550 = vmatpush1.bf16.msra.mxu0 %v712
    %2551 = vmatprep.subr.bf16.mxu0 0
    %2552 = vmatpush1.bf16.msra.mxu0 %v713
    %2553 = vmatprep.subr.bf16.mxu0 0
    %2554 = vmatpush1.bf16.msra.mxu0 %v714
    %2555 = vmatprep.subr.bf16.mxu0 0
    %2556 = vmatpush1.bf16.msra.mxu0 %v715
    %2557 = vmatprep.subr.bf16.mxu0 0
    %2558 = vmatpush1.bf16.msra.mxu0 %v716
    %2559 = vmatprep.subr.bf16.mxu0 0
    %2560 = vmatpush1.bf16.msra.mxu0 %v717
    %2561 = vmatprep.subr.bf16.mxu0 0
    %2562 = vmatpush1.bf16.msra.mxu0 %v718
    %2563 = vmatprep.subr.bf16.mxu0 0
    %2564 = vmatpush1.bf16.msra.mxu0 0
    %2565 = vmatprep.subr.bf16.mxu0 0
    %2566 = vmatpush1.bf16.msra.mxu0 0
    %2567 = vmatprep.subr.bf16.mxu0 0
    %2568 = vmatpush1.bf16.msra.mxu0 0
    %2569 = vmatprep.subr.bf16.mxu0 0
    %2570 = vmatpush1.bf16.msra.mxu0 0
    %2571 = vmatprep.subr.bf16.mxu0 0
    %2572 = vmatpush1.bf16.msra.mxu0 0
    %2573 = vmatprep.subr.bf16.mxu0 0
    %2574 = vmatpush1.bf16.msra.mxu0 0
    %2575 = vmatprep.subr.bf16.mxu0 0
    %2576 = vmatpush1.bf16.msra.mxu0 0
    %2577 = vmatprep.subr.bf16.mxu0 0
    %2578 = vmatpush1.bf16.msra.mxu0 0
    %2579 = vmatprep.mubr.bf16.mxu0 0
    %2580 = vmatmul.mubr.bf16.gmra.mrb[0].mxu0 %v2546
    %v2581 = vpop.f32.mrb[0].mxu0
    %v2582 = vadd.f32 0.0, %v2581
    %v2583 = vpop.f32.mrb[0].mxu0
    %v2584 = vpop.f32.mrb[0].mxu0
    %v2585 = vpop.f32.mrb[0].mxu0
    %2586 = vdwg.mxu0
    %2587 = vmatprep.subr.bf16.mxu0 0
    %2588 = vmatpush1.bf16.msra.mxu0 %v799
    %2589 = vmatprep.subr.bf16.mxu0 0
    %2590 = vmatpush1.bf16.msra.mxu0 %v800
    %2591 = vmatprep.subr.bf16.mxu0 0
    %2592 = vmatpush1.bf16.msra.mxu0 %v801
    %2593 = vmatprep.subr.bf16.mxu0 0
    %2594 = vmatpush1.bf16.msra.mxu0 %v802
    %2595 = vmatprep.subr.bf16.mxu0 0
    %2596 = vmatpush1.bf16.msra.mxu0 %v803
    %2597 = vmatprep.subr.bf16.mxu0 0
    %2598 = vmatpush1.bf16.msra.mxu0 %v804
    %2599 = vmatprep.subr.bf16.mxu0 0
    %2600 = vmatpush1.bf16.msra.mxu0 %v805
    %2601 = vmatprep.subr.bf16.mxu0 0
    %2602 = vmatpush1.bf16.msra.mxu0 %v806
    %2603 = vmatprep.subr.bf16.mxu0 0
    %2604 = vmatpush1.bf16.msra.mxu0 0
    %2605 = vmatprep.subr.bf16.mxu0 0
    %2606 = vmatpush1.bf16.msra.mxu0 0
    %2607 = vmatprep.subr.bf16.mxu0 0
    %2608 = vmatpush1.bf16.msra.mxu0 0
    %2609 = vmatprep.subr.bf16.mxu0 0
    %2610 = vmatpush1.bf16.msra.mxu0 0
    %2611 = vmatprep.subr.bf16.mxu0 0
    %2612 = vmatpush1.bf16.msra.mxu0 0
    %2613 = vmatprep.subr.bf16.mxu0 0
    %2614 = vmatpush1.bf16.msra.mxu0 0
    %2615 = vmatprep.subr.bf16.mxu0 0
    %2616 = vmatpush1.bf16.msra.mxu0 0
    %2617 = vmatprep.subr.bf16.mxu0 0
    %2618 = vmatpush1.bf16.msra.mxu0 0
    %2619 = vmatprep.mubr.bf16.mxu0 0
    %2620 = vmatmul.mubr.bf16.gmra.mrb[0].mxu0 %v2463
    %v2621 = vpop.f32.mrb[0].mxu0
    %v2622 = vadd.f32 %v2582, %v2621
    %v2623 = vpop.f32.mrb[0].mxu0
    %v2624 = vpop.f32.mrb[0].mxu0
    %v2625 = vpop.f32.mrb[0].mxu0
    %2626 = vdwg.mxu0
    %v2627 = vadd.f32 %v2622, %v861
    %v2628 = vtanh.pop %v2627
    %v2629 = vpack.c.bf16 %v2461, %v2461
    %2630 = vmatprep.subr.bf16.mxu0 0
    %2631 = vmatpush1.bf16.msra.mxu0 %v1140
    %2632 = vmatprep.subr.bf16.mxu0 0
    %2633 = vmatpush1.bf16.msra.mxu0 %v1141
    %2634 = vmatprep.subr.bf16.mxu0 0
    %2635 = vmatpush1.bf16.msra.mxu0 %v1142
    %2636 = vmatprep.subr.bf16.mxu0 0
    %2637 = vmatpush1.bf16.msra.mxu0 %v1143
    %2638 = vmatprep.subr.bf16.mxu0 0
    %2639 = vmatpush1.bf16.msra.mxu0 %v1144
    %2640 = vmatprep.subr.bf16.mxu0 0
    %2641 = vmatpush1.bf16.msra.mxu0 %v1145
    %2642 = vmatprep.subr.bf16.mxu0 0
    %2643 = vmatpush1.bf16.msra.mxu0 %v1146
    %2644 = vmatprep.subr.bf16.mxu0 0
    %2645 = vmatpush1.bf16.msra.mxu0 %v1147
    %2646 = vmatprep.subr.bf16.mxu0 0
    %2647 = vmatpush1.bf16.msra.mxu0 0
    %2648 = vmatprep.subr.bf16.mxu0 0
    %2649 = vmatpush1.bf16.msra.mxu0 0
    %2650 = vmatprep.subr.bf16.mxu0 0
    %2651 = vmatpush1.bf16.msra.mxu0 0
    %2652 = vmatprep.subr.bf16.mxu0 0
    %2653 = vmatpush1.bf16.msra.mxu0 0
    %2654 = vmatprep.subr.bf16.mxu0 0
    %2655 = vmatpush1.bf16.msra.mxu0 0
    %2656 = vmatprep.subr.bf16.mxu0 0
    %2657 = vmatpush1.bf16.msra.mxu0 0
    %2658 = vmatprep.subr.bf16.mxu0 0
    %2659 = vmatpush1.bf16.msra.mxu0 0
    %2660 = vmatprep.subr.bf16.mxu0 0
    %2661 = vmatpush1.bf16.msra.mxu0 0
    %2662 = vmatprep.mubr.bf16.mxu0 0
    %2663 = vmatmul.mubr.bf16.gmra.mrb[0].mxu0 %v2629
    %v2664 = vpop.f32.mrb[0].mxu0
    %v2665 = vadd.f32 0.0, %v2664
    %v2666 = vpop.f32.mrb[0].mxu0
    %v2667 = vpop.f32.mrb[0].mxu0
    %v2668 = vpop.f32.mrb[0].mxu0
    %2669 = vdwg.mxu0
    %2670 = vmatprep.subr.bf16.mxu0 0
    %2671 = vmatpush1.bf16.msra.mxu0 %v1228
    %2672 = vmatprep.subr.bf16.mxu0 0
    %2673 = vmatpush1.bf16.msra.mxu0 %v1229
    %2674 = vmatprep.subr.bf16.mxu0 0
    %2675 = vmatpush1.bf16.msra.mxu0 %v1230
    %2676 = vmatprep.subr.bf16.mxu0 0
    %2677 = vmatpush1.bf16.msra.mxu0 %v1231
    %2678 = vmatprep.subr.bf16.mxu0 0
    %2679 = vmatpush1.bf16.msra.mxu0 %v1232
    %2680 = vmatprep.subr.bf16.mxu0 0
    %2681 = vmatpush1.bf16.msra.mxu0 %v1233
    %2682 = vmatprep.subr.bf16.mxu0 0
    %2683 = vmatpush1.bf16.msra.mxu0 %v1234
    %2684 = vmatprep.subr.bf16.mxu0 0
    %2685 = vmatpush1.bf16.msra.mxu0 %v1235
    %2686 = vmatprep.subr.bf16.mxu0 0
    %2687 = vmatpush1.bf16.msra.mxu0 0
    %2688 = vmatprep.subr.bf16.mxu0 0
    %2689 = vmatpush1.bf16.msra.mxu0 0
    %2690 = vmatprep.subr.bf16.mxu0 0
    %2691 = vmatpush1.bf16.msra.mxu0 0
    %2692 = vmatprep.subr.bf16.mxu0 0
    %2693 = vmatpush1.bf16.msra.mxu0 0
    %2694 = vmatprep.subr.bf16.mxu0 0
    %2695 = vmatpush1.bf16.msra.mxu0 0
    %2696 = vmatprep.subr.bf16.mxu0 0
    %2697 = vmatpush1.bf16.msra.mxu0 0
    %2698 = vmatprep.subr.bf16.mxu0 0
    %2699 = vmatpush1.bf16.msra.mxu0 0
    %2700 = vmatprep.subr.bf16.mxu0 0
    %2701 = vmatpush1.bf16.msra.mxu0 0
    %2702 = vmatprep.mubr.bf16.mxu0 0
    %2703 = vmatmul.mubr.bf16.gmra.mrb[0].mxu0 %v2546
    %v2704 = vpop.f32.mrb[0].mxu0
    %v2705 = vadd.f32 %v2665, %v2704
    %v2706 = vpop.f32.mrb[0].mxu0
    %v2707 = vpop.f32.mrb[0].mxu0
    %v2708 = vpop.f32.mrb[0].mxu0
    %2709 = vdwg.mxu0
    %v2710 = vadd.f32 %v2705, %v1290
    %v2711 = vtanh.pop %v2710
    %v2712 = vpack.c.bf16 %v2545, %v2545
    %v2713 = vpack.c.bf16 %v2628, %v2628
    %2714 = vmatprep.subr.bf16.mxu0 0
    %2715 = vmatpush1.bf16.msra.mxu0 %v711
    %2716 = vmatprep.subr.bf16.mxu0 0
    %2717 = vmatpush1.bf16.msra.mxu0 %v712
    %2718 = vmatprep.subr.bf16.mxu0 0
    %2719 = vmatpush1.bf16.msra.mxu0 %v713
    %2720 = vmatprep.subr.bf16.mxu0 0
    %2721 = vmatpush1.bf16.msra.mxu0 %v714
    %2722 = vmatprep.subr.bf16.mxu0 0
    %2723 = vmatpush1.bf16.msra.mxu0 %v715
    %2724 = vmatprep.subr.bf16.mxu0 0
    %2725 = vmatpush1.bf16.msra.mxu0 %v716
    %2726 = vmatprep.subr.bf16.mxu0 0
    %2727 = vmatpush1.bf16.msra.mxu0 %v717
    %2728 = vmatprep.subr.bf16.mxu0 0
    %2729 = vmatpush1.bf16.msra.mxu0 %v718
    %2730 = vmatprep.subr.bf16.mxu0 0
    %2731 = vmatpush1.bf16.msra.mxu0 0
    %2732 = vmatprep.subr.bf16.mxu0 0
    %2733 = vmatpush1.bf16.msra.mxu0 0
    %2734 = vmatprep.subr.bf16.mxu0 0
    %2735 = vmatpush1.bf16.msra.mxu0 0
    %2736 = vmatprep.subr.bf16.mxu0 0
    %2737 = vmatpush1.bf16.msra.mxu0 0
    %2738 = vmatprep.subr.bf16.mxu0 0
    %2739 = vmatpush1.bf16.msra.mxu0 0
    %2740 = vmatprep.subr.bf16.mxu0 0
    %2741 = vmatpush1.bf16.msra.mxu0 0
    %2742 = vmatprep.subr.bf16.mxu0 0
    %2743 = vmatpush1.bf16.msra.mxu0 0
    %2744 = vmatprep.subr.bf16.mxu0 0
    %2745 = vmatpush1.bf16.msra.mxu0 0
    %2746 = vmatprep.mubr.bf16.mxu0 0
    %2747 = vmatmul.mubr.bf16.gmra.mrb[0].mxu0 %v2713
    %v2748 = vpop.f32.mrb[0].mxu0
    %v2749 = vadd.f32 0.0, %v2748
    %v2750 = vpop.f32.mrb[0].mxu0
    %v2751 = vpop.f32.mrb[0].mxu0
    %v2752 = vpop.f32.mrb[0].mxu0
    %2753 = vdwg.mxu0
    %2754 = vmatprep.subr.bf16.mxu0 0
    %2755 = vmatpush1.bf16.msra.mxu0 %v799
    %2756 = vmatprep.subr.bf16.mxu0 0
    %2757 = vmatpush1.bf16.msra.mxu0 %v800
    %2758 = vmatprep.subr.bf16.mxu0 0
    %2759 = vmatpush1.bf16.msra.mxu0 %v801
    %2760 = vmatprep.subr.bf16.mxu0 0
    %2761 = vmatpush1.bf16.msra.mxu0 %v802
    %2762 = vmatprep.subr.bf16.mxu0 0
    %2763 = vmatpush1.bf16.msra.mxu0 %v803
    %2764 = vmatprep.subr.bf16.mxu0 0
    %2765 = vmatpush1.bf16.msra.mxu0 %v804
    %2766 = vmatprep.subr.bf16.mxu0 0
    %2767 = vmatpush1.bf16.msra.mxu0 %v805
    %2768 = vmatprep.subr.bf16.mxu0 0
    %2769 = vmatpush1.bf16.msra.mxu0 %v806
    %2770 = vmatprep.subr.bf16.mxu0 0
    %2771 = vmatpush1.bf16.msra.mxu0 0
    %2772 = vmatprep.subr.bf16.mxu0 0
    %2773 = vmatpush1.bf16.msra.mxu0 0
    %2774 = vmatprep.subr.bf16.mxu0 0
    %2775 = vmatpush1.bf16.msra.mxu0 0
    %2776 = vmatprep.subr.bf16.mxu0 0
    %2777 = vmatpush1.bf16.msra.mxu0 0
    %2778 = vmatprep.subr.bf16.mxu0 0
    %2779 = vmatpush1.bf16.msra.mxu0 0
    %2780 = vmatprep.subr.bf16.mxu0 0
    %2781 = vmatpush1.bf16.msra.mxu0 0
    %2782 = vmatprep.subr.bf16.mxu0 0
    %2783 = vmatpush1.bf16.msra.mxu0 0
    %2784 = vmatprep.subr.bf16.mxu0 0
    %2785 = vmatpush1.bf16.msra.mxu0 0
    %2786 = vmatprep.mubr.bf16.mxu0 0
    %2787 = vmatmul.mubr.bf16.gmra.mrb[0].mxu0 %v2712
    %v2788 = vpop.f32.mrb[0].mxu0
    %v2789 = vadd.f32 %v2749, %v2788
    %v2790 = vpop.f32.mrb[0].mxu0
    %v2791 = vpop.f32.mrb[0].mxu0
    %v2792 = vpop.f32.mrb[0].mxu0
    %2793 = vdwg.mxu0
    %v2794 = vadd.f32 %v2789, %v861
    %v2795 = vtanh.pop %v2794
    %v2796 = vpack.c.bf16 %v2711, %v2711
    %2797 = vmatprep.subr.bf16.mxu0 0
    %2798 = vmatpush1.bf16.msra.mxu0 %v1140
    %2799 = vmatprep.subr.bf16.mxu0 0
    %2800 = vmatpush1.bf16.msra.mxu0 %v1141
    %2801 = vmatprep.subr.bf16.mxu0 0
    %2802 = vmatpush1.bf16.msra.mxu0 %v1142
    %2803 = vmatprep.subr.bf16.mxu0 0
    %2804 = vmatpush1.bf16.msra.mxu0 %v1143
    %2805 = vmatprep.subr.bf16.mxu0 0
    %2806 = vmatpush1.bf16.msra.mxu0 %v1144
    %2807 = vmatprep.subr.bf16.mxu0 0
    %2808 = vmatpush1.bf16.msra.mxu0 %v1145
    %2809 = vmatprep.subr.bf16.mxu0 0
    %2810 = vmatpush1.bf16.msra.mxu0 %v1146
    %2811 = vmatprep.subr.bf16.mxu0 0
    %2812 = vmatpush1.bf16.msra.mxu0 %v1147
    %2813 = vmatprep.subr.bf16.mxu0 0
    %2814 = vmatpush1.bf16.msra.mxu0 0
    %2815 = vmatprep.subr.bf16.mxu0 0
    %2816 = vmatpush1.bf16.msra.mxu0 0
    %2817 = vmatprep.subr.bf16.mxu0 0
    %2818 = vmatpush1.bf16.msra.mxu0 0
    %2819 = vmatprep.subr.bf16.mxu0 0
    %2820 = vmatpush1.bf16.msra.mxu0 0
    %2821 = vmatprep.subr.bf16.mxu0 0
    %2822 = vmatpush1.bf16.msra.mxu0 0
    %2823 = vmatprep.subr.bf16.mxu0 0
    %2824 = vmatpush1.bf16.msra.mxu0 0
    %2825 = vmatprep.subr.bf16.mxu0 0
    %2826 = vmatpush1.bf16.msra.mxu0 0
    %2827 = vmatprep.subr.bf16.mxu0 0
    %2828 = vmatpush1.bf16.msra.mxu0 0
    %2829 = vmatprep.mubr.bf16.mxu0 0
    %2830 = vmatmul.mubr.bf16.gmra.mrb[0].mxu0 %v2796
    %v2831 = vpop.f32.mrb[0].mxu0
    %v2832 = vadd.f32 0.0, %v2831
    %v2833 = vpop.f32.mrb[0].mxu0
    %v2834 = vpop.f32.mrb[0].mxu0
    %v2835 = vpop.f32.mrb[0].mxu0
    %2836 = vdwg.mxu0
    %2837 = vmatprep.subr.bf16.mxu0 0
    %2838 = vmatpush1.bf16.msra.mxu0 %v1228
    %2839 = vmatprep.subr.bf16.mxu0 0
    %2840 = vmatpush1.bf16.msra.mxu0 %v1229
    %2841 = vmatprep.subr.bf16.mxu0 0
    %2842 = vmatpush1.bf16.msra.mxu0 %v1230
    %2843 = vmatprep.subr.bf16.mxu0 0
    %2844 = vmatpush1.bf16.msra.mxu0 %v1231
    %2845 = vmatprep.subr.bf16.mxu0 0
    %2846 = vmatpush1.bf16.msra.mxu0 %v1232
    %2847 = vmatprep.subr.bf16.mxu0 0
    %2848 = vmatpush1.bf16.msra.mxu0 %v1233
    %2849 = vmatprep.subr.bf16.mxu0 0
    %2850 = vmatpush1.bf16.msra.mxu0 %v1234
    %2851 = vmatprep.subr.bf16.mxu0 0
    %2852 = vmatpush1.bf16.msra.mxu0 %v1235
    %2853 = vmatprep.subr.bf16.mxu0 0
    %2854 = vmatpush1.bf16.msra.mxu0 0
    %2855 = vmatprep.subr.bf16.mxu0 0
    %2856 = vmatpush1.bf16.msra.mxu0 0
    %2857 = vmatprep.subr.bf16.mxu0 0
    %2858 = vmatpush1.bf16.msra.mxu0 0
    %2859 = vmatprep.subr.bf16.mxu0 0
    %2860 = vmatpush1.bf16.msra.mxu0 0
    %2861 = vmatprep.subr.bf16.mxu0 0
    %2862 = vmatpush1.bf16.msra.mxu0 0
    %2863 = vmatprep.subr.bf16.mxu0 0
    %2864 = vmatpush1.bf16.msra.mxu0 0
    %2865 = vmatprep.subr.bf16.mxu0 0
    %2866 = vmatpush1.bf16.msra.mxu0 0
    %2867 = vmatprep.subr.bf16.mxu0 0
    %2868 = vmatpush1.bf16.msra.mxu0 0
    %2869 = vmatprep.mubr.bf16.mxu0 0
    %2870 = vmatmul.mubr.bf16.gmra.mrb[0].mxu0 %v2713
    %v2871 = vpop.f32.mrb[0].mxu0
    %v2872 = vadd.f32 %v2832, %v2871
    %v2873 = vpop.f32.mrb[0].mxu0
    %v2874 = vpop.f32.mrb[0].mxu0
    %v2875 = vpop.f32.mrb[0].mxu0
    %2876 = vdwg.mxu0
    %v2877 = vadd.f32 %v2872, %v1290
    %v2878 = vtanh.pop %v2877
    %v2879 = vpack.c.bf16 %v2795, %v2795
    %v2880 = vpack.c.bf16 %v2878, %v2878
    %2881 = vmatprep.subr.bf16.mxu0 0
    %2882 = vmatpush1.bf16.msra.mxu0 %v1140
    %2883 = vmatprep.subr.bf16.mxu0 0
    %2884 = vmatpush1.bf16.msra.mxu0 %v1141
    %2885 = vmatprep.subr.bf16.mxu0 0
    %2886 = vmatpush1.bf16.msra.mxu0 %v1142
    %2887 = vmatprep.subr.bf16.mxu0 0
    %2888 = vmatpush1.bf16.msra.mxu0 %v1143
    %2889 = vmatprep.subr.bf16.mxu0 0
    %2890 = vmatpush1.bf16.msra.mxu0 %v1144
    %2891 = vmatprep.subr.bf16.mxu0 0
    %2892 = vmatpush1.bf16.msra.mxu0 %v1145
    %2893 = vmatprep.subr.bf16.mxu0 0
    %2894 = vmatpush1.bf16.msra.mxu0 %v1146
    %2895 = vmatprep.subr.bf16.mxu0 0
    %2896 = vmatpush1.bf16.msra.mxu0 %v1147
    %2897 = vmatprep.subr.bf16.mxu0 0
    %2898 = vmatpush1.bf16.msra.mxu0 0
    %2899 = vmatprep.subr.bf16.mxu0 0
    %2900 = vmatpush1.bf16.msra.mxu0 0
    %2901 = vmatprep.subr.bf16.mxu0 0
    %2902 = vmatpush1.bf16.msra.mxu0 0
    %2903 = vmatprep.subr.bf16.mxu0 0
    %2904 = vmatpush1.bf16.msra.mxu0 0
    %2905 = vmatprep.subr.bf16.mxu0 0
    %2906 = vmatpush1.bf16.msra.mxu0 0
    %2907 = vmatprep.subr.bf16.mxu0 0
    %2908 = vmatpush1.bf16.msra.mxu0 0
    %2909 = vmatprep.subr.bf16.mxu0 0
    %2910 = vmatpush1.bf16.msra.mxu0 0
    %2911 = vmatprep.subr.bf16.mxu0 0
    %2912 = vmatpush1.bf16.msra.mxu0 0
    %2913 = vmatprep.mubr.bf16.mxu0 0
    %2914 = vmatmul.mubr.bf16.gmra.mrb[0].mxu0 %v2880
    %v2915 = vpop.f32.mrb[0].mxu0
    %v2916 = vadd.f32 0.0, %v2915
    %v2917 = vpop.f32.mrb[0].mxu0
    %v2918 = vpop.f32.mrb[0].mxu0
    %v2919 = vpop.f32.mrb[0].mxu0
    %2920 = vdwg.mxu0
    %2921 = vmatprep.subr.bf16.mxu0 0
    %2922 = vmatpush1.bf16.msra.mxu0 %v1228
    %2923 = vmatprep.subr.bf16.mxu0 0
    %2924 = vmatpush1.bf16.msra.mxu0 %v1229
    %2925 = vmatprep.subr.bf16.mxu0 0
    %2926 = vmatpush1.bf16.msra.mxu0 %v1230
    %2927 = vmatprep.subr.bf16.mxu0 0
    %2928 = vmatpush1.bf16.msra.mxu0 %v1231
    %2929 = vmatprep.subr.bf16.mxu0 0
    %2930 = vmatpush1.bf16.msra.mxu0 %v1232
    %2931 = vmatprep.subr.bf16.mxu0 0
    %2932 = vmatpush1.bf16.msra.mxu0 %v1233
    %2933 = vmatprep.subr.bf16.mxu0 0
    %2934 = vmatpush1.bf16.msra.mxu0 %v1234
    %2935 = vmatprep.subr.bf16.mxu0 0
    %2936 = vmatpush1.bf16.msra.mxu0 %v1235
    %2937 = vmatprep.subr.bf16.mxu0 0
    %2938 = vmatpush1.bf16.msra.mxu0 0
    %2939 = vmatprep.subr.bf16.mxu0 0
    %2940 = vmatpush1.bf16.msra.mxu0 0
    %2941 = vmatprep.subr.bf16.mxu0 0
    %2942 = vmatpush1.bf16.msra.mxu0 0
    %2943 = vmatprep.subr.bf16.mxu0 0
    %2944 = vmatpush1.bf16.msra.mxu0 0
    %2945 = vmatprep.subr.bf16.mxu0 0
    %2946 = vmatpush1.bf16.msra.mxu0 0
    %2947 = vmatprep.subr.bf16.mxu0 0
    %2948 = vmatpush1.bf16.msra.mxu0 0
    %2949 = vmatprep.subr.bf16.mxu0 0
    %2950 = vmatpush1.bf16.msra.mxu0 0
    %2951 = vmatprep.subr.bf16.mxu0 0
    %2952 = vmatpush1.bf16.msra.mxu0 0
    %2953 = vmatprep.mubr.bf16.mxu0 0
    %2954 = vmatmul.mubr.bf16.gmra.mrb[0].mxu0 %v2879
    %v2955 = vpop.f32.mrb[0].mxu0
    %v2956 = vadd.f32 %v2916, %v2955
    %v2957 = vpop.f32.mrb[0].mxu0
    %v2958 = vpop.f32.mrb[0].mxu0
    %v2959 = vpop.f32.mrb[0].mxu0
    %2960 = vdwg.mxu0
    %v2961 = vadd.f32 %v2956, %v1290
    %v2962 = vtanh.pop %v2961
    %v2963 = vld [vmem:[#allocation7] sm:$0xf]
    %v2964 = vld [vmem:[#allocation7 + $0x4] sm:$0xf]
    %v2965 = vld [vmem:[#allocation7 + $0x8] sm:$0xf]
    %v2966 = vld [vmem:[#allocation7 + $0xc] sm:$0xf]
    %v2967 = vld [vmem:[#allocation7 + $0x10] sm:$0xf]
    %v2968 = vld [vmem:[#allocation7 + $0x14] sm:$0xf]
    %v2969 = vld [vmem:[#allocation7 + $0x18] sm:$0xf]
    %v2970 = vld [vmem:[#allocation7 + $0x1c] sm:$0xf]
    %v2971 = vld [vmem:[#allocation7 + $0x20] sm:$0xf]
    %v2972 = vld [vmem:[#allocation7 + $0x24] sm:$0xf]
    %v2973 = vld [vmem:[#allocation7 + $0x28] sm:$0xf]
    %v2974 = vld [vmem:[#allocation7 + $0x2c] sm:$0xf]
    %v2975 = vld [vmem:[#allocation7 + $0x30] sm:$0xf]
    %v2976 = vld [vmem:[#allocation7 + $0x34] sm:$0xf]
    %v2977 = vld [vmem:[#allocation7 + $0x38] sm:$0xf]
    %v2978 = vld [vmem:[#allocation7 + $0x3c] sm:$0xf]
    %v2979 = vpack.c.bf16 %v2962, %v2962
    %v2980 = vld [vmem:[%s8] sm:$0x1]
    %v2982 = vlaneseq
    %v2983 = vshrl.u32 %v2982, 7
    %v2984 = vsub.s32 0, %v2983
    %v2985 = vrot.slane %v2980, %v2984
    %v3003 = vunpack.c.l.b16 %v2963
    %v3004 = vunpack.c.l.b16 %v2964
    %v3005 = vunpack.c.l.b16 %v2965
    %v3006 = vunpack.c.l.b16 %v2966
    %v3007 = vunpack.c.l.b16 %v2967
    %v3008 = vunpack.c.l.b16 %v2968
    %v3009 = vunpack.c.l.b16 %v2969
    %v3010 = vunpack.c.l.b16 %v2970
    %v3011 = vunpack.c.l.b16 %v2971
    %v3012 = vunpack.c.l.b16 %v2972
    %v3013 = vunpack.c.l.b16 %v2973
    %v3014 = vunpack.c.l.b16 %v2974
    %v3015 = vunpack.c.l.b16 %v2975
    %v3016 = vunpack.c.l.b16 %v2976
    %v3017 = vunpack.c.l.b16 %v2977
    %v3018 = vunpack.c.l.b16 %v2978
    %v3019 = vpack.c.b16 %v3004, %v3003
    %v3020 = vpack.c.b16 %v3006, %v3005
    %v3021 = vpack.c.b16 %v3008, %v3007
    %v3022 = vpack.c.b16 %v3010, %v3009
    %v3023 = vpack.c.b16 %v3012, %v3011
    %v3024 = vpack.c.b16 %v3014, %v3013
    %v3025 = vpack.c.b16 %v3016, %v3015
    %v3026 = vpack.c.b16 %v3018, %v3017
    %3035 = vmatprep.subr.bf16.mxu0 0
    %3036 = vmatpush1.bf16.msra.mxu0 %v3019
    %3037 = vmatprep.subr.bf16.mxu0 0
    %3038 = vmatpush1.bf16.msra.mxu0 %v3020
    %3039 = vmatprep.subr.bf16.mxu0 0
    %3040 = vmatpush1.bf16.msra.mxu0 %v3021
    %3041 = vmatprep.subr.bf16.mxu0 0
    %3042 = vmatpush1.bf16.msra.mxu0 %v3022
    %3043 = vmatprep.subr.bf16.mxu0 0
    %3044 = vmatpush1.bf16.msra.mxu0 %v3023
    %3045 = vmatprep.subr.bf16.mxu0 0
    %3046 = vmatpush1.bf16.msra.mxu0 %v3024
    %3047 = vmatprep.subr.bf16.mxu0 0
    %3048 = vmatpush1.bf16.msra.mxu0 %v3025
    %3049 = vmatprep.subr.bf16.mxu0 0
    %3050 = vmatpush1.bf16.msra.mxu0 %v3026
    %3051 = vmatprep.subr.bf16.mxu0 0
    %3052 = vmatpush1.bf16.msra.mxu0 0
    %3053 = vmatprep.subr.bf16.mxu0 0
    %3054 = vmatpush1.bf16.msra.mxu0 0
    %3055 = vmatprep.subr.bf16.mxu0 0
    %3056 = vmatpush1.bf16.msra.mxu0 0
    %3057 = vmatprep.subr.bf16.mxu0 0
    %3058 = vmatpush1.bf16.msra.mxu0 0
    %3059 = vmatprep.subr.bf16.mxu0 0
    %3060 = vmatpush1.bf16.msra.mxu0 0
    %3061 = vmatprep.subr.bf16.mxu0 0
    %3062 = vmatpush1.bf16.msra.mxu0 0
    %3063 = vmatprep.subr.bf16.mxu0 0
    %3064 = vmatpush1.bf16.msra.mxu0 0
    %3065 = vmatprep.subr.bf16.mxu0 0
    %3066 = vmatpush1.bf16.msra.mxu0 0
    %3067 = vmatprep.mubr.bf16.mxu0 0
    %3068 = vmatmul.mubr.bf16.gmra.mrb[0].mxu0 %v2979
    %v3069 = vpop.f32.mrb[0].mxu0
    %v3070 = vadd.f32 %v2985, %v3069
    %v3071 = vpop.f32.mrb[0].mxu0
    %v3072 = vpop.f32.mrb[0].mxu0
    %v3073 = vpop.f32.mrb[0].mxu0
    %3074 = vdwg.mxu0
    %3075 = vst [vmem:[#allocation8] sm:$0xff] %v3070
    // Predicated region
    $region50: #{tpu_custom_call.1} parent=1 // pred_check
      _
    $region51: #{tpu_custom_call.1} parent=1 // pred_check_branch
      %3077 = sbr.rel (0) target = $region53
    $region52: #{tpu_custom_call.1} parent=1 // pred_region
      %s3079 = ssub.s32 128, 128
      %3080 = vsyncadd [#allocation4], %s3079
      %s3082 = sshll.u32 [#allocation8], 4
      %s3083 = int_to_ptr.vmem [resolvable:$true] %s3082
      %3085 = dma.vmem_to_hbm [thread:$0]  %s3083, 128, %s9, [#allocation4]
    $region53: #{tpu_custom_call.1} parent=1 // pred_fallthru
      _
    // Predicated region
    $region54: #{tpu_custom_call.1} parent=1 // pred_check
      _
    $region55: #{tpu_custom_call.1} parent=1 // pred_check_branch
      %3087 = sbr.rel (0) target = $region57
    $region56: #{tpu_custom_call.1} parent=1 // pred_region
      %3088 = dma.done [#allocation4], 128
    $region57: #{tpu_custom_call.1} parent=1 // pred_fallthru
      _
    %3089 = vsyncpa [#allocation3], 1
    %3090 = vsyncpa [#allocation6], 1
    %3091 = vsyncpa [#allocation4], 1

</llo_original>
